<compile_context>
chip_gen: v7x
topology: tpu7x:2x2x1
jax: 0.10.0
libtpu: 0.0.40
codegen_flags: <defaults>
</compile_context>

<pallas_src>
import functools

import jax
import jax.numpy as jnp
import numpy as np
from jax.experimental import pallas as pl
from jax.experimental.pallas import tpu as pltpu

_EPS = 1e-5  # nn.BatchNorm2d default eps


# --------------------------------- kernel ------------------------------------

def _textcnn_kernel(x_ref, sel_ref, w1_ref, b1_ref, w2_ref, b2_ref, o_ref, *,
                    C, k1, k2, p, dim, H, W, NL, SLABS):
    # Geometry (all static Python ints).
    H1 = H - k1 + 1                          # conv1 out rows
    W1 = W - k1 + 1                          # conv1 out cols per sample
    A1 = NL * W - (k1 - 1)                   # conv1 out cols per packed slab
    Hp, Wp = H1 // p, W1 // p                # MaxPool2d(p), floor mode
    H2 = Hp - k2 + 1                         # conv2 out rows
    W2 = Wp - k2 + 1                         # conv2 out cols per sample
    MR, MC = H1 - p + 1, A1 - p + 1          # shifted pool-max map size
    A2R = p * (H2 - 1) + 1                   # conv2 acc rows   (valid at rows p*h')
    A2C = W * (NL - 1) + p * (W2 - 1) + 1    # conv2 acc cols   (valid at W*s + p*q')
    SPAN = W * (NL - 1) + 1                  # window-max row span (value at col W*s)

    for slab in range(SLABS):
        xc = [x_ref[0, slab, c] for c in range(C)]          # (H, NL*W) register tiles

        # ---- conv1 + folded-BN bias + ReLU (shift-and-MAC, scalar weights from SMEM)
        a1 = []
        for co in range(C):
            acc = None
            for ci in range(C):
                for di in range(k1):
                    for dj in range(k1):
                        wv = w1_ref[((co * C + ci) * k1 + di) * k1 + dj]
                        t = xc[ci][di:di + H1, dj:dj + A1] * wv
                        acc = t if acc is None else acc + t
            a1.append(jnp.maximum(acc + b1_ref[co], 0.0))    # (H1, A1)

        # ---- MaxPool2d(p): shifted elementwise max; valid at (p*r, W*s + p*q)
        m = []
        for co in range(C):
            mm = None
            for da in range(p):
                for db in range(p):
                    sh = a1[co][da:da + MR, db:db + MC]
                    mm = sh if mm is None else jnp.maximum(mm, sh)
            m.append(mm)                                     # (MR, MC)

        # ---- conv2 + folded-BN bias + ReLU directly on the stride-p sparse layout
        c2 = []
        for co in range(C):
            acc = None
            for ci in range(C):
                for di in range(k2):
                    for dj in range(k2):
                        wv = w2_ref[((co * C + ci) * k2 + di) * k2 + dj]
                        t = m[ci][p * di:p * di + A2R, p * dj:p * dj + A2C] * wv
                        acc = t if acc is None else acc + t
            c2.append(jnp.maximum(acc + b2_ref[co], 0.0))    # (A2R, A2C)

        # ---- fused pools: channel max, full-H max over valid rows p*h',
        #      then the adaptive W windows as lane-shifted maxes.
        cm = c2[0]
        for co in range(1, C):
            cm = jnp.maximum(cm, c2[co])
        colmax = cm[0:1, :]
        for hh in range(1, H2):
            colmax = jnp.maximum(colmax, cm[p * hh:p * hh + 1, :])   # (1, A2C)

        out_slab = None
        for j in range(dim):                 # adaptive windows over W2 -> dim
            lo = (j * W2) // dim
            hi = -(-((j + 1) * W2) // dim)
            wj = colmax[:, p * lo:p * lo + SPAN]
            for q in range(lo + 1, hi):
                wj = jnp.maximum(wj, colmax[:, p * q:p * q + SPAN])  # (s, j) at col W*s
            # tiny exact-0/1 selection matmul: (col W*s) -> (col s*dim + j)
            t = jnp.dot(wj, sel_ref[j], preferred_element_type=jnp.float32)
            out_slab = t if out_slab is None else out_slab + t
        o_ref[0, slab:slab + 1, :] = out_slab                # single (1, NL*dim) row store


# ----------------------------- wrapper / glue ---------------------------------

def _fold_bn(w, b, gamma, beta, mean, var):
    """Fold eval-mode BatchNorm into conv weights/bias:
       w' = w * s[co],  b' = (b - mean) * s + beta,  s = gamma / sqrt(var + eps)."""
    s = gamma * jax.lax.rsqrt(var + _EPS)
    w_f = (w * s[:, None, None, None]).astype(jnp.float32)
    b_f = ((b - mean) * s + beta).astype(jnp.float32)
    return w_f.reshape(-1), b_f                              # flat OIHW weights, (Co,) bias


def textcnn_forward(x_nchw, params):
    """Forward of TextCNN(channels, kernel_size, pool_size, dim, method='max')."""
    N, C, H, W = x_nchw.shape
    k1 = params["w1"].shape[-1]
    k2 = params["w2"].shape[-1]
    p = int(params["pool_size"])
    dim = int(params["dim"])

    H1, W1 = H - k1 + 1, W - k1 + 1
    Hp, Wp = H1 // p, W1 // p
    H2, W2 = Hp - k2 + 1, Wp - k2 + 1
    assert H1 >= p and W1 >= p and H2 >= 1 and W2 >= 1, "input too small for TextCNN"

    # ---- batching / lane-packing geometry
    NL = max(1, 128 // W)                                    # samples packed along lanes
    SLABS = int(min(4, max(1, -(-N // (2 * NL)))))           # keep >=2 grid steps when possible
    NB = SLABS * NL                                          # samples per grid step
    G = -(-N // NB)
    Npad = G * NB

    # ---- wrapper-side repack: (N,C,H,W) -> (G, SLABS, C, H, NL*W); 128-lane DMA rows
    xp = jnp.pad(x_nchw.astype(jnp.float32),
                 ((0, Npad - N), (0, 0), (0, 0), (0, 0)))
    xp = (xp.reshape(G, SLABS, NL, C, H, W)
            .transpose(0, 1, 3, 4, 2, 5)
            .reshape(G, SLABS, C, H, NL * W))

    # ---- fold eval-mode BatchNorm into conv weights/bias (SMEM scalar tables)
    w1f, b1f = _fold_bn(params["w1"], params["b1"], params["g1"],
                        params["beta1"], params["m1"], params["v1"])
    w2f, b2f = _fold_bn(params["w2"], params["b2"], params["g2"],
                        params["beta2"], params["m2"], params["v2"])

    # ---- trace-time 0/1 selection tables (numpy constants, small resident VMEM input)
    SPAN = W * (NL - 1) + 1
    sel = np.zeros((dim, SPAN, NL * dim), np.float32)
    for j in range(dim):
        for s in range(NL):
            sel[j, W * s, s * dim + j] = 1.0
    sel = jnp.asarray(sel)

    kernel = functools.partial(_textcnn_kernel, C=C, k1=k1, k2=k2, p=p, dim=dim,
                               H=H, W=W, NL=NL, SLABS=SLABS)
    smem = pl.BlockSpec(memory_space=pltpu.MemorySpace.SMEM)

    out = pl.pallas_call(
        kernel,
        out_shape=jax.ShapeDtypeStruct((G, SLABS, NL * dim), jnp.float32),
        grid=(G,),
        in_specs=[
            pl.BlockSpec((1, SLABS, C, H, NL * W), lambda g: (g, 0, 0, 0, 0)),  # packed x
            pl.BlockSpec((dim, SPAN, NL * dim), lambda g: (0, 0, 0)),           # selection tables
            smem, smem, smem, smem,                                             # folded weights/bias
        ],
        out_specs=pl.BlockSpec((1, SLABS, NL * dim), lambda g: (g, 0, 0)),
        compiler_params=pltpu.CompilerParams(
            dimension_semantics=("parallel",),   # sample-block axis -> both TCs on v7x
        ),
    )(xp, sel, w1f, b1f, w2f, b2f)

    return out.reshape(Npad, dim)[:N]                        # (N, dim)


# --------------------------- pure-JAX reference -------------------------------

def _reference_forward(x, params):
    def conv_bn_relu(y, w, b, g, beta, mu, var):
        y = jax.lax.conv_general_dilated(
            y, w, window_strides=(1, 1), padding="VALID",
            dimension_numbers=("NCHW", "OIHW", "NCHW"))
        y = y + b[None, :, None, None]
        s = g * jax.lax.rsqrt(var + _EPS)
        y = (y - mu[None, :, None, None]) * s[None, :, None, None] \
            + beta[None, :, None, None]
        return jnp.maximum(y, 0.0)

    def adaptive_max_last(y, dim):
        W = y.shape[-1]
        cols = []
        for j in range(dim):
            lo = (j * W) // dim
            hi = -(-((j + 1) * W) // dim)
            cols.append(jnp.max(y[..., lo:hi], axis=-1))
        return jnp.stack(cols, axis=-1)

    p, dim = params["pool_size"], params["dim"]
    y = conv_bn_relu(x, params["w1"], params["b1"], params["g1"],
                     params["beta1"], params["m1"], params["v1"])
    y = jax.lax.reduce_window(y, -jnp.inf, jax.lax.max,
                              (1, 1, p, p), (1, 1, p, p), "VALID")
    y = conv_bn_relu(y, params["w2"], params["b2"], params["g2"],
                     params["beta2"], params["m2"], params["v2"])
    y = jnp.max(y, axis=2)                 # net2 adaptive pool: full H reduce
    y = adaptive_max_last(y, dim)          # net2 adaptive pool over W -> (N, C, dim)
    y = jnp.max(y, axis=1)                 # self.pool on (N, C, dim): channel reduce,
    return y                               # W windows are identity (in == out == dim)


# ------------------------------- main ----------------------------------------

def _init_params(key, channels, kernel_size, pool_size, dim):
    ks = jax.random.split(key, 12)
    C = channels
    k1, k2 = kernel_size
    return {
        "w1": 0.2 * jax.random.normal(ks[0], (C, C, k1, k1), jnp.float32),
        "b1": 0.1 * jax.random.normal(ks[1], (C,), jnp.float32),
        "g1": 1.0 + 0.1 * jax.random.normal(ks[2], (C,), jnp.float32),
        "beta1": 0.1 * jax.random.normal(ks[3], (C,), jnp.float32),
        "m1": 0.05 * jax.random.normal(ks[4], (C,), jnp.float32),
        "v1": 0.9 + 0.2 * jax.random.uniform(ks[5], (C,), jnp.float32),
        "w2": 0.2 * jax.random.normal(ks[6], (C, C, k2, k2), jnp.float32),
        "b2": 0.1 * jax.random.normal(ks[7], (C,), jnp.float32),
        "g2": 1.0 + 0.1 * jax.random.normal(ks[8], (C,), jnp.float32),
        "beta2": 0.1 * jax.random.normal(ks[9], (C,), jnp.float32),
        "m2": 0.05 * jax.random.normal(ks[10], (C,), jnp.float32),
        "v2": 0.9 + 0.2 * jax.random.uniform(ks[11], (C,), jnp.float32),
        "pool_size": pool_size,
        "dim": dim,
    }


if __name__ == "__main__":
    # TextCNN(channels=4, kernel_size=(3, 3), pool_size=2, dim=4, method='max')
    channels, kernel_size, pool_size, dim = 4, (3, 3), 2, 4
    key = jax.random.PRNGKey(0)
    pkey, xkey, xkey2 = jax.random.split(key, 3)
    params = _init_params(pkey, channels, kernel_size, pool_size, dim)

    # Small demo batch: one 8-sample lane slab, one grid step.
    x = jax.random.normal(xkey, (2, channels, 16, 16), jnp.float32)
    out = jax.block_until_ready(textcnn_forward(x, params))
    assert out.shape == (2, dim) and out.dtype == jnp.float32
    ref = jax.block_until_ready(_reference_forward(x, params))
    np.testing.assert_allclose(np.asarray(out), np.asarray(ref),
                               rtol=2e-4, atol=2e-4)

    # Larger ragged batch: exercises zero-padding, multi-slab blocks and a
    # multi-step "parallel" grid.
    x2 = jax.random.normal(xkey2, (19, channels, 16, 16), jnp.float32)
    out2 = jax.block_until_ready(textcnn_forward(x2, params))
    ref2 = jax.block_until_ready(_reference_forward(x2, params))
    np.testing.assert_allclose(np.asarray(out2), np.asarray(ref2),
                               rtol=2e-4, atol=2e-4)

    print("KERNEL_OK")
</pallas_src>

<mosaic_0001>
module attributes {stable_mosaic.version = 11 : i64} {
  func.func @_textcnn_kernel(%arg0: i32, %arg1: memref<1x1x4x16x128xf32, #tpu.memory_space<vmem>>, %arg2: memref<4x113x32xf32, #tpu.memory_space<vmem>>, %arg3: memref<144xf32, #tpu.memory_space<smem>>, %arg4: memref<4xf32, #tpu.memory_space<smem>>, %arg5: memref<144xf32, #tpu.memory_space<smem>>, %arg6: memref<4xf32, #tpu.memory_space<smem>>, %arg7: memref<1x1x32xf32, #tpu.memory_space<vmem>>) attributes {dimension_semantics = [#tpu.dimension_semantics<parallel>], iteration_bounds = array<i64: 1>, scalar_prefetch = 0 : i64, scratch_operands = 0 : i64, tpu.core_type = #tpu.core_type<tc>, window_params = [{transform_indices = @transform_0, window_bounds = array<i64: 1, 1, 4, 16, 128>}, {pipeline_mode = #tpu.pipeline_mode<synchronous>, transform_indices = @transform_1, window_bounds = array<i64: 4, 113, 32>}, {transform_indices = @transform_2, window_bounds = array<i64: 144>}, {transform_indices = @transform_3, window_bounds = array<i64: 4>}, {transform_indices = @transform_4, window_bounds = array<i64: 144>}, {transform_indices = @transform_5, window_bounds = array<i64: 4>}, {transform_indices = @transform_6, window_bounds = array<i64: 1, 1, 32>}]} {
    %c0 = arith.constant 0 : index
    %c0_0 = arith.constant 0 : index
    %c0_1 = arith.constant 0 : index
    %c0_2 = arith.constant 0 : index
    %c0_3 = arith.constant 0 : index
    %0 = vector.load %arg1[%c0, %c0_0, %c0_1, %c0_2, %c0_3] : memref<1x1x4x16x128xf32, #tpu.memory_space<vmem>>, vector<1x1x1x16x128xf32>
    %1 = vector.shape_cast %0 : vector<1x1x1x16x128xf32> to vector<16x128xf32>
    %c0_4 = arith.constant 0 : index
    %c0_5 = arith.constant 0 : index
    %c1 = arith.constant 1 : index
    %c0_6 = arith.constant 0 : index
    %c0_7 = arith.constant 0 : index
    %2 = vector.load %arg1[%c0_4, %c0_5, %c1, %c0_6, %c0_7] : memref<1x1x4x16x128xf32, #tpu.memory_space<vmem>>, vector<1x1x1x16x128xf32>
    %3 = vector.shape_cast %2 : vector<1x1x1x16x128xf32> to vector<16x128xf32>
    %c0_8 = arith.constant 0 : index
    %c0_9 = arith.constant 0 : index
    %c2 = arith.constant 2 : index
    %c0_10 = arith.constant 0 : index
    %c0_11 = arith.constant 0 : index
    %4 = vector.load %arg1[%c0_8, %c0_9, %c2, %c0_10, %c0_11] : memref<1x1x4x16x128xf32, #tpu.memory_space<vmem>>, vector<1x1x1x16x128xf32>
    %5 = vector.shape_cast %4 : vector<1x1x1x16x128xf32> to vector<16x128xf32>
    %c0_12 = arith.constant 0 : index
    %c0_13 = arith.constant 0 : index
    %c3 = arith.constant 3 : index
    %c0_14 = arith.constant 0 : index
    %c0_15 = arith.constant 0 : index
    %6 = vector.load %arg1[%c0_12, %c0_13, %c3, %c0_14, %c0_15] : memref<1x1x4x16x128xf32, #tpu.memory_space<vmem>>, vector<1x1x1x16x128xf32>
    %7 = vector.shape_cast %6 : vector<1x1x1x16x128xf32> to vector<16x128xf32>
    %c0_16 = arith.constant 0 : index
    %8 = memref.load %arg3[%c0_16] : memref<144xf32, #tpu.memory_space<smem>>
    %9 = vector.extract_strided_slice %1 {offsets = [0, 0], sizes = [14, 126], strides = [1, 1]} : vector<16x128xf32> to vector<14x126xf32>
    %10 = vector.broadcast %8 : f32 to vector<14x126xf32>
    %11 = arith.mulf %9, %10 : vector<14x126xf32>
    %c1_17 = arith.constant 1 : index
    %12 = memref.load %arg3[%c1_17] : memref<144xf32, #tpu.memory_space<smem>>
    %13 = vector.extract_strided_slice %1 {offsets = [0, 1], sizes = [14, 126], strides = [1, 1]} : vector<16x128xf32> to vector<14x126xf32>
    %14 = vector.broadcast %12 : f32 to vector<14x126xf32>
    %15 = arith.mulf %13, %14 : vector<14x126xf32>
    %16 = arith.addf %11, %15 : vector<14x126xf32>
    %c2_18 = arith.constant 2 : index
    %17 = memref.load %arg3[%c2_18] : memref<144xf32, #tpu.memory_space<smem>>
    %18 = vector.extract_strided_slice %1 {offsets = [0, 2], sizes = [14, 126], strides = [1, 1]} : vector<16x128xf32> to vector<14x126xf32>
    %19 = vector.broadcast %17 : f32 to vector<14x126xf32>
    %20 = arith.mulf %18, %19 : vector<14x126xf32>
    %21 = arith.addf %16, %20 : vector<14x126xf32>
    %c3_19 = arith.constant 3 : index
    %22 = memref.load %arg3[%c3_19] : memref<144xf32, #tpu.memory_space<smem>>
    %23 = vector.extract_strided_slice %1 {offsets = [1, 0], sizes = [14, 126], strides = [1, 1]} : vector<16x128xf32> to vector<14x126xf32>
    %24 = vector.broadcast %22 : f32 to vector<14x126xf32>
    %25 = arith.mulf %23, %24 : vector<14x126xf32>
    %26 = arith.addf %21, %25 : vector<14x126xf32>
    %c4 = arith.constant 4 : index
    %27 = memref.load %arg3[%c4] : memref<144xf32, #tpu.memory_space<smem>>
    %28 = vector.extract_strided_slice %1 {offsets = [1, 1], sizes = [14, 126], strides = [1, 1]} : vector<16x128xf32> to vector<14x126xf32>
    %29 = vector.broadcast %27 : f32 to vector<14x126xf32>
    %30 = arith.mulf %28, %29 : vector<14x126xf32>
    %31 = arith.addf %26, %30 : vector<14x126xf32>
    %c5 = arith.constant 5 : index
    %32 = memref.load %arg3[%c5] : memref<144xf32, #tpu.memory_space<smem>>
    %33 = vector.extract_strided_slice %1 {offsets = [1, 2], sizes = [14, 126], strides = [1, 1]} : vector<16x128xf32> to vector<14x126xf32>
    %34 = vector.broadcast %32 : f32 to vector<14x126xf32>
    %35 = arith.mulf %33, %34 : vector<14x126xf32>
    %36 = arith.addf %31, %35 : vector<14x126xf32>
    %c6 = arith.constant 6 : index
    %37 = memref.load %arg3[%c6] : memref<144xf32, #tpu.memory_space<smem>>
    %38 = vector.extract_strided_slice %1 {offsets = [2, 0], sizes = [14, 126], strides = [1, 1]} : vector<16x128xf32> to vector<14x126xf32>
    %39 = vector.broadcast %37 : f32 to vector<14x126xf32>
    %40 = arith.mulf %38, %39 : vector<14x126xf32>
    %41 = arith.addf %36, %40 : vector<14x126xf32>
    %c7 = arith.constant 7 : index
    %42 = memref.load %arg3[%c7] : memref<144xf32, #tpu.memory_space<smem>>
    %43 = vector.extract_strided_slice %1 {offsets = [2, 1], sizes = [14, 126], strides = [1, 1]} : vector<16x128xf32> to vector<14x126xf32>
    %44 = vector.broadcast %42 : f32 to vector<14x126xf32>
    %45 = arith.mulf %43, %44 : vector<14x126xf32>
    %46 = arith.addf %41, %45 : vector<14x126xf32>
    %c8 = arith.constant 8 : index
    %47 = memref.load %arg3[%c8] : memref<144xf32, #tpu.memory_space<smem>>
    %48 = vector.extract_strided_slice %1 {offsets = [2, 2], sizes = [14, 126], strides = [1, 1]} : vector<16x128xf32> to vector<14x126xf32>
    %49 = vector.broadcast %47 : f32 to vector<14x126xf32>
    %50 = arith.mulf %48, %49 : vector<14x126xf32>
    %51 = arith.addf %46, %50 : vector<14x126xf32>
    %c9 = arith.constant 9 : index
    %52 = memref.load %arg3[%c9] : memref<144xf32, #tpu.memory_space<smem>>
    %53 = vector.extract_strided_slice %3 {offsets = [0, 0], sizes = [14, 126], strides = [1, 1]} : vector<16x128xf32> to vector<14x126xf32>
    %54 = vector.broadcast %52 : f32 to vector<14x126xf32>
    %55 = arith.mulf %53, %54 : vector<14x126xf32>
    %56 = arith.addf %51, %55 : vector<14x126xf32>
    %c10 = arith.constant 10 : index
    %57 = memref.load %arg3[%c10] : memref<144xf32, #tpu.memory_space<smem>>
    %58 = vector.extract_strided_slice %3 {offsets = [0, 1], sizes = [14, 126], strides = [1, 1]} : vector<16x128xf32> to vector<14x126xf32>
    %59 = vector.broadcast %57 : f32 to vector<14x126xf32>
    %60 = arith.mulf %58, %59 : vector<14x126xf32>
    %61 = arith.addf %56, %60 : vector<14x126xf32>
    %c11 = arith.constant 11 : index
    %62 = memref.load %arg3[%c11] : memref<144xf32, #tpu.memory_space<smem>>
    %63 = vector.extract_strided_slice %3 {offsets = [0, 2], sizes = [14, 126], strides = [1, 1]} : vector<16x128xf32> to vector<14x126xf32>
    %64 = vector.broadcast %62 : f32 to vector<14x126xf32>
    %65 = arith.mulf %63, %64 : vector<14x126xf32>
    %66 = arith.addf %61, %65 : vector<14x126xf32>
    %c12 = arith.constant 12 : index
    %67 = memref.load %arg3[%c12] : memref<144xf32, #tpu.memory_space<smem>>
    %68 = vector.extract_strided_slice %3 {offsets = [1, 0], sizes = [14, 126], strides = [1, 1]} : vector<16x128xf32> to vector<14x126xf32>
    %69 = vector.broadcast %67 : f32 to vector<14x126xf32>
    %70 = arith.mulf %68, %69 : vector<14x126xf32>
    %71 = arith.addf %66, %70 : vector<14x126xf32>
    %c13 = arith.constant 13 : index
    %72 = memref.load %arg3[%c13] : memref<144xf32, #tpu.memory_space<smem>>
    %73 = vector.extract_strided_slice %3 {offsets = [1, 1], sizes = [14, 126], strides = [1, 1]} : vector<16x128xf32> to vector<14x126xf32>
    %74 = vector.broadcast %72 : f32 to vector<14x126xf32>
    %75 = arith.mulf %73, %74 : vector<14x126xf32>
    %76 = arith.addf %71, %75 : vector<14x126xf32>
    %c14 = arith.constant 14 : index
    %77 = memref.load %arg3[%c14] : memref<144xf32, #tpu.memory_space<smem>>
    %78 = vector.extract_strided_slice %3 {offsets = [1, 2], sizes = [14, 126], strides = [1, 1]} : vector<16x128xf32> to vector<14x126xf32>
    %79 = vector.broadcast %77 : f32 to vector<14x126xf32>
    %80 = arith.mulf %78, %79 : vector<14x126xf32>
    %81 = arith.addf %76, %80 : vector<14x126xf32>
    %c15 = arith.constant 15 : index
    %82 = memref.load %arg3[%c15] : memref<144xf32, #tpu.memory_space<smem>>
    %83 = vector.extract_strided_slice %3 {offsets = [2, 0], sizes = [14, 126], strides = [1, 1]} : vector<16x128xf32> to vector<14x126xf32>
    %84 = vector.broadcast %82 : f32 to vector<14x126xf32>
    %85 = arith.mulf %83, %84 : vector<14x126xf32>
    %86 = arith.addf %81, %85 : vector<14x126xf32>
    %c16 = arith.constant 16 : index
    %87 = memref.load %arg3[%c16] : memref<144xf32, #tpu.memory_space<smem>>
    %88 = vector.extract_strided_slice %3 {offsets = [2, 1], sizes = [14, 126], strides = [1, 1]} : vector<16x128xf32> to vector<14x126xf32>
    %89 = vector.broadcast %87 : f32 to vector<14x126xf32>
    %90 = arith.mulf %88, %89 : vector<14x126xf32>
    %91 = arith.addf %86, %90 : vector<14x126xf32>
    %c17 = arith.constant 17 : index
    %92 = memref.load %arg3[%c17] : memref<144xf32, #tpu.memory_space<smem>>
    %93 = vector.extract_strided_slice %3 {offsets = [2, 2], sizes = [14, 126], strides = [1, 1]} : vector<16x128xf32> to vector<14x126xf32>
    %94 = vector.broadcast %92 : f32 to vector<14x126xf32>
    %95 = arith.mulf %93, %94 : vector<14x126xf32>
    %96 = arith.addf %91, %95 : vector<14x126xf32>
    %c18 = arith.constant 18 : index
    %97 = memref.load %arg3[%c18] : memref<144xf32, #tpu.memory_space<smem>>
    %98 = vector.extract_strided_slice %5 {offsets = [0, 0], sizes = [14, 126], strides = [1, 1]} : vector<16x128xf32> to vector<14x126xf32>
    %99 = vector.broadcast %97 : f32 to vector<14x126xf32>
    %100 = arith.mulf %98, %99 : vector<14x126xf32>
    %101 = arith.addf %96, %100 : vector<14x126xf32>
    %c19 = arith.constant 19 : index
    %102 = memref.load %arg3[%c19] : memref<144xf32, #tpu.memory_space<smem>>
    %103 = vector.extract_strided_slice %5 {offsets = [0, 1], sizes = [14, 126], strides = [1, 1]} : vector<16x128xf32> to vector<14x126xf32>
    %104 = vector.broadcast %102 : f32 to vector<14x126xf32>
    %105 = arith.mulf %103, %104 : vector<14x126xf32>
    %106 = arith.addf %101, %105 : vector<14x126xf32>
    %c20 = arith.constant 20 : index
    %107 = memref.load %arg3[%c20] : memref<144xf32, #tpu.memory_space<smem>>
    %108 = vector.extract_strided_slice %5 {offsets = [0, 2], sizes = [14, 126], strides = [1, 1]} : vector<16x128xf32> to vector<14x126xf32>
    %109 = vector.broadcast %107 : f32 to vector<14x126xf32>
    %110 = arith.mulf %108, %109 : vector<14x126xf32>
    %111 = arith.addf %106, %110 : vector<14x126xf32>
    %c21 = arith.constant 21 : index
    %112 = memref.load %arg3[%c21] : memref<144xf32, #tpu.memory_space<smem>>
    %113 = vector.extract_strided_slice %5 {offsets = [1, 0], sizes = [14, 126], strides = [1, 1]} : vector<16x128xf32> to vector<14x126xf32>
    %114 = vector.broadcast %112 : f32 to vector<14x126xf32>
    %115 = arith.mulf %113, %114 : vector<14x126xf32>
    %116 = arith.addf %111, %115 : vector<14x126xf32>
    %c22 = arith.constant 22 : index
    %117 = memref.load %arg3[%c22] : memref<144xf32, #tpu.memory_space<smem>>
    %118 = vector.extract_strided_slice %5 {offsets = [1, 1], sizes = [14, 126], strides = [1, 1]} : vector<16x128xf32> to vector<14x126xf32>
    %119 = vector.broadcast %117 : f32 to vector<14x126xf32>
    %120 = arith.mulf %118, %119 : vector<14x126xf32>
    %121 = arith.addf %116, %120 : vector<14x126xf32>
    %c23 = arith.constant 23 : index
    %122 = memref.load %arg3[%c23] : memref<144xf32, #tpu.memory_space<smem>>
    %123 = vector.extract_strided_slice %5 {offsets = [1, 2], sizes = [14, 126], strides = [1, 1]} : vector<16x128xf32> to vector<14x126xf32>
    %124 = vector.broadcast %122 : f32 to vector<14x126xf32>
    %125 = arith.mulf %123, %124 : vector<14x126xf32>
    %126 = arith.addf %121, %125 : vector<14x126xf32>
    %c24 = arith.constant 24 : index
    %127 = memref.load %arg3[%c24] : memref<144xf32, #tpu.memory_space<smem>>
    %128 = vector.extract_strided_slice %5 {offsets = [2, 0], sizes = [14, 126], strides = [1, 1]} : vector<16x128xf32> to vector<14x126xf32>
    %129 = vector.broadcast %127 : f32 to vector<14x126xf32>
    %130 = arith.mulf %128, %129 : vector<14x126xf32>
    %131 = arith.addf %126, %130 : vector<14x126xf32>
    %c25 = arith.constant 25 : index
    %132 = memref.load %arg3[%c25] : memref<144xf32, #tpu.memory_space<smem>>
    %133 = vector.extract_strided_slice %5 {offsets = [2, 1], sizes = [14, 126], strides = [1, 1]} : vector<16x128xf32> to vector<14x126xf32>
    %134 = vector.broadcast %132 : f32 to vector<14x126xf32>
    %135 = arith.mulf %133, %134 : vector<14x126xf32>
    %136 = arith.addf %131, %135 : vector<14x126xf32>
    %c26 = arith.constant 26 : index
    %137 = memref.load %arg3[%c26] : memref<144xf32, #tpu.memory_space<smem>>
    %138 = vector.extract_strided_slice %5 {offsets = [2, 2], sizes = [14, 126], strides = [1, 1]} : vector<16x128xf32> to vector<14x126xf32>
    %139 = vector.broadcast %137 : f32 to vector<14x126xf32>
    %140 = arith.mulf %138, %139 : vector<14x126xf32>
    %141 = arith.addf %136, %140 : vector<14x126xf32>
    %c27 = arith.constant 27 : index
    %142 = memref.load %arg3[%c27] : memref<144xf32, #tpu.memory_space<smem>>
    %143 = vector.extract_strided_slice %7 {offsets = [0, 0], sizes = [14, 126], strides = [1, 1]} : vector<16x128xf32> to vector<14x126xf32>
    %144 = vector.broadcast %142 : f32 to vector<14x126xf32>
    %145 = arith.mulf %143, %144 : vector<14x126xf32>
    %146 = arith.addf %141, %145 : vector<14x126xf32>
    %c28 = arith.constant 28 : index
    %147 = memref.load %arg3[%c28] : memref<144xf32, #tpu.memory_space<smem>>
    %148 = vector.extract_strided_slice %7 {offsets = [0, 1], sizes = [14, 126], strides = [1, 1]} : vector<16x128xf32> to vector<14x126xf32>
    %149 = vector.broadcast %147 : f32 to vector<14x126xf32>
    %150 = arith.mulf %148, %149 : vector<14x126xf32>
    %151 = arith.addf %146, %150 : vector<14x126xf32>
    %c29 = arith.constant 29 : index
    %152 = memref.load %arg3[%c29] : memref<144xf32, #tpu.memory_space<smem>>
    %153 = vector.extract_strided_slice %7 {offsets = [0, 2], sizes = [14, 126], strides = [1, 1]} : vector<16x128xf32> to vector<14x126xf32>
    %154 = vector.broadcast %152 : f32 to vector<14x126xf32>
    %155 = arith.mulf %153, %154 : vector<14x126xf32>
    %156 = arith.addf %151, %155 : vector<14x126xf32>
    %c30 = arith.constant 30 : index
    %157 = memref.load %arg3[%c30] : memref<144xf32, #tpu.memory_space<smem>>
    %158 = vector.extract_strided_slice %7 {offsets = [1, 0], sizes = [14, 126], strides = [1, 1]} : vector<16x128xf32> to vector<14x126xf32>
    %159 = vector.broadcast %157 : f32 to vector<14x126xf32>
    %160 = arith.mulf %158, %159 : vector<14x126xf32>
    %161 = arith.addf %156, %160 : vector<14x126xf32>
    %c31 = arith.constant 31 : index
    %162 = memref.load %arg3[%c31] : memref<144xf32, #tpu.memory_space<smem>>
    %163 = vector.extract_strided_slice %7 {offsets = [1, 1], sizes = [14, 126], strides = [1, 1]} : vector<16x128xf32> to vector<14x126xf32>
    %164 = vector.broadcast %162 : f32 to vector<14x126xf32>
    %165 = arith.mulf %163, %164 : vector<14x126xf32>
    %166 = arith.addf %161, %165 : vector<14x126xf32>
    %c32 = arith.constant 32 : index
    %167 = memref.load %arg3[%c32] : memref<144xf32, #tpu.memory_space<smem>>
    %168 = vector.extract_strided_slice %7 {offsets = [1, 2], sizes = [14, 126], strides = [1, 1]} : vector<16x128xf32> to vector<14x126xf32>
    %169 = vector.broadcast %167 : f32 to vector<14x126xf32>
    %170 = arith.mulf %168, %169 : vector<14x126xf32>
    %171 = arith.addf %166, %170 : vector<14x126xf32>
    %c33 = arith.constant 33 : index
    %172 = memref.load %arg3[%c33] : memref<144xf32, #tpu.memory_space<smem>>
    %173 = vector.extract_strided_slice %7 {offsets = [2, 0], sizes = [14, 126], strides = [1, 1]} : vector<16x128xf32> to vector<14x126xf32>
    %174 = vector.broadcast %172 : f32 to vector<14x126xf32>
    %175 = arith.mulf %173, %174 : vector<14x126xf32>
    %176 = arith.addf %171, %175 : vector<14x126xf32>
    %c34 = arith.constant 34 : index
    %177 = memref.load %arg3[%c34] : memref<144xf32, #tpu.memory_space<smem>>
    %178 = vector.extract_strided_slice %7 {offsets = [2, 1], sizes = [14, 126], strides = [1, 1]} : vector<16x128xf32> to vector<14x126xf32>
    %179 = vector.broadcast %177 : f32 to vector<14x126xf32>
    %180 = arith.mulf %178, %179 : vector<14x126xf32>
    %181 = arith.addf %176, %180 : vector<14x126xf32>
    %c35 = arith.constant 35 : index
    %182 = memref.load %arg3[%c35] : memref<144xf32, #tpu.memory_space<smem>>
    %183 = vector.extract_strided_slice %7 {offsets = [2, 2], sizes = [14, 126], strides = [1, 1]} : vector<16x128xf32> to vector<14x126xf32>
    %184 = vector.broadcast %182 : f32 to vector<14x126xf32>
    %185 = arith.mulf %183, %184 : vector<14x126xf32>
    %186 = arith.addf %181, %185 : vector<14x126xf32>
    %c0_20 = arith.constant 0 : index
    %187 = memref.load %arg4[%c0_20] : memref<4xf32, #tpu.memory_space<smem>>
    %188 = vector.broadcast %187 : f32 to vector<14x126xf32>
    %189 = arith.addf %186, %188 : vector<14x126xf32>
    %cst = arith.constant 0.000000e+00 : f32
    %190 = vector.broadcast %cst : f32 to vector<14x126xf32>
    %191 = arith.maximumf %189, %190 : vector<14x126xf32>
    %c36 = arith.constant 36 : index
    %192 = memref.load %arg3[%c36] : memref<144xf32, #tpu.memory_space<smem>>
    %193 = vector.extract_strided_slice %1 {offsets = [0, 0], sizes = [14, 126], strides = [1, 1]} : vector<16x128xf32> to vector<14x126xf32>
    %194 = vector.broadcast %192 : f32 to vector<14x126xf32>
    %195 = arith.mulf %193, %194 : vector<14x126xf32>
    %c37 = arith.constant 37 : index
    %196 = memref.load %arg3[%c37] : memref<144xf32, #tpu.memory_space<smem>>
    %197 = vector.extract_strided_slice %1 {offsets = [0, 1], sizes = [14, 126], strides = [1, 1]} : vector<16x128xf32> to vector<14x126xf32>
    %198 = vector.broadcast %196 : f32 to vector<14x126xf32>
    %199 = arith.mulf %197, %198 : vector<14x126xf32>
    %200 = arith.addf %195, %199 : vector<14x126xf32>
    %c38 = arith.constant 38 : index
    %201 = memref.load %arg3[%c38] : memref<144xf32, #tpu.memory_space<smem>>
    %202 = vector.extract_strided_slice %1 {offsets = [0, 2], sizes = [14, 126], strides = [1, 1]} : vector<16x128xf32> to vector<14x126xf32>
    %203 = vector.broadcast %201 : f32 to vector<14x126xf32>
    %204 = arith.mulf %202, %203 : vector<14x126xf32>
    %205 = arith.addf %200, %204 : vector<14x126xf32>
    %c39 = arith.constant 39 : index
    %206 = memref.load %arg3[%c39] : memref<144xf32, #tpu.memory_space<smem>>
    %207 = vector.extract_strided_slice %1 {offsets = [1, 0], sizes = [14, 126], strides = [1, 1]} : vector<16x128xf32> to vector<14x126xf32>
    %208 = vector.broadcast %206 : f32 to vector<14x126xf32>
    %209 = arith.mulf %207, %208 : vector<14x126xf32>
    %210 = arith.addf %205, %209 : vector<14x126xf32>
    %c40 = arith.constant 40 : index
    %211 = memref.load %arg3[%c40] : memref<144xf32, #tpu.memory_space<smem>>
    %212 = vector.extract_strided_slice %1 {offsets = [1, 1], sizes = [14, 126], strides = [1, 1]} : vector<16x128xf32> to vector<14x126xf32>
    %213 = vector.broadcast %211 : f32 to vector<14x126xf32>
    %214 = arith.mulf %212, %213 : vector<14x126xf32>
    %215 = arith.addf %210, %214 : vector<14x126xf32>
    %c41 = arith.constant 41 : index
    %216 = memref.load %arg3[%c41] : memref<144xf32, #tpu.memory_space<smem>>
    %217 = vector.extract_strided_slice %1 {offsets = [1, 2], sizes = [14, 126], strides = [1, 1]} : vector<16x128xf32> to vector<14x126xf32>
    %218 = vector.broadcast %216 : f32 to vector<14x126xf32>
    %219 = arith.mulf %217, %218 : vector<14x126xf32>
    %220 = arith.addf %215, %219 : vector<14x126xf32>
    %c42 = arith.constant 42 : index
    %221 = memref.load %arg3[%c42] : memref<144xf32, #tpu.memory_space<smem>>
    %222 = vector.extract_strided_slice %1 {offsets = [2, 0], sizes = [14, 126], strides = [1, 1]} : vector<16x128xf32> to vector<14x126xf32>
    %223 = vector.broadcast %221 : f32 to vector<14x126xf32>
    %224 = arith.mulf %222, %223 : vector<14x126xf32>
    %225 = arith.addf %220, %224 : vector<14x126xf32>
    %c43 = arith.constant 43 : index
    %226 = memref.load %arg3[%c43] : memref<144xf32, #tpu.memory_space<smem>>
    %227 = vector.extract_strided_slice %1 {offsets = [2, 1], sizes = [14, 126], strides = [1, 1]} : vector<16x128xf32> to vector<14x126xf32>
    %228 = vector.broadcast %226 : f32 to vector<14x126xf32>
    %229 = arith.mulf %227, %228 : vector<14x126xf32>
    %230 = arith.addf %225, %229 : vector<14x126xf32>
    %c44 = arith.constant 44 : index
    %231 = memref.load %arg3[%c44] : memref<144xf32, #tpu.memory_space<smem>>
    %232 = vector.extract_strided_slice %1 {offsets = [2, 2], sizes = [14, 126], strides = [1, 1]} : vector<16x128xf32> to vector<14x126xf32>
    %233 = vector.broadcast %231 : f32 to vector<14x126xf32>
    %234 = arith.mulf %232, %233 : vector<14x126xf32>
    %235 = arith.addf %230, %234 : vector<14x126xf32>
    %c45 = arith.constant 45 : index
    %236 = memref.load %arg3[%c45] : memref<144xf32, #tpu.memory_space<smem>>
    %237 = vector.extract_strided_slice %3 {offsets = [0, 0], sizes = [14, 126], strides = [1, 1]} : vector<16x128xf32> to vector<14x126xf32>
    %238 = vector.broadcast %236 : f32 to vector<14x126xf32>
    %239 = arith.mulf %237, %238 : vector<14x126xf32>
    %240 = arith.addf %235, %239 : vector<14x126xf32>
    %c46 = arith.constant 46 : index
    %241 = memref.load %arg3[%c46] : memref<144xf32, #tpu.memory_space<smem>>
    %242 = vector.extract_strided_slice %3 {offsets = [0, 1], sizes = [14, 126], strides = [1, 1]} : vector<16x128xf32> to vector<14x126xf32>
    %243 = vector.broadcast %241 : f32 to vector<14x126xf32>
    %244 = arith.mulf %242, %243 : vector<14x126xf32>
    %245 = arith.addf %240, %244 : vector<14x126xf32>
    %c47 = arith.constant 47 : index
    %246 = memref.load %arg3[%c47] : memref<144xf32, #tpu.memory_space<smem>>
    %247 = vector.extract_strided_slice %3 {offsets = [0, 2], sizes = [14, 126], strides = [1, 1]} : vector<16x128xf32> to vector<14x126xf32>
    %248 = vector.broadcast %246 : f32 to vector<14x126xf32>
    %249 = arith.mulf %247, %248 : vector<14x126xf32>
    %250 = arith.addf %245, %249 : vector<14x126xf32>
    %c48 = arith.constant 48 : index
    %251 = memref.load %arg3[%c48] : memref<144xf32, #tpu.memory_space<smem>>
    %252 = vector.extract_strided_slice %3 {offsets = [1, 0], sizes = [14, 126], strides = [1, 1]} : vector<16x128xf32> to vector<14x126xf32>
    %253 = vector.broadcast %251 : f32 to vector<14x126xf32>
    %254 = arith.mulf %252, %253 : vector<14x126xf32>
    %255 = arith.addf %250, %254 : vector<14x126xf32>
    %c49 = arith.constant 49 : index
    %256 = memref.load %arg3[%c49] : memref<144xf32, #tpu.memory_space<smem>>
    %257 = vector.extract_strided_slice %3 {offsets = [1, 1], sizes = [14, 126], strides = [1, 1]} : vector<16x128xf32> to vector<14x126xf32>
    %258 = vector.broadcast %256 : f32 to vector<14x126xf32>
    %259 = arith.mulf %257, %258 : vector<14x126xf32>
    %260 = arith.addf %255, %259 : vector<14x126xf32>
    %c50 = arith.constant 50 : index
    %261 = memref.load %arg3[%c50] : memref<144xf32, #tpu.memory_space<smem>>
    %262 = vector.extract_strided_slice %3 {offsets = [1, 2], sizes = [14, 126], strides = [1, 1]} : vector<16x128xf32> to vector<14x126xf32>
    %263 = vector.broadcast %261 : f32 to vector<14x126xf32>
    %264 = arith.mulf %262, %263 : vector<14x126xf32>
    %265 = arith.addf %260, %264 : vector<14x126xf32>
    %c51 = arith.constant 51 : index
    %266 = memref.load %arg3[%c51] : memref<144xf32, #tpu.memory_space<smem>>
    %267 = vector.extract_strided_slice %3 {offsets = [2, 0], sizes = [14, 126], strides = [1, 1]} : vector<16x128xf32> to vector<14x126xf32>
    %268 = vector.broadcast %266 : f32 to vector<14x126xf32>
    %269 = arith.mulf %267, %268 : vector<14x126xf32>
    %270 = arith.addf %265, %269 : vector<14x126xf32>
    %c52 = arith.constant 52 : index
    %271 = memref.load %arg3[%c52] : memref<144xf32, #tpu.memory_space<smem>>
    %272 = vector.extract_strided_slice %3 {offsets = [2, 1], sizes = [14, 126], strides = [1, 1]} : vector<16x128xf32> to vector<14x126xf32>
    %273 = vector.broadcast %271 : f32 to vector<14x126xf32>
    %274 = arith.mulf %272, %273 : vector<14x126xf32>
    %275 = arith.addf %270, %274 : vector<14x126xf32>
    %c53 = arith.constant 53 : index
    %276 = memref.load %arg3[%c53] : memref<144xf32, #tpu.memory_space<smem>>
    %277 = vector.extract_strided_slice %3 {offsets = [2, 2], sizes = [14, 126], strides = [1, 1]} : vector<16x128xf32> to vector<14x126xf32>
    %278 = vector.broadcast %276 : f32 to vector<14x126xf32>
    %279 = arith.mulf %277, %278 : vector<14x126xf32>
    %280 = arith.addf %275, %279 : vector<14x126xf32>
    %c54 = arith.constant 54 : index
    %281 = memref.load %arg3[%c54] : memref<144xf32, #tpu.memory_space<smem>>
    %282 = vector.extract_strided_slice %5 {offsets = [0, 0], sizes = [14, 126], strides = [1, 1]} : vector<16x128xf32> to vector<14x126xf32>
    %283 = vector.broadcast %281 : f32 to vector<14x126xf32>
    %284 = arith.mulf %282, %283 : vector<14x126xf32>
    %285 = arith.addf %280, %284 : vector<14x126xf32>
    %c55 = arith.constant 55 : index
    %286 = memref.load %arg3[%c55] : memref<144xf32, #tpu.memory_space<smem>>
    %287 = vector.extract_strided_slice %5 {offsets = [0, 1], sizes = [14, 126], strides = [1, 1]} : vector<16x128xf32> to vector<14x126xf32>
    %288 = vector.broadcast %286 : f32 to vector<14x126xf32>
    %289 = arith.mulf %287, %288 : vector<14x126xf32>
    %290 = arith.addf %285, %289 : vector<14x126xf32>
    %c56 = arith.constant 56 : index
    %291 = memref.load %arg3[%c56] : memref<144xf32, #tpu.memory_space<smem>>
    %292 = vector.extract_strided_slice %5 {offsets = [0, 2], sizes = [14, 126], strides = [1, 1]} : vector<16x128xf32> to vector<14x126xf32>
    %293 = vector.broadcast %291 : f32 to vector<14x126xf32>
    %294 = arith.mulf %292, %293 : vector<14x126xf32>
    %295 = arith.addf %290, %294 : vector<14x126xf32>
    %c57 = arith.constant 57 : index
    %296 = memref.load %arg3[%c57] : memref<144xf32, #tpu.memory_space<smem>>
    %297 = vector.extract_strided_slice %5 {offsets = [1, 0], sizes = [14, 126], strides = [1, 1]} : vector<16x128xf32> to vector<14x126xf32>
    %298 = vector.broadcast %296 : f32 to vector<14x126xf32>
    %299 = arith.mulf %297, %298 : vector<14x126xf32>
    %300 = arith.addf %295, %299 : vector<14x126xf32>
    %c58 = arith.constant 58 : index
    %301 = memref.load %arg3[%c58] : memref<144xf32, #tpu.memory_space<smem>>
    %302 = vector.extract_strided_slice %5 {offsets = [1, 1], sizes = [14, 126], strides = [1, 1]} : vector<16x128xf32> to vector<14x126xf32>
    %303 = vector.broadcast %301 : f32 to vector<14x126xf32>
    %304 = arith.mulf %302, %303 : vector<14x126xf32>
    %305 = arith.addf %300, %304 : vector<14x126xf32>
    %c59 = arith.constant 59 : index
    %306 = memref.load %arg3[%c59] : memref<144xf32, #tpu.memory_space<smem>>
    %307 = vector.extract_strided_slice %5 {offsets = [1, 2], sizes = [14, 126], strides = [1, 1]} : vector<16x128xf32> to vector<14x126xf32>
    %308 = vector.broadcast %306 : f32 to vector<14x126xf32>
    %309 = arith.mulf %307, %308 : vector<14x126xf32>
    %310 = arith.addf %305, %309 : vector<14x126xf32>
    %c60 = arith.constant 60 : index
    %311 = memref.load %arg3[%c60] : memref<144xf32, #tpu.memory_space<smem>>
    %312 = vector.extract_strided_slice %5 {offsets = [2, 0], sizes = [14, 126], strides = [1, 1]} : vector<16x128xf32> to vector<14x126xf32>
    %313 = vector.broadcast %311 : f32 to vector<14x126xf32>
    %314 = arith.mulf %312, %313 : vector<14x126xf32>
    %315 = arith.addf %310, %314 : vector<14x126xf32>
    %c61 = arith.constant 61 : index
    %316 = memref.load %arg3[%c61] : memref<144xf32, #tpu.memory_space<smem>>
    %317 = vector.extract_strided_slice %5 {offsets = [2, 1], sizes = [14, 126], strides = [1, 1]} : vector<16x128xf32> to vector<14x126xf32>
    %318 = vector.broadcast %316 : f32 to vector<14x126xf32>
    %319 = arith.mulf %317, %318 : vector<14x126xf32>
    %320 = arith.addf %315, %319 : vector<14x126xf32>
    %c62 = arith.constant 62 : index
    %321 = memref.load %arg3[%c62] : memref<144xf32, #tpu.memory_space<smem>>
    %322 = vector.extract_strided_slice %5 {offsets = [2, 2], sizes = [14, 126], strides = [1, 1]} : vector<16x128xf32> to vector<14x126xf32>
    %323 = vector.broadcast %321 : f32 to vector<14x126xf32>
    %324 = arith.mulf %322, %323 : vector<14x126xf32>
    %325 = arith.addf %320, %324 : vector<14x126xf32>
    %c63 = arith.constant 63 : index
    %326 = memref.load %arg3[%c63] : memref<144xf32, #tpu.memory_space<smem>>
    %327 = vector.extract_strided_slice %7 {offsets = [0, 0], sizes = [14, 126], strides = [1, 1]} : vector<16x128xf32> to vector<14x126xf32>
    %328 = vector.broadcast %326 : f32 to vector<14x126xf32>
    %329 = arith.mulf %327, %328 : vector<14x126xf32>
    %330 = arith.addf %325, %329 : vector<14x126xf32>
    %c64 = arith.constant 64 : index
    %331 = memref.load %arg3[%c64] : memref<144xf32, #tpu.memory_space<smem>>
    %332 = vector.extract_strided_slice %7 {offsets = [0, 1], sizes = [14, 126], strides = [1, 1]} : vector<16x128xf32> to vector<14x126xf32>
    %333 = vector.broadcast %331 : f32 to vector<14x126xf32>
    %334 = arith.mulf %332, %333 : vector<14x126xf32>
    %335 = arith.addf %330, %334 : vector<14x126xf32>
    %c65 = arith.constant 65 : index
    %336 = memref.load %arg3[%c65] : memref<144xf32, #tpu.memory_space<smem>>
    %337 = vector.extract_strided_slice %7 {offsets = [0, 2], sizes = [14, 126], strides = [1, 1]} : vector<16x128xf32> to vector<14x126xf32>
    %338 = vector.broadcast %336 : f32 to vector<14x126xf32>
    %339 = arith.mulf %337, %338 : vector<14x126xf32>
    %340 = arith.addf %335, %339 : vector<14x126xf32>
    %c66 = arith.constant 66 : index
    %341 = memref.load %arg3[%c66] : memref<144xf32, #tpu.memory_space<smem>>
    %342 = vector.extract_strided_slice %7 {offsets = [1, 0], sizes = [14, 126], strides = [1, 1]} : vector<16x128xf32> to vector<14x126xf32>
    %343 = vector.broadcast %341 : f32 to vector<14x126xf32>
    %344 = arith.mulf %342, %343 : vector<14x126xf32>
    %345 = arith.addf %340, %344 : vector<14x126xf32>
    %c67 = arith.constant 67 : index
    %346 = memref.load %arg3[%c67] : memref<144xf32, #tpu.memory_space<smem>>
    %347 = vector.extract_strided_slice %7 {offsets = [1, 1], sizes = [14, 126], strides = [1, 1]} : vector<16x128xf32> to vector<14x126xf32>
    %348 = vector.broadcast %346 : f32 to vector<14x126xf32>
    %349 = arith.mulf %347, %348 : vector<14x126xf32>
    %350 = arith.addf %345, %349 : vector<14x126xf32>
    %c68 = arith.constant 68 : index
    %351 = memref.load %arg3[%c68] : memref<144xf32, #tpu.memory_space<smem>>
    %352 = vector.extract_strided_slice %7 {offsets = [1, 2], sizes = [14, 126], strides = [1, 1]} : vector<16x128xf32> to vector<14x126xf32>
    %353 = vector.broadcast %351 : f32 to vector<14x126xf32>
    %354 = arith.mulf %352, %353 : vector<14x126xf32>
    %355 = arith.addf %350, %354 : vector<14x126xf32>
    %c69 = arith.constant 69 : index
    %356 = memref.load %arg3[%c69] : memref<144xf32, #tpu.memory_space<smem>>
    %357 = vector.extract_strided_slice %7 {offsets = [2, 0], sizes = [14, 126], strides = [1, 1]} : vector<16x128xf32> to vector<14x126xf32>
    %358 = vector.broadcast %356 : f32 to vector<14x126xf32>
    %359 = arith.mulf %357, %358 : vector<14x126xf32>
    %360 = arith.addf %355, %359 : vector<14x126xf32>
    %c70 = arith.constant 70 : index
    %361 = memref.load %arg3[%c70] : memref<144xf32, #tpu.memory_space<smem>>
    %362 = vector.extract_strided_slice %7 {offsets = [2, 1], sizes = [14, 126], strides = [1, 1]} : vector<16x128xf32> to vector<14x126xf32>
    %363 = vector.broadcast %361 : f32 to vector<14x126xf32>
    %364 = arith.mulf %362, %363 : vector<14x126xf32>
    %365 = arith.addf %360, %364 : vector<14x126xf32>
    %c71 = arith.constant 71 : index
    %366 = memref.load %arg3[%c71] : memref<144xf32, #tpu.memory_space<smem>>
    %367 = vector.extract_strided_slice %7 {offsets = [2, 2], sizes = [14, 126], strides = [1, 1]} : vector<16x128xf32> to vector<14x126xf32>
    %368 = vector.broadcast %366 : f32 to vector<14x126xf32>
    %369 = arith.mulf %367, %368 : vector<14x126xf32>
    %370 = arith.addf %365, %369 : vector<14x126xf32>
    %c1_21 = arith.constant 1 : index
    %371 = memref.load %arg4[%c1_21] : memref<4xf32, #tpu.memory_space<smem>>
    %372 = vector.broadcast %371 : f32 to vector<14x126xf32>
    %373 = arith.addf %370, %372 : vector<14x126xf32>
    %cst_22 = arith.constant 0.000000e+00 : f32
    %374 = vector.broadcast %cst_22 : f32 to vector<14x126xf32>
    %375 = arith.maximumf %373, %374 : vector<14x126xf32>
    %c72 = arith.constant 72 : index
    %376 = memref.load %arg3[%c72] : memref<144xf32, #tpu.memory_space<smem>>
    %377 = vector.extract_strided_slice %1 {offsets = [0, 0], sizes = [14, 126], strides = [1, 1]} : vector<16x128xf32> to vector<14x126xf32>
    %378 = vector.broadcast %376 : f32 to vector<14x126xf32>
    %379 = arith.mulf %377, %378 : vector<14x126xf32>
    %c73 = arith.constant 73 : index
    %380 = memref.load %arg3[%c73] : memref<144xf32, #tpu.memory_space<smem>>
    %381 = vector.extract_strided_slice %1 {offsets = [0, 1], sizes = [14, 126], strides = [1, 1]} : vector<16x128xf32> to vector<14x126xf32>
    %382 = vector.broadcast %380 : f32 to vector<14x126xf32>
    %383 = arith.mulf %381, %382 : vector<14x126xf32>
    %384 = arith.addf %379, %383 : vector<14x126xf32>
    %c74 = arith.constant 74 : index
    %385 = memref.load %arg3[%c74] : memref<144xf32, #tpu.memory_space<smem>>
    %386 = vector.extract_strided_slice %1 {offsets = [0, 2], sizes = [14, 126], strides = [1, 1]} : vector<16x128xf32> to vector<14x126xf32>
    %387 = vector.broadcast %385 : f32 to vector<14x126xf32>
    %388 = arith.mulf %386, %387 : vector<14x126xf32>
    %389 = arith.addf %384, %388 : vector<14x126xf32>
    %c75 = arith.constant 75 : index
    %390 = memref.load %arg3[%c75] : memref<144xf32, #tpu.memory_space<smem>>
    %391 = vector.extract_strided_slice %1 {offsets = [1, 0], sizes = [14, 126], strides = [1, 1]} : vector<16x128xf32> to vector<14x126xf32>
    %392 = vector.broadcast %390 : f32 to vector<14x126xf32>
    %393 = arith.mulf %391, %392 : vector<14x126xf32>
    %394 = arith.addf %389, %393 : vector<14x126xf32>
    %c76 = arith.constant 76 : index
    %395 = memref.load %arg3[%c76] : memref<144xf32, #tpu.memory_space<smem>>
    %396 = vector.extract_strided_slice %1 {offsets = [1, 1], sizes = [14, 126], strides = [1, 1]} : vector<16x128xf32> to vector<14x126xf32>
    %397 = vector.broadcast %395 : f32 to vector<14x126xf32>
    %398 = arith.mulf %396, %397 : vector<14x126xf32>
    %399 = arith.addf %394, %398 : vector<14x126xf32>
    %c77 = arith.constant 77 : index
    %400 = memref.load %arg3[%c77] : memref<144xf32, #tpu.memory_space<smem>>
    %401 = vector.extract_strided_slice %1 {offsets = [1, 2], sizes = [14, 126], strides = [1, 1]} : vector<16x128xf32> to vector<14x126xf32>
    %402 = vector.broadcast %400 : f32 to vector<14x126xf32>
    %403 = arith.mulf %401, %402 : vector<14x126xf32>
    %404 = arith.addf %399, %403 : vector<14x126xf32>
    %c78 = arith.constant 78 : index
    %405 = memref.load %arg3[%c78] : memref<144xf32, #tpu.memory_space<smem>>
    %406 = vector.extract_strided_slice %1 {offsets = [2, 0], sizes = [14, 126], strides = [1, 1]} : vector<16x128xf32> to vector<14x126xf32>
    %407 = vector.broadcast %405 : f32 to vector<14x126xf32>
    %408 = arith.mulf %406, %407 : vector<14x126xf32>
    %409 = arith.addf %404, %408 : vector<14x126xf32>
    %c79 = arith.constant 79 : index
    %410 = memref.load %arg3[%c79] : memref<144xf32, #tpu.memory_space<smem>>
    %411 = vector.extract_strided_slice %1 {offsets = [2, 1], sizes = [14, 126], strides = [1, 1]} : vector<16x128xf32> to vector<14x126xf32>
    %412 = vector.broadcast %410 : f32 to vector<14x126xf32>
    %413 = arith.mulf %411, %412 : vector<14x126xf32>
    %414 = arith.addf %409, %413 : vector<14x126xf32>
    %c80 = arith.constant 80 : index
    %415 = memref.load %arg3[%c80] : memref<144xf32, #tpu.memory_space<smem>>
    %416 = vector.extract_strided_slice %1 {offsets = [2, 2], sizes = [14, 126], strides = [1, 1]} : vector<16x128xf32> to vector<14x126xf32>
    %417 = vector.broadcast %415 : f32 to vector<14x126xf32>
    %418 = arith.mulf %416, %417 : vector<14x126xf32>
    %419 = arith.addf %414, %418 : vector<14x126xf32>
    %c81 = arith.constant 81 : index
    %420 = memref.load %arg3[%c81] : memref<144xf32, #tpu.memory_space<smem>>
    %421 = vector.extract_strided_slice %3 {offsets = [0, 0], sizes = [14, 126], strides = [1, 1]} : vector<16x128xf32> to vector<14x126xf32>
    %422 = vector.broadcast %420 : f32 to vector<14x126xf32>
    %423 = arith.mulf %421, %422 : vector<14x126xf32>
    %424 = arith.addf %419, %423 : vector<14x126xf32>
    %c82 = arith.constant 82 : index
    %425 = memref.load %arg3[%c82] : memref<144xf32, #tpu.memory_space<smem>>
    %426 = vector.extract_strided_slice %3 {offsets = [0, 1], sizes = [14, 126], strides = [1, 1]} : vector<16x128xf32> to vector<14x126xf32>
    %427 = vector.broadcast %425 : f32 to vector<14x126xf32>
    %428 = arith.mulf %426, %427 : vector<14x126xf32>
    %429 = arith.addf %424, %428 : vector<14x126xf32>
    %c83 = arith.constant 83 : index
    %430 = memref.load %arg3[%c83] : memref<144xf32, #tpu.memory_space<smem>>
    %431 = vector.extract_strided_slice %3 {offsets = [0, 2], sizes = [14, 126], strides = [1, 1]} : vector<16x128xf32> to vector<14x126xf32>
    %432 = vector.broadcast %430 : f32 to vector<14x126xf32>
    %433 = arith.mulf %431, %432 : vector<14x126xf32>
    %434 = arith.addf %429, %433 : vector<14x126xf32>
    %c84 = arith.constant 84 : index
    %435 = memref.load %arg3[%c84] : memref<144xf32, #tpu.memory_space<smem>>
    %436 = vector.extract_strided_slice %3 {offsets = [1, 0], sizes = [14, 126], strides = [1, 1]} : vector<16x128xf32> to vector<14x126xf32>
    %437 = vector.broadcast %435 : f32 to vector<14x126xf32>
    %438 = arith.mulf %436, %437 : vector<14x126xf32>
    %439 = arith.addf %434, %438 : vector<14x126xf32>
    %c85 = arith.constant 85 : index
    %440 = memref.load %arg3[%c85] : memref<144xf32, #tpu.memory_space<smem>>
    %441 = vector.extract_strided_slice %3 {offsets = [1, 1], sizes = [14, 126], strides = [1, 1]} : vector<16x128xf32> to vector<14x126xf32>
    %442 = vector.broadcast %440 : f32 to vector<14x126xf32>
    %443 = arith.mulf %441, %442 : vector<14x126xf32>
    %444 = arith.addf %439, %443 : vector<14x126xf32>
    %c86 = arith.constant 86 : index
    %445 = memref.load %arg3[%c86] : memref<144xf32, #tpu.memory_space<smem>>
    %446 = vector.extract_strided_slice %3 {offsets = [1, 2], sizes = [14, 126], strides = [1, 1]} : vector<16x128xf32> to vector<14x126xf32>
    %447 = vector.broadcast %445 : f32 to vector<14x126xf32>
    %448 = arith.mulf %446, %447 : vector<14x126xf32>
    %449 = arith.addf %444, %448 : vector<14x126xf32>
    %c87 = arith.constant 87 : index
    %450 = memref.load %arg3[%c87] : memref<144xf32, #tpu.memory_space<smem>>
    %451 = vector.extract_strided_slice %3 {offsets = [2, 0], sizes = [14, 126], strides = [1, 1]} : vector<16x128xf32> to vector<14x126xf32>
    %452 = vector.broadcast %450 : f32 to vector<14x126xf32>
    %453 = arith.mulf %451, %452 : vector<14x126xf32>
    %454 = arith.addf %449, %453 : vector<14x126xf32>
    %c88 = arith.constant 88 : index
    %455 = memref.load %arg3[%c88] : memref<144xf32, #tpu.memory_space<smem>>
    %456 = vector.extract_strided_slice %3 {offsets = [2, 1], sizes = [14, 126], strides = [1, 1]} : vector<16x128xf32> to vector<14x126xf32>
    %457 = vector.broadcast %455 : f32 to vector<14x126xf32>
    %458 = arith.mulf %456, %457 : vector<14x126xf32>
    %459 = arith.addf %454, %458 : vector<14x126xf32>
    %c89 = arith.constant 89 : index
    %460 = memref.load %arg3[%c89] : memref<144xf32, #tpu.memory_space<smem>>
    %461 = vector.extract_strided_slice %3 {offsets = [2, 2], sizes = [14, 126], strides = [1, 1]} : vector<16x128xf32> to vector<14x126xf32>
    %462 = vector.broadcast %460 : f32 to vector<14x126xf32>
    %463 = arith.mulf %461, %462 : vector<14x126xf32>
    %464 = arith.addf %459, %463 : vector<14x126xf32>
    %c90 = arith.constant 90 : index
    %465 = memref.load %arg3[%c90] : memref<144xf32, #tpu.memory_space<smem>>
    %466 = vector.extract_strided_slice %5 {offsets = [0, 0], sizes = [14, 126], strides = [1, 1]} : vector<16x128xf32> to vector<14x126xf32>
    %467 = vector.broadcast %465 : f32 to vector<14x126xf32>
    %468 = arith.mulf %466, %467 : vector<14x126xf32>
    %469 = arith.addf %464, %468 : vector<14x126xf32>
    %c91 = arith.constant 91 : index
    %470 = memref.load %arg3[%c91] : memref<144xf32, #tpu.memory_space<smem>>
    %471 = vector.extract_strided_slice %5 {offsets = [0, 1], sizes = [14, 126], strides = [1, 1]} : vector<16x128xf32> to vector<14x126xf32>
    %472 = vector.broadcast %470 : f32 to vector<14x126xf32>
    %473 = arith.mulf %471, %472 : vector<14x126xf32>
    %474 = arith.addf %469, %473 : vector<14x126xf32>
    %c92 = arith.constant 92 : index
    %475 = memref.load %arg3[%c92] : memref<144xf32, #tpu.memory_space<smem>>
    %476 = vector.extract_strided_slice %5 {offsets = [0, 2], sizes = [14, 126], strides = [1, 1]} : vector<16x128xf32> to vector<14x126xf32>
    %477 = vector.broadcast %475 : f32 to vector<14x126xf32>
    %478 = arith.mulf %476, %477 : vector<14x126xf32>
    %479 = arith.addf %474, %478 : vector<14x126xf32>
    %c93 = arith.constant 93 : index
    %480 = memref.load %arg3[%c93] : memref<144xf32, #tpu.memory_space<smem>>
    %481 = vector.extract_strided_slice %5 {offsets = [1, 0], sizes = [14, 126], strides = [1, 1]} : vector<16x128xf32> to vector<14x126xf32>
    %482 = vector.broadcast %480 : f32 to vector<14x126xf32>
    %483 = arith.mulf %481, %482 : vector<14x126xf32>
    %484 = arith.addf %479, %483 : vector<14x126xf32>
    %c94 = arith.constant 94 : index
    %485 = memref.load %arg3[%c94] : memref<144xf32, #tpu.memory_space<smem>>
    %486 = vector.extract_strided_slice %5 {offsets = [1, 1], sizes = [14, 126], strides = [1, 1]} : vector<16x128xf32> to vector<14x126xf32>
    %487 = vector.broadcast %485 : f32 to vector<14x126xf32>
    %488 = arith.mulf %486, %487 : vector<14x126xf32>
    %489 = arith.addf %484, %488 : vector<14x126xf32>
    %c95 = arith.constant 95 : index
    %490 = memref.load %arg3[%c95] : memref<144xf32, #tpu.memory_space<smem>>
    %491 = vector.extract_strided_slice %5 {offsets = [1, 2], sizes = [14, 126], strides = [1, 1]} : vector<16x128xf32> to vector<14x126xf32>
    %492 = vector.broadcast %490 : f32 to vector<14x126xf32>
    %493 = arith.mulf %491, %492 : vector<14x126xf32>
    %494 = arith.addf %489, %493 : vector<14x126xf32>
    %c96 = arith.constant 96 : index
    %495 = memref.load %arg3[%c96] : memref<144xf32, #tpu.memory_space<smem>>
    %496 = vector.extract_strided_slice %5 {offsets = [2, 0], sizes = [14, 126], strides = [1, 1]} : vector<16x128xf32> to vector<14x126xf32>
    %497 = vector.broadcast %495 : f32 to vector<14x126xf32>
    %498 = arith.mulf %496, %497 : vector<14x126xf32>
    %499 = arith.addf %494, %498 : vector<14x126xf32>
    %c97 = arith.constant 97 : index
    %500 = memref.load %arg3[%c97] : memref<144xf32, #tpu.memory_space<smem>>
    %501 = vector.extract_strided_slice %5 {offsets = [2, 1], sizes = [14, 126], strides = [1, 1]} : vector<16x128xf32> to vector<14x126xf32>
    %502 = vector.broadcast %500 : f32 to vector<14x126xf32>
    %503 = arith.mulf %501, %502 : vector<14x126xf32>
    %504 = arith.addf %499, %503 : vector<14x126xf32>
    %c98 = arith.constant 98 : index
    %505 = memref.load %arg3[%c98] : memref<144xf32, #tpu.memory_space<smem>>
    %506 = vector.extract_strided_slice %5 {offsets = [2, 2], sizes = [14, 126], strides = [1, 1]} : vector<16x128xf32> to vector<14x126xf32>
    %507 = vector.broadcast %505 : f32 to vector<14x126xf32>
    %508 = arith.mulf %506, %507 : vector<14x126xf32>
    %509 = arith.addf %504, %508 : vector<14x126xf32>
    %c99 = arith.constant 99 : index
    %510 = memref.load %arg3[%c99] : memref<144xf32, #tpu.memory_space<smem>>
    %511 = vector.extract_strided_slice %7 {offsets = [0, 0], sizes = [14, 126], strides = [1, 1]} : vector<16x128xf32> to vector<14x126xf32>
    %512 = vector.broadcast %510 : f32 to vector<14x126xf32>
    %513 = arith.mulf %511, %512 : vector<14x126xf32>
    %514 = arith.addf %509, %513 : vector<14x126xf32>
    %c100 = arith.constant 100 : index
    %515 = memref.load %arg3[%c100] : memref<144xf32, #tpu.memory_space<smem>>
    %516 = vector.extract_strided_slice %7 {offsets = [0, 1], sizes = [14, 126], strides = [1, 1]} : vector<16x128xf32> to vector<14x126xf32>
    %517 = vector.broadcast %515 : f32 to vector<14x126xf32>
    %518 = arith.mulf %516, %517 : vector<14x126xf32>
    %519 = arith.addf %514, %518 : vector<14x126xf32>
    %c101 = arith.constant 101 : index
    %520 = memref.load %arg3[%c101] : memref<144xf32, #tpu.memory_space<smem>>
    %521 = vector.extract_strided_slice %7 {offsets = [0, 2], sizes = [14, 126], strides = [1, 1]} : vector<16x128xf32> to vector<14x126xf32>
    %522 = vector.broadcast %520 : f32 to vector<14x126xf32>
    %523 = arith.mulf %521, %522 : vector<14x126xf32>
    %524 = arith.addf %519, %523 : vector<14x126xf32>
    %c102 = arith.constant 102 : index
    %525 = memref.load %arg3[%c102] : memref<144xf32, #tpu.memory_space<smem>>
    %526 = vector.extract_strided_slice %7 {offsets = [1, 0], sizes = [14, 126], strides = [1, 1]} : vector<16x128xf32> to vector<14x126xf32>
    %527 = vector.broadcast %525 : f32 to vector<14x126xf32>
    %528 = arith.mulf %526, %527 : vector<14x126xf32>
    %529 = arith.addf %524, %528 : vector<14x126xf32>
    %c103 = arith.constant 103 : index
    %530 = memref.load %arg3[%c103] : memref<144xf32, #tpu.memory_space<smem>>
    %531 = vector.extract_strided_slice %7 {offsets = [1, 1], sizes = [14, 126], strides = [1, 1]} : vector<16x128xf32> to vector<14x126xf32>
    %532 = vector.broadcast %530 : f32 to vector<14x126xf32>
    %533 = arith.mulf %531, %532 : vector<14x126xf32>
    %534 = arith.addf %529, %533 : vector<14x126xf32>
    %c104 = arith.constant 104 : index
    %535 = memref.load %arg3[%c104] : memref<144xf32, #tpu.memory_space<smem>>
    %536 = vector.extract_strided_slice %7 {offsets = [1, 2], sizes = [14, 126], strides = [1, 1]} : vector<16x128xf32> to vector<14x126xf32>
    %537 = vector.broadcast %535 : f32 to vector<14x126xf32>
    %538 = arith.mulf %536, %537 : vector<14x126xf32>
    %539 = arith.addf %534, %538 : vector<14x126xf32>
    %c105 = arith.constant 105 : index
    %540 = memref.load %arg3[%c105] : memref<144xf32, #tpu.memory_space<smem>>
    %541 = vector.extract_strided_slice %7 {offsets = [2, 0], sizes = [14, 126], strides = [1, 1]} : vector<16x128xf32> to vector<14x126xf32>
    %542 = vector.broadcast %540 : f32 to vector<14x126xf32>
    %543 = arith.mulf %541, %542 : vector<14x126xf32>
    %544 = arith.addf %539, %543 : vector<14x126xf32>
    %c106 = arith.constant 106 : index
    %545 = memref.load %arg3[%c106] : memref<144xf32, #tpu.memory_space<smem>>
    %546 = vector.extract_strided_slice %7 {offsets = [2, 1], sizes = [14, 126], strides = [1, 1]} : vector<16x128xf32> to vector<14x126xf32>
    %547 = vector.broadcast %545 : f32 to vector<14x126xf32>
    %548 = arith.mulf %546, %547 : vector<14x126xf32>
    %549 = arith.addf %544, %548 : vector<14x126xf32>
    %c107 = arith.constant 107 : index
    %550 = memref.load %arg3[%c107] : memref<144xf32, #tpu.memory_space<smem>>
    %551 = vector.extract_strided_slice %7 {offsets = [2, 2], sizes = [14, 126], strides = [1, 1]} : vector<16x128xf32> to vector<14x126xf32>
    %552 = vector.broadcast %550 : f32 to vector<14x126xf32>
    %553 = arith.mulf %551, %552 : vector<14x126xf32>
    %554 = arith.addf %549, %553 : vector<14x126xf32>
    %c2_23 = arith.constant 2 : index
    %555 = memref.load %arg4[%c2_23] : memref<4xf32, #tpu.memory_space<smem>>
    %556 = vector.broadcast %555 : f32 to vector<14x126xf32>
    %557 = arith.addf %554, %556 : vector<14x126xf32>
    %cst_24 = arith.constant 0.000000e+00 : f32
    %558 = vector.broadcast %cst_24 : f32 to vector<14x126xf32>
    %559 = arith.maximumf %557, %558 : vector<14x126xf32>
    %c108 = arith.constant 108 : index
    %560 = memref.load %arg3[%c108] : memref<144xf32, #tpu.memory_space<smem>>
    %561 = vector.extract_strided_slice %1 {offsets = [0, 0], sizes = [14, 126], strides = [1, 1]} : vector<16x128xf32> to vector<14x126xf32>
    %562 = vector.broadcast %560 : f32 to vector<14x126xf32>
    %563 = arith.mulf %561, %562 : vector<14x126xf32>
    %c109 = arith.constant 109 : index
    %564 = memref.load %arg3[%c109] : memref<144xf32, #tpu.memory_space<smem>>
    %565 = vector.extract_strided_slice %1 {offsets = [0, 1], sizes = [14, 126], strides = [1, 1]} : vector<16x128xf32> to vector<14x126xf32>
    %566 = vector.broadcast %564 : f32 to vector<14x126xf32>
    %567 = arith.mulf %565, %566 : vector<14x126xf32>
    %568 = arith.addf %563, %567 : vector<14x126xf32>
    %c110 = arith.constant 110 : index
    %569 = memref.load %arg3[%c110] : memref<144xf32, #tpu.memory_space<smem>>
    %570 = vector.extract_strided_slice %1 {offsets = [0, 2], sizes = [14, 126], strides = [1, 1]} : vector<16x128xf32> to vector<14x126xf32>
    %571 = vector.broadcast %569 : f32 to vector<14x126xf32>
    %572 = arith.mulf %570, %571 : vector<14x126xf32>
    %573 = arith.addf %568, %572 : vector<14x126xf32>
    %c111 = arith.constant 111 : index
    %574 = memref.load %arg3[%c111] : memref<144xf32, #tpu.memory_space<smem>>
    %575 = vector.extract_strided_slice %1 {offsets = [1, 0], sizes = [14, 126], strides = [1, 1]} : vector<16x128xf32> to vector<14x126xf32>
    %576 = vector.broadcast %574 : f32 to vector<14x126xf32>
    %577 = arith.mulf %575, %576 : vector<14x126xf32>
    %578 = arith.addf %573, %577 : vector<14x126xf32>
    %c112 = arith.constant 112 : index
    %579 = memref.load %arg3[%c112] : memref<144xf32, #tpu.memory_space<smem>>
    %580 = vector.extract_strided_slice %1 {offsets = [1, 1], sizes = [14, 126], strides = [1, 1]} : vector<16x128xf32> to vector<14x126xf32>
    %581 = vector.broadcast %579 : f32 to vector<14x126xf32>
    %582 = arith.mulf %580, %581 : vector<14x126xf32>
    %583 = arith.addf %578, %582 : vector<14x126xf32>
    %c113 = arith.constant 113 : index
    %584 = memref.load %arg3[%c113] : memref<144xf32, #tpu.memory_space<smem>>
    %585 = vector.extract_strided_slice %1 {offsets = [1, 2], sizes = [14, 126], strides = [1, 1]} : vector<16x128xf32> to vector<14x126xf32>
    %586 = vector.broadcast %584 : f32 to vector<14x126xf32>
    %587 = arith.mulf %585, %586 : vector<14x126xf32>
    %588 = arith.addf %583, %587 : vector<14x126xf32>
    %c114 = arith.constant 114 : index
    %589 = memref.load %arg3[%c114] : memref<144xf32, #tpu.memory_space<smem>>
    %590 = vector.extract_strided_slice %1 {offsets = [2, 0], sizes = [14, 126], strides = [1, 1]} : vector<16x128xf32> to vector<14x126xf32>
    %591 = vector.broadcast %589 : f32 to vector<14x126xf32>
    %592 = arith.mulf %590, %591 : vector<14x126xf32>
    %593 = arith.addf %588, %592 : vector<14x126xf32>
    %c115 = arith.constant 115 : index
    %594 = memref.load %arg3[%c115] : memref<144xf32, #tpu.memory_space<smem>>
    %595 = vector.extract_strided_slice %1 {offsets = [2, 1], sizes = [14, 126], strides = [1, 1]} : vector<16x128xf32> to vector<14x126xf32>
    %596 = vector.broadcast %594 : f32 to vector<14x126xf32>
    %597 = arith.mulf %595, %596 : vector<14x126xf32>
    %598 = arith.addf %593, %597 : vector<14x126xf32>
    %c116 = arith.constant 116 : index
    %599 = memref.load %arg3[%c116] : memref<144xf32, #tpu.memory_space<smem>>
    %600 = vector.extract_strided_slice %1 {offsets = [2, 2], sizes = [14, 126], strides = [1, 1]} : vector<16x128xf32> to vector<14x126xf32>
    %601 = vector.broadcast %599 : f32 to vector<14x126xf32>
    %602 = arith.mulf %600, %601 : vector<14x126xf32>
    %603 = arith.addf %598, %602 : vector<14x126xf32>
    %c117 = arith.constant 117 : index
    %604 = memref.load %arg3[%c117] : memref<144xf32, #tpu.memory_space<smem>>
    %605 = vector.extract_strided_slice %3 {offsets = [0, 0], sizes = [14, 126], strides = [1, 1]} : vector<16x128xf32> to vector<14x126xf32>
    %606 = vector.broadcast %604 : f32 to vector<14x126xf32>
    %607 = arith.mulf %605, %606 : vector<14x126xf32>
    %608 = arith.addf %603, %607 : vector<14x126xf32>
    %c118 = arith.constant 118 : index
    %609 = memref.load %arg3[%c118] : memref<144xf32, #tpu.memory_space<smem>>
    %610 = vector.extract_strided_slice %3 {offsets = [0, 1], sizes = [14, 126], strides = [1, 1]} : vector<16x128xf32> to vector<14x126xf32>
    %611 = vector.broadcast %609 : f32 to vector<14x126xf32>
    %612 = arith.mulf %610, %611 : vector<14x126xf32>
    %613 = arith.addf %608, %612 : vector<14x126xf32>
    %c119 = arith.constant 119 : index
    %614 = memref.load %arg3[%c119] : memref<144xf32, #tpu.memory_space<smem>>
    %615 = vector.extract_strided_slice %3 {offsets = [0, 2], sizes = [14, 126], strides = [1, 1]} : vector<16x128xf32> to vector<14x126xf32>
    %616 = vector.broadcast %614 : f32 to vector<14x126xf32>
    %617 = arith.mulf %615, %616 : vector<14x126xf32>
    %618 = arith.addf %613, %617 : vector<14x126xf32>
    %c120 = arith.constant 120 : index
    %619 = memref.load %arg3[%c120] : memref<144xf32, #tpu.memory_space<smem>>
    %620 = vector.extract_strided_slice %3 {offsets = [1, 0], sizes = [14, 126], strides = [1, 1]} : vector<16x128xf32> to vector<14x126xf32>
    %621 = vector.broadcast %619 : f32 to vector<14x126xf32>
    %622 = arith.mulf %620, %621 : vector<14x126xf32>
    %623 = arith.addf %618, %622 : vector<14x126xf32>
    %c121 = arith.constant 121 : index
    %624 = memref.load %arg3[%c121] : memref<144xf32, #tpu.memory_space<smem>>
    %625 = vector.extract_strided_slice %3 {offsets = [1, 1], sizes = [14, 126], strides = [1, 1]} : vector<16x128xf32> to vector<14x126xf32>
    %626 = vector.broadcast %624 : f32 to vector<14x126xf32>
    %627 = arith.mulf %625, %626 : vector<14x126xf32>
    %628 = arith.addf %623, %627 : vector<14x126xf32>
    %c122 = arith.constant 122 : index
    %629 = memref.load %arg3[%c122] : memref<144xf32, #tpu.memory_space<smem>>
    %630 = vector.extract_strided_slice %3 {offsets = [1, 2], sizes = [14, 126], strides = [1, 1]} : vector<16x128xf32> to vector<14x126xf32>
    %631 = vector.broadcast %629 : f32 to vector<14x126xf32>
    %632 = arith.mulf %630, %631 : vector<14x126xf32>
    %633 = arith.addf %628, %632 : vector<14x126xf32>
    %c123 = arith.constant 123 : index
    %634 = memref.load %arg3[%c123] : memref<144xf32, #tpu.memory_space<smem>>
    %635 = vector.extract_strided_slice %3 {offsets = [2, 0], sizes = [14, 126], strides = [1, 1]} : vector<16x128xf32> to vector<14x126xf32>
    %636 = vector.broadcast %634 : f32 to vector<14x126xf32>
    %637 = arith.mulf %635, %636 : vector<14x126xf32>
    %638 = arith.addf %633, %637 : vector<14x126xf32>
    %c124 = arith.constant 124 : index
    %639 = memref.load %arg3[%c124] : memref<144xf32, #tpu.memory_space<smem>>
    %640 = vector.extract_strided_slice %3 {offsets = [2, 1], sizes = [14, 126], strides = [1, 1]} : vector<16x128xf32> to vector<14x126xf32>
    %641 = vector.broadcast %639 : f32 to vector<14x126xf32>
    %642 = arith.mulf %640, %641 : vector<14x126xf32>
    %643 = arith.addf %638, %642 : vector<14x126xf32>
    %c125 = arith.constant 125 : index
    %644 = memref.load %arg3[%c125] : memref<144xf32, #tpu.memory_space<smem>>
    %645 = vector.extract_strided_slice %3 {offsets = [2, 2], sizes = [14, 126], strides = [1, 1]} : vector<16x128xf32> to vector<14x126xf32>
    %646 = vector.broadcast %644 : f32 to vector<14x126xf32>
    %647 = arith.mulf %645, %646 : vector<14x126xf32>
    %648 = arith.addf %643, %647 : vector<14x126xf32>
    %c126 = arith.constant 126 : index
    %649 = memref.load %arg3[%c126] : memref<144xf32, #tpu.memory_space<smem>>
    %650 = vector.extract_strided_slice %5 {offsets = [0, 0], sizes = [14, 126], strides = [1, 1]} : vector<16x128xf32> to vector<14x126xf32>
    %651 = vector.broadcast %649 : f32 to vector<14x126xf32>
    %652 = arith.mulf %650, %651 : vector<14x126xf32>
    %653 = arith.addf %648, %652 : vector<14x126xf32>
    %c127 = arith.constant 127 : index
    %654 = memref.load %arg3[%c127] : memref<144xf32, #tpu.memory_space<smem>>
    %655 = vector.extract_strided_slice %5 {offsets = [0, 1], sizes = [14, 126], strides = [1, 1]} : vector<16x128xf32> to vector<14x126xf32>
    %656 = vector.broadcast %654 : f32 to vector<14x126xf32>
    %657 = arith.mulf %655, %656 : vector<14x126xf32>
    %658 = arith.addf %653, %657 : vector<14x126xf32>
    %c128 = arith.constant 128 : index
    %659 = memref.load %arg3[%c128] : memref<144xf32, #tpu.memory_space<smem>>
    %660 = vector.extract_strided_slice %5 {offsets = [0, 2], sizes = [14, 126], strides = [1, 1]} : vector<16x128xf32> to vector<14x126xf32>
    %661 = vector.broadcast %659 : f32 to vector<14x126xf32>
    %662 = arith.mulf %660, %661 : vector<14x126xf32>
    %663 = arith.addf %658, %662 : vector<14x126xf32>
    %c129 = arith.constant 129 : index
    %664 = memref.load %arg3[%c129] : memref<144xf32, #tpu.memory_space<smem>>
    %665 = vector.extract_strided_slice %5 {offsets = [1, 0], sizes = [14, 126], strides = [1, 1]} : vector<16x128xf32> to vector<14x126xf32>
    %666 = vector.broadcast %664 : f32 to vector<14x126xf32>
    %667 = arith.mulf %665, %666 : vector<14x126xf32>
    %668 = arith.addf %663, %667 : vector<14x126xf32>
    %c130 = arith.constant 130 : index
    %669 = memref.load %arg3[%c130] : memref<144xf32, #tpu.memory_space<smem>>
    %670 = vector.extract_strided_slice %5 {offsets = [1, 1], sizes = [14, 126], strides = [1, 1]} : vector<16x128xf32> to vector<14x126xf32>
    %671 = vector.broadcast %669 : f32 to vector<14x126xf32>
    %672 = arith.mulf %670, %671 : vector<14x126xf32>
    %673 = arith.addf %668, %672 : vector<14x126xf32>
    %c131 = arith.constant 131 : index
    %674 = memref.load %arg3[%c131] : memref<144xf32, #tpu.memory_space<smem>>
    %675 = vector.extract_strided_slice %5 {offsets = [1, 2], sizes = [14, 126], strides = [1, 1]} : vector<16x128xf32> to vector<14x126xf32>
    %676 = vector.broadcast %674 : f32 to vector<14x126xf32>
    %677 = arith.mulf %675, %676 : vector<14x126xf32>
    %678 = arith.addf %673, %677 : vector<14x126xf32>
    %c132 = arith.constant 132 : index
    %679 = memref.load %arg3[%c132] : memref<144xf32, #tpu.memory_space<smem>>
    %680 = vector.extract_strided_slice %5 {offsets = [2, 0], sizes = [14, 126], strides = [1, 1]} : vector<16x128xf32> to vector<14x126xf32>
    %681 = vector.broadcast %679 : f32 to vector<14x126xf32>
    %682 = arith.mulf %680, %681 : vector<14x126xf32>
    %683 = arith.addf %678, %682 : vector<14x126xf32>
    %c133 = arith.constant 133 : index
    %684 = memref.load %arg3[%c133] : memref<144xf32, #tpu.memory_space<smem>>
    %685 = vector.extract_strided_slice %5 {offsets = [2, 1], sizes = [14, 126], strides = [1, 1]} : vector<16x128xf32> to vector<14x126xf32>
    %686 = vector.broadcast %684 : f32 to vector<14x126xf32>
    %687 = arith.mulf %685, %686 : vector<14x126xf32>
    %688 = arith.addf %683, %687 : vector<14x126xf32>
    %c134 = arith.constant 134 : index
    %689 = memref.load %arg3[%c134] : memref<144xf32, #tpu.memory_space<smem>>
    %690 = vector.extract_strided_slice %5 {offsets = [2, 2], sizes = [14, 126], strides = [1, 1]} : vector<16x128xf32> to vector<14x126xf32>
    %691 = vector.broadcast %689 : f32 to vector<14x126xf32>
    %692 = arith.mulf %690, %691 : vector<14x126xf32>
    %693 = arith.addf %688, %692 : vector<14x126xf32>
    %c135 = arith.constant 135 : index
    %694 = memref.load %arg3[%c135] : memref<144xf32, #tpu.memory_space<smem>>
    %695 = vector.extract_strided_slice %7 {offsets = [0, 0], sizes = [14, 126], strides = [1, 1]} : vector<16x128xf32> to vector<14x126xf32>
    %696 = vector.broadcast %694 : f32 to vector<14x126xf32>
    %697 = arith.mulf %695, %696 : vector<14x126xf32>
    %698 = arith.addf %693, %697 : vector<14x126xf32>
    %c136 = arith.constant 136 : index
    %699 = memref.load %arg3[%c136] : memref<144xf32, #tpu.memory_space<smem>>
    %700 = vector.extract_strided_slice %7 {offsets = [0, 1], sizes = [14, 126], strides = [1, 1]} : vector<16x128xf32> to vector<14x126xf32>
    %701 = vector.broadcast %699 : f32 to vector<14x126xf32>
    %702 = arith.mulf %700, %701 : vector<14x126xf32>
    %703 = arith.addf %698, %702 : vector<14x126xf32>
    %c137 = arith.constant 137 : index
    %704 = memref.load %arg3[%c137] : memref<144xf32, #tpu.memory_space<smem>>
    %705 = vector.extract_strided_slice %7 {offsets = [0, 2], sizes = [14, 126], strides = [1, 1]} : vector<16x128xf32> to vector<14x126xf32>
    %706 = vector.broadcast %704 : f32 to vector<14x126xf32>
    %707 = arith.mulf %705, %706 : vector<14x126xf32>
    %708 = arith.addf %703, %707 : vector<14x126xf32>
    %c138 = arith.constant 138 : index
    %709 = memref.load %arg3[%c138] : memref<144xf32, #tpu.memory_space<smem>>
    %710 = vector.extract_strided_slice %7 {offsets = [1, 0], sizes = [14, 126], strides = [1, 1]} : vector<16x128xf32> to vector<14x126xf32>
    %711 = vector.broadcast %709 : f32 to vector<14x126xf32>
    %712 = arith.mulf %710, %711 : vector<14x126xf32>
    %713 = arith.addf %708, %712 : vector<14x126xf32>
    %c139 = arith.constant 139 : index
    %714 = memref.load %arg3[%c139] : memref<144xf32, #tpu.memory_space<smem>>
    %715 = vector.extract_strided_slice %7 {offsets = [1, 1], sizes = [14, 126], strides = [1, 1]} : vector<16x128xf32> to vector<14x126xf32>
    %716 = vector.broadcast %714 : f32 to vector<14x126xf32>
    %717 = arith.mulf %715, %716 : vector<14x126xf32>
    %718 = arith.addf %713, %717 : vector<14x126xf32>
    %c140 = arith.constant 140 : index
    %719 = memref.load %arg3[%c140] : memref<144xf32, #tpu.memory_space<smem>>
    %720 = vector.extract_strided_slice %7 {offsets = [1, 2], sizes = [14, 126], strides = [1, 1]} : vector<16x128xf32> to vector<14x126xf32>
    %721 = vector.broadcast %719 : f32 to vector<14x126xf32>
    %722 = arith.mulf %720, %721 : vector<14x126xf32>
    %723 = arith.addf %718, %722 : vector<14x126xf32>
    %c141 = arith.constant 141 : index
    %724 = memref.load %arg3[%c141] : memref<144xf32, #tpu.memory_space<smem>>
    %725 = vector.extract_strided_slice %7 {offsets = [2, 0], sizes = [14, 126], strides = [1, 1]} : vector<16x128xf32> to vector<14x126xf32>
    %726 = vector.broadcast %724 : f32 to vector<14x126xf32>
    %727 = arith.mulf %725, %726 : vector<14x126xf32>
    %728 = arith.addf %723, %727 : vector<14x126xf32>
    %c142 = arith.constant 142 : index
    %729 = memref.load %arg3[%c142] : memref<144xf32, #tpu.memory_space<smem>>
    %730 = vector.extract_strided_slice %7 {offsets = [2, 1], sizes = [14, 126], strides = [1, 1]} : vector<16x128xf32> to vector<14x126xf32>
    %731 = vector.broadcast %729 : f32 to vector<14x126xf32>
    %732 = arith.mulf %730, %731 : vector<14x126xf32>
    %733 = arith.addf %728, %732 : vector<14x126xf32>
    %c143 = arith.constant 143 : index
    %734 = memref.load %arg3[%c143] : memref<144xf32, #tpu.memory_space<smem>>
    %735 = vector.extract_strided_slice %7 {offsets = [2, 2], sizes = [14, 126], strides = [1, 1]} : vector<16x128xf32> to vector<14x126xf32>
    %736 = vector.broadcast %734 : f32 to vector<14x126xf32>
    %737 = arith.mulf %735, %736 : vector<14x126xf32>
    %738 = arith.addf %733, %737 : vector<14x126xf32>
    %c3_25 = arith.constant 3 : index
    %739 = memref.load %arg4[%c3_25] : memref<4xf32, #tpu.memory_space<smem>>
    %740 = vector.broadcast %739 : f32 to vector<14x126xf32>
    %741 = arith.addf %738, %740 : vector<14x126xf32>
    %cst_26 = arith.constant 0.000000e+00 : f32
    %742 = vector.broadcast %cst_26 : f32 to vector<14x126xf32>
    %743 = arith.maximumf %741, %742 : vector<14x126xf32>
    %744 = vector.extract_strided_slice %191 {offsets = [0, 0], sizes = [13, 125], strides = [1, 1]} : vector<14x126xf32> to vector<13x125xf32>
    %745 = vector.extract_strided_slice %191 {offsets = [0, 1], sizes = [13, 125], strides = [1, 1]} : vector<14x126xf32> to vector<13x125xf32>
    %746 = arith.maximumf %744, %745 : vector<13x125xf32>
    %747 = vector.extract_strided_slice %191 {offsets = [1, 0], sizes = [13, 125], strides = [1, 1]} : vector<14x126xf32> to vector<13x125xf32>
    %748 = arith.maximumf %746, %747 : vector<13x125xf32>
    %749 = vector.extract_strided_slice %191 {offsets = [1, 1], sizes = [13, 125], strides = [1, 1]} : vector<14x126xf32> to vector<13x125xf32>
    %750 = arith.maximumf %748, %749 : vector<13x125xf32>
    %751 = vector.extract_strided_slice %375 {offsets = [0, 0], sizes = [13, 125], strides = [1, 1]} : vector<14x126xf32> to vector<13x125xf32>
    %752 = vector.extract_strided_slice %375 {offsets = [0, 1], sizes = [13, 125], strides = [1, 1]} : vector<14x126xf32> to vector<13x125xf32>
    %753 = arith.maximumf %751, %752 : vector<13x125xf32>
    %754 = vector.extract_strided_slice %375 {offsets = [1, 0], sizes = [13, 125], strides = [1, 1]} : vector<14x126xf32> to vector<13x125xf32>
    %755 = arith.maximumf %753, %754 : vector<13x125xf32>
    %756 = vector.extract_strided_slice %375 {offsets = [1, 1], sizes = [13, 125], strides = [1, 1]} : vector<14x126xf32> to vector<13x125xf32>
    %757 = arith.maximumf %755, %756 : vector<13x125xf32>
    %758 = vector.extract_strided_slice %559 {offsets = [0, 0], sizes = [13, 125], strides = [1, 1]} : vector<14x126xf32> to vector<13x125xf32>
    %759 = vector.extract_strided_slice %559 {offsets = [0, 1], sizes = [13, 125], strides = [1, 1]} : vector<14x126xf32> to vector<13x125xf32>
    %760 = arith.maximumf %758, %759 : vector<13x125xf32>
    %761 = vector.extract_strided_slice %559 {offsets = [1, 0], sizes = [13, 125], strides = [1, 1]} : vector<14x126xf32> to vector<13x125xf32>
    %762 = arith.maximumf %760, %761 : vector<13x125xf32>
    %763 = vector.extract_strided_slice %559 {offsets = [1, 1], sizes = [13, 125], strides = [1, 1]} : vector<14x126xf32> to vector<13x125xf32>
    %764 = arith.maximumf %762, %763 : vector<13x125xf32>
    %765 = vector.extract_strided_slice %743 {offsets = [0, 0], sizes = [13, 125], strides = [1, 1]} : vector<14x126xf32> to vector<13x125xf32>
    %766 = vector.extract_strided_slice %743 {offsets = [0, 1], sizes = [13, 125], strides = [1, 1]} : vector<14x126xf32> to vector<13x125xf32>
    %767 = arith.maximumf %765, %766 : vector<13x125xf32>
    %768 = vector.extract_strided_slice %743 {offsets = [1, 0], sizes = [13, 125], strides = [1, 1]} : vector<14x126xf32> to vector<13x125xf32>
    %769 = arith.maximumf %767, %768 : vector<13x125xf32>
    %770 = vector.extract_strided_slice %743 {offsets = [1, 1], sizes = [13, 125], strides = [1, 1]} : vector<14x126xf32> to vector<13x125xf32>
    %771 = arith.maximumf %769, %770 : vector<13x125xf32>
    %c0_27 = arith.constant 0 : index
    %772 = memref.load %arg5[%c0_27] : memref<144xf32, #tpu.memory_space<smem>>
    %773 = vector.extract_strided_slice %750 {offsets = [0, 0], sizes = [9, 121], strides = [1, 1]} : vector<13x125xf32> to vector<9x121xf32>
    %774 = vector.broadcast %772 : f32 to vector<9x121xf32>
    %775 = arith.mulf %773, %774 : vector<9x121xf32>
    %c1_28 = arith.constant 1 : index
    %776 = memref.load %arg5[%c1_28] : memref<144xf32, #tpu.memory_space<smem>>
    %777 = vector.extract_strided_slice %750 {offsets = [0, 2], sizes = [9, 121], strides = [1, 1]} : vector<13x125xf32> to vector<9x121xf32>
    %778 = vector.broadcast %776 : f32 to vector<9x121xf32>
    %779 = arith.mulf %777, %778 : vector<9x121xf32>
    %780 = arith.addf %775, %779 : vector<9x121xf32>
    %c2_29 = arith.constant 2 : index
    %781 = memref.load %arg5[%c2_29] : memref<144xf32, #tpu.memory_space<smem>>
    %782 = vector.extract_strided_slice %750 {offsets = [0, 4], sizes = [9, 121], strides = [1, 1]} : vector<13x125xf32> to vector<9x121xf32>
    %783 = vector.broadcast %781 : f32 to vector<9x121xf32>
    %784 = arith.mulf %782, %783 : vector<9x121xf32>
    %785 = arith.addf %780, %784 : vector<9x121xf32>
    %c3_30 = arith.constant 3 : index
    %786 = memref.load %arg5[%c3_30] : memref<144xf32, #tpu.memory_space<smem>>
    %787 = vector.extract_strided_slice %750 {offsets = [2, 0], sizes = [9, 121], strides = [1, 1]} : vector<13x125xf32> to vector<9x121xf32>
    %788 = vector.broadcast %786 : f32 to vector<9x121xf32>
    %789 = arith.mulf %787, %788 : vector<9x121xf32>
    %790 = arith.addf %785, %789 : vector<9x121xf32>
    %c4_31 = arith.constant 4 : index
    %791 = memref.load %arg5[%c4_31] : memref<144xf32, #tpu.memory_space<smem>>
    %792 = vector.extract_strided_slice %750 {offsets = [2, 2], sizes = [9, 121], strides = [1, 1]} : vector<13x125xf32> to vector<9x121xf32>
    %793 = vector.broadcast %791 : f32 to vector<9x121xf32>
    %794 = arith.mulf %792, %793 : vector<9x121xf32>
    %795 = arith.addf %790, %794 : vector<9x121xf32>
    %c5_32 = arith.constant 5 : index
    %796 = memref.load %arg5[%c5_32] : memref<144xf32, #tpu.memory_space<smem>>
    %797 = vector.extract_strided_slice %750 {offsets = [2, 4], sizes = [9, 121], strides = [1, 1]} : vector<13x125xf32> to vector<9x121xf32>
    %798 = vector.broadcast %796 : f32 to vector<9x121xf32>
    %799 = arith.mulf %797, %798 : vector<9x121xf32>
    %800 = arith.addf %795, %799 : vector<9x121xf32>
    %c6_33 = arith.constant 6 : index
    %801 = memref.load %arg5[%c6_33] : memref<144xf32, #tpu.memory_space<smem>>
    %802 = vector.extract_strided_slice %750 {offsets = [4, 0], sizes = [9, 121], strides = [1, 1]} : vector<13x125xf32> to vector<9x121xf32>
    %803 = vector.broadcast %801 : f32 to vector<9x121xf32>
    %804 = arith.mulf %802, %803 : vector<9x121xf32>
    %805 = arith.addf %800, %804 : vector<9x121xf32>
    %c7_34 = arith.constant 7 : index
    %806 = memref.load %arg5[%c7_34] : memref<144xf32, #tpu.memory_space<smem>>
    %807 = vector.extract_strided_slice %750 {offsets = [4, 2], sizes = [9, 121], strides = [1, 1]} : vector<13x125xf32> to vector<9x121xf32>
    %808 = vector.broadcast %806 : f32 to vector<9x121xf32>
    %809 = arith.mulf %807, %808 : vector<9x121xf32>
    %810 = arith.addf %805, %809 : vector<9x121xf32>
    %c8_35 = arith.constant 8 : index
    %811 = memref.load %arg5[%c8_35] : memref<144xf32, #tpu.memory_space<smem>>
    %812 = vector.extract_strided_slice %750 {offsets = [4, 4], sizes = [9, 121], strides = [1, 1]} : vector<13x125xf32> to vector<9x121xf32>
    %813 = vector.broadcast %811 : f32 to vector<9x121xf32>
    %814 = arith.mulf %812, %813 : vector<9x121xf32>
    %815 = arith.addf %810, %814 : vector<9x121xf32>
    %c9_36 = arith.constant 9 : index
    %816 = memref.load %arg5[%c9_36] : memref<144xf32, #tpu.memory_space<smem>>
    %817 = vector.extract_strided_slice %757 {offsets = [0, 0], sizes = [9, 121], strides = [1, 1]} : vector<13x125xf32> to vector<9x121xf32>
    %818 = vector.broadcast %816 : f32 to vector<9x121xf32>
    %819 = arith.mulf %817, %818 : vector<9x121xf32>
    %820 = arith.addf %815, %819 : vector<9x121xf32>
    %c10_37 = arith.constant 10 : index
    %821 = memref.load %arg5[%c10_37] : memref<144xf32, #tpu.memory_space<smem>>
    %822 = vector.extract_strided_slice %757 {offsets = [0, 2], sizes = [9, 121], strides = [1, 1]} : vector<13x125xf32> to vector<9x121xf32>
    %823 = vector.broadcast %821 : f32 to vector<9x121xf32>
    %824 = arith.mulf %822, %823 : vector<9x121xf32>
    %825 = arith.addf %820, %824 : vector<9x121xf32>
    %c11_38 = arith.constant 11 : index
    %826 = memref.load %arg5[%c11_38] : memref<144xf32, #tpu.memory_space<smem>>
    %827 = vector.extract_strided_slice %757 {offsets = [0, 4], sizes = [9, 121], strides = [1, 1]} : vector<13x125xf32> to vector<9x121xf32>
    %828 = vector.broadcast %826 : f32 to vector<9x121xf32>
    %829 = arith.mulf %827, %828 : vector<9x121xf32>
    %830 = arith.addf %825, %829 : vector<9x121xf32>
    %c12_39 = arith.constant 12 : index
    %831 = memref.load %arg5[%c12_39] : memref<144xf32, #tpu.memory_space<smem>>
    %832 = vector.extract_strided_slice %757 {offsets = [2, 0], sizes = [9, 121], strides = [1, 1]} : vector<13x125xf32> to vector<9x121xf32>
    %833 = vector.broadcast %831 : f32 to vector<9x121xf32>
    %834 = arith.mulf %832, %833 : vector<9x121xf32>
    %835 = arith.addf %830, %834 : vector<9x121xf32>
    %c13_40 = arith.constant 13 : index
    %836 = memref.load %arg5[%c13_40] : memref<144xf32, #tpu.memory_space<smem>>
    %837 = vector.extract_strided_slice %757 {offsets = [2, 2], sizes = [9, 121], strides = [1, 1]} : vector<13x125xf32> to vector<9x121xf32>
    %838 = vector.broadcast %836 : f32 to vector<9x121xf32>
    %839 = arith.mulf %837, %838 : vector<9x121xf32>
    %840 = arith.addf %835, %839 : vector<9x121xf32>
    %c14_41 = arith.constant 14 : index
    %841 = memref.load %arg5[%c14_41] : memref<144xf32, #tpu.memory_space<smem>>
    %842 = vector.extract_strided_slice %757 {offsets = [2, 4], sizes = [9, 121], strides = [1, 1]} : vector<13x125xf32> to vector<9x121xf32>
    %843 = vector.broadcast %841 : f32 to vector<9x121xf32>
    %844 = arith.mulf %842, %843 : vector<9x121xf32>
    %845 = arith.addf %840, %844 : vector<9x121xf32>
    %c15_42 = arith.constant 15 : index
    %846 = memref.load %arg5[%c15_42] : memref<144xf32, #tpu.memory_space<smem>>
    %847 = vector.extract_strided_slice %757 {offsets = [4, 0], sizes = [9, 121], strides = [1, 1]} : vector<13x125xf32> to vector<9x121xf32>
    %848 = vector.broadcast %846 : f32 to vector<9x121xf32>
    %849 = arith.mulf %847, %848 : vector<9x121xf32>
    %850 = arith.addf %845, %849 : vector<9x121xf32>
    %c16_43 = arith.constant 16 : index
    %851 = memref.load %arg5[%c16_43] : memref<144xf32, #tpu.memory_space<smem>>
    %852 = vector.extract_strided_slice %757 {offsets = [4, 2], sizes = [9, 121], strides = [1, 1]} : vector<13x125xf32> to vector<9x121xf32>
    %853 = vector.broadcast %851 : f32 to vector<9x121xf32>
    %854 = arith.mulf %852, %853 : vector<9x121xf32>
    %855 = arith.addf %850, %854 : vector<9x121xf32>
    %c17_44 = arith.constant 17 : index
    %856 = memref.load %arg5[%c17_44] : memref<144xf32, #tpu.memory_space<smem>>
    %857 = vector.extract_strided_slice %757 {offsets = [4, 4], sizes = [9, 121], strides = [1, 1]} : vector<13x125xf32> to vector<9x121xf32>
    %858 = vector.broadcast %856 : f32 to vector<9x121xf32>
    %859 = arith.mulf %857, %858 : vector<9x121xf32>
    %860 = arith.addf %855, %859 : vector<9x121xf32>
    %c18_45 = arith.constant 18 : index
    %861 = memref.load %arg5[%c18_45] : memref<144xf32, #tpu.memory_space<smem>>
    %862 = vector.extract_strided_slice %764 {offsets = [0, 0], sizes = [9, 121], strides = [1, 1]} : vector<13x125xf32> to vector<9x121xf32>
    %863 = vector.broadcast %861 : f32 to vector<9x121xf32>
    %864 = arith.mulf %862, %863 : vector<9x121xf32>
    %865 = arith.addf %860, %864 : vector<9x121xf32>
    %c19_46 = arith.constant 19 : index
    %866 = memref.load %arg5[%c19_46] : memref<144xf32, #tpu.memory_space<smem>>
    %867 = vector.extract_strided_slice %764 {offsets = [0, 2], sizes = [9, 121], strides = [1, 1]} : vector<13x125xf32> to vector<9x121xf32>
    %868 = vector.broadcast %866 : f32 to vector<9x121xf32>
    %869 = arith.mulf %867, %868 : vector<9x121xf32>
    %870 = arith.addf %865, %869 : vector<9x121xf32>
    %c20_47 = arith.constant 20 : index
    %871 = memref.load %arg5[%c20_47] : memref<144xf32, #tpu.memory_space<smem>>
    %872 = vector.extract_strided_slice %764 {offsets = [0, 4], sizes = [9, 121], strides = [1, 1]} : vector<13x125xf32> to vector<9x121xf32>
    %873 = vector.broadcast %871 : f32 to vector<9x121xf32>
    %874 = arith.mulf %872, %873 : vector<9x121xf32>
    %875 = arith.addf %870, %874 : vector<9x121xf32>
    %c21_48 = arith.constant 21 : index
    %876 = memref.load %arg5[%c21_48] : memref<144xf32, #tpu.memory_space<smem>>
    %877 = vector.extract_strided_slice %764 {offsets = [2, 0], sizes = [9, 121], strides = [1, 1]} : vector<13x125xf32> to vector<9x121xf32>
    %878 = vector.broadcast %876 : f32 to vector<9x121xf32>
    %879 = arith.mulf %877, %878 : vector<9x121xf32>
    %880 = arith.addf %875, %879 : vector<9x121xf32>
    %c22_49 = arith.constant 22 : index
    %881 = memref.load %arg5[%c22_49] : memref<144xf32, #tpu.memory_space<smem>>
    %882 = vector.extract_strided_slice %764 {offsets = [2, 2], sizes = [9, 121], strides = [1, 1]} : vector<13x125xf32> to vector<9x121xf32>
    %883 = vector.broadcast %881 : f32 to vector<9x121xf32>
    %884 = arith.mulf %882, %883 : vector<9x121xf32>
    %885 = arith.addf %880, %884 : vector<9x121xf32>
    %c23_50 = arith.constant 23 : index
    %886 = memref.load %arg5[%c23_50] : memref<144xf32, #tpu.memory_space<smem>>
    %887 = vector.extract_strided_slice %764 {offsets = [2, 4], sizes = [9, 121], strides = [1, 1]} : vector<13x125xf32> to vector<9x121xf32>
    %888 = vector.broadcast %886 : f32 to vector<9x121xf32>
    %889 = arith.mulf %887, %888 : vector<9x121xf32>
    %890 = arith.addf %885, %889 : vector<9x121xf32>
    %c24_51 = arith.constant 24 : index
    %891 = memref.load %arg5[%c24_51] : memref<144xf32, #tpu.memory_space<smem>>
    %892 = vector.extract_strided_slice %764 {offsets = [4, 0], sizes = [9, 121], strides = [1, 1]} : vector<13x125xf32> to vector<9x121xf32>
    %893 = vector.broadcast %891 : f32 to vector<9x121xf32>
    %894 = arith.mulf %892, %893 : vector<9x121xf32>
    %895 = arith.addf %890, %894 : vector<9x121xf32>
    %c25_52 = arith.constant 25 : index
    %896 = memref.load %arg5[%c25_52] : memref<144xf32, #tpu.memory_space<smem>>
    %897 = vector.extract_strided_slice %764 {offsets = [4, 2], sizes = [9, 121], strides = [1, 1]} : vector<13x125xf32> to vector<9x121xf32>
    %898 = vector.broadcast %896 : f32 to vector<9x121xf32>
    %899 = arith.mulf %897, %898 : vector<9x121xf32>
    %900 = arith.addf %895, %899 : vector<9x121xf32>
    %c26_53 = arith.constant 26 : index
    %901 = memref.load %arg5[%c26_53] : memref<144xf32, #tpu.memory_space<smem>>
    %902 = vector.extract_strided_slice %764 {offsets = [4, 4], sizes = [9, 121], strides = [1, 1]} : vector<13x125xf32> to vector<9x121xf32>
    %903 = vector.broadcast %901 : f32 to vector<9x121xf32>
    %904 = arith.mulf %902, %903 : vector<9x121xf32>
    %905 = arith.addf %900, %904 : vector<9x121xf32>
    %c27_54 = arith.constant 27 : index
    %906 = memref.load %arg5[%c27_54] : memref<144xf32, #tpu.memory_space<smem>>
    %907 = vector.extract_strided_slice %771 {offsets = [0, 0], sizes = [9, 121], strides = [1, 1]} : vector<13x125xf32> to vector<9x121xf32>
    %908 = vector.broadcast %906 : f32 to vector<9x121xf32>
    %909 = arith.mulf %907, %908 : vector<9x121xf32>
    %910 = arith.addf %905, %909 : vector<9x121xf32>
    %c28_55 = arith.constant 28 : index
    %911 = memref.load %arg5[%c28_55] : memref<144xf32, #tpu.memory_space<smem>>
    %912 = vector.extract_strided_slice %771 {offsets = [0, 2], sizes = [9, 121], strides = [1, 1]} : vector<13x125xf32> to vector<9x121xf32>
    %913 = vector.broadcast %911 : f32 to vector<9x121xf32>
    %914 = arith.mulf %912, %913 : vector<9x121xf32>
    %915 = arith.addf %910, %914 : vector<9x121xf32>
    %c29_56 = arith.constant 29 : index
    %916 = memref.load %arg5[%c29_56] : memref<144xf32, #tpu.memory_space<smem>>
    %917 = vector.extract_strided_slice %771 {offsets = [0, 4], sizes = [9, 121], strides = [1, 1]} : vector<13x125xf32> to vector<9x121xf32>
    %918 = vector.broadcast %916 : f32 to vector<9x121xf32>
    %919 = arith.mulf %917, %918 : vector<9x121xf32>
    %920 = arith.addf %915, %919 : vector<9x121xf32>
    %c30_57 = arith.constant 30 : index
    %921 = memref.load %arg5[%c30_57] : memref<144xf32, #tpu.memory_space<smem>>
    %922 = vector.extract_strided_slice %771 {offsets = [2, 0], sizes = [9, 121], strides = [1, 1]} : vector<13x125xf32> to vector<9x121xf32>
    %923 = vector.broadcast %921 : f32 to vector<9x121xf32>
    %924 = arith.mulf %922, %923 : vector<9x121xf32>
    %925 = arith.addf %920, %924 : vector<9x121xf32>
    %c31_58 = arith.constant 31 : index
    %926 = memref.load %arg5[%c31_58] : memref<144xf32, #tpu.memory_space<smem>>
    %927 = vector.extract_strided_slice %771 {offsets = [2, 2], sizes = [9, 121], strides = [1, 1]} : vector<13x125xf32> to vector<9x121xf32>
    %928 = vector.broadcast %926 : f32 to vector<9x121xf32>
    %929 = arith.mulf %927, %928 : vector<9x121xf32>
    %930 = arith.addf %925, %929 : vector<9x121xf32>
    %c32_59 = arith.constant 32 : index
    %931 = memref.load %arg5[%c32_59] : memref<144xf32, #tpu.memory_space<smem>>
    %932 = vector.extract_strided_slice %771 {offsets = [2, 4], sizes = [9, 121], strides = [1, 1]} : vector<13x125xf32> to vector<9x121xf32>
    %933 = vector.broadcast %931 : f32 to vector<9x121xf32>
    %934 = arith.mulf %932, %933 : vector<9x121xf32>
    %935 = arith.addf %930, %934 : vector<9x121xf32>
    %c33_60 = arith.constant 33 : index
    %936 = memref.load %arg5[%c33_60] : memref<144xf32, #tpu.memory_space<smem>>
    %937 = vector.extract_strided_slice %771 {offsets = [4, 0], sizes = [9, 121], strides = [1, 1]} : vector<13x125xf32> to vector<9x121xf32>
    %938 = vector.broadcast %936 : f32 to vector<9x121xf32>
    %939 = arith.mulf %937, %938 : vector<9x121xf32>
    %940 = arith.addf %935, %939 : vector<9x121xf32>
    %c34_61 = arith.constant 34 : index
    %941 = memref.load %arg5[%c34_61] : memref<144xf32, #tpu.memory_space<smem>>
    %942 = vector.extract_strided_slice %771 {offsets = [4, 2], sizes = [9, 121], strides = [1, 1]} : vector<13x125xf32> to vector<9x121xf32>
    %943 = vector.broadcast %941 : f32 to vector<9x121xf32>
    %944 = arith.mulf %942, %943 : vector<9x121xf32>
    %945 = arith.addf %940, %944 : vector<9x121xf32>
    %c35_62 = arith.constant 35 : index
    %946 = memref.load %arg5[%c35_62] : memref<144xf32, #tpu.memory_space<smem>>
    %947 = vector.extract_strided_slice %771 {offsets = [4, 4], sizes = [9, 121], strides = [1, 1]} : vector<13x125xf32> to vector<9x121xf32>
    %948 = vector.broadcast %946 : f32 to vector<9x121xf32>
    %949 = arith.mulf %947, %948 : vector<9x121xf32>
    %950 = arith.addf %945, %949 : vector<9x121xf32>
    %c0_63 = arith.constant 0 : index
    %951 = memref.load %arg6[%c0_63] : memref<4xf32, #tpu.memory_space<smem>>
    %952 = vector.broadcast %951 : f32 to vector<9x121xf32>
    %953 = arith.addf %950, %952 : vector<9x121xf32>
    %cst_64 = arith.constant 0.000000e+00 : f32
    %954 = vector.broadcast %cst_64 : f32 to vector<9x121xf32>
    %955 = arith.maximumf %953, %954 : vector<9x121xf32>
    %c36_65 = arith.constant 36 : index
    %956 = memref.load %arg5[%c36_65] : memref<144xf32, #tpu.memory_space<smem>>
    %957 = vector.extract_strided_slice %750 {offsets = [0, 0], sizes = [9, 121], strides = [1, 1]} : vector<13x125xf32> to vector<9x121xf32>
    %958 = vector.broadcast %956 : f32 to vector<9x121xf32>
    %959 = arith.mulf %957, %958 : vector<9x121xf32>
    %c37_66 = arith.constant 37 : index
    %960 = memref.load %arg5[%c37_66] : memref<144xf32, #tpu.memory_space<smem>>
    %961 = vector.extract_strided_slice %750 {offsets = [0, 2], sizes = [9, 121], strides = [1, 1]} : vector<13x125xf32> to vector<9x121xf32>
    %962 = vector.broadcast %960 : f32 to vector<9x121xf32>
    %963 = arith.mulf %961, %962 : vector<9x121xf32>
    %964 = arith.addf %959, %963 : vector<9x121xf32>
    %c38_67 = arith.constant 38 : index
    %965 = memref.load %arg5[%c38_67] : memref<144xf32, #tpu.memory_space<smem>>
    %966 = vector.extract_strided_slice %750 {offsets = [0, 4], sizes = [9, 121], strides = [1, 1]} : vector<13x125xf32> to vector<9x121xf32>
    %967 = vector.broadcast %965 : f32 to vector<9x121xf32>
    %968 = arith.mulf %966, %967 : vector<9x121xf32>
    %969 = arith.addf %964, %968 : vector<9x121xf32>
    %c39_68 = arith.constant 39 : index
    %970 = memref.load %arg5[%c39_68] : memref<144xf32, #tpu.memory_space<smem>>
    %971 = vector.extract_strided_slice %750 {offsets = [2, 0], sizes = [9, 121], strides = [1, 1]} : vector<13x125xf32> to vector<9x121xf32>
    %972 = vector.broadcast %970 : f32 to vector<9x121xf32>
    %973 = arith.mulf %971, %972 : vector<9x121xf32>
    %974 = arith.addf %969, %973 : vector<9x121xf32>
    %c40_69 = arith.constant 40 : index
    %975 = memref.load %arg5[%c40_69] : memref<144xf32, #tpu.memory_space<smem>>
    %976 = vector.extract_strided_slice %750 {offsets = [2, 2], sizes = [9, 121], strides = [1, 1]} : vector<13x125xf32> to vector<9x121xf32>
    %977 = vector.broadcast %975 : f32 to vector<9x121xf32>
    %978 = arith.mulf %976, %977 : vector<9x121xf32>
    %979 = arith.addf %974, %978 : vector<9x121xf32>
    %c41_70 = arith.constant 41 : index
    %980 = memref.load %arg5[%c41_70] : memref<144xf32, #tpu.memory_space<smem>>
    %981 = vector.extract_strided_slice %750 {offsets = [2, 4], sizes = [9, 121], strides = [1, 1]} : vector<13x125xf32> to vector<9x121xf32>
    %982 = vector.broadcast %980 : f32 to vector<9x121xf32>
    %983 = arith.mulf %981, %982 : vector<9x121xf32>
    %984 = arith.addf %979, %983 : vector<9x121xf32>
    %c42_71 = arith.constant 42 : index
    %985 = memref.load %arg5[%c42_71] : memref<144xf32, #tpu.memory_space<smem>>
    %986 = vector.extract_strided_slice %750 {offsets = [4, 0], sizes = [9, 121], strides = [1, 1]} : vector<13x125xf32> to vector<9x121xf32>
    %987 = vector.broadcast %985 : f32 to vector<9x121xf32>
    %988 = arith.mulf %986, %987 : vector<9x121xf32>
    %989 = arith.addf %984, %988 : vector<9x121xf32>
    %c43_72 = arith.constant 43 : index
    %990 = memref.load %arg5[%c43_72] : memref<144xf32, #tpu.memory_space<smem>>
    %991 = vector.extract_strided_slice %750 {offsets = [4, 2], sizes = [9, 121], strides = [1, 1]} : vector<13x125xf32> to vector<9x121xf32>
    %992 = vector.broadcast %990 : f32 to vector<9x121xf32>
    %993 = arith.mulf %991, %992 : vector<9x121xf32>
    %994 = arith.addf %989, %993 : vector<9x121xf32>
    %c44_73 = arith.constant 44 : index
    %995 = memref.load %arg5[%c44_73] : memref<144xf32, #tpu.memory_space<smem>>
    %996 = vector.extract_strided_slice %750 {offsets = [4, 4], sizes = [9, 121], strides = [1, 1]} : vector<13x125xf32> to vector<9x121xf32>
    %997 = vector.broadcast %995 : f32 to vector<9x121xf32>
    %998 = arith.mulf %996, %997 : vector<9x121xf32>
    %999 = arith.addf %994, %998 : vector<9x121xf32>
    %c45_74 = arith.constant 45 : index
    %1000 = memref.load %arg5[%c45_74] : memref<144xf32, #tpu.memory_space<smem>>
    %1001 = vector.extract_strided_slice %757 {offsets = [0, 0], sizes = [9, 121], strides = [1, 1]} : vector<13x125xf32> to vector<9x121xf32>
    %1002 = vector.broadcast %1000 : f32 to vector<9x121xf32>
    %1003 = arith.mulf %1001, %1002 : vector<9x121xf32>
    %1004 = arith.addf %999, %1003 : vector<9x121xf32>
    %c46_75 = arith.constant 46 : index
    %1005 = memref.load %arg5[%c46_75] : memref<144xf32, #tpu.memory_space<smem>>
    %1006 = vector.extract_strided_slice %757 {offsets = [0, 2], sizes = [9, 121], strides = [1, 1]} : vector<13x125xf32> to vector<9x121xf32>
    %1007 = vector.broadcast %1005 : f32 to vector<9x121xf32>
    %1008 = arith.mulf %1006, %1007 : vector<9x121xf32>
    %1009 = arith.addf %1004, %1008 : vector<9x121xf32>
    %c47_76 = arith.constant 47 : index
    %1010 = memref.load %arg5[%c47_76] : memref<144xf32, #tpu.memory_space<smem>>
    %1011 = vector.extract_strided_slice %757 {offsets = [0, 4], sizes = [9, 121], strides = [1, 1]} : vector<13x125xf32> to vector<9x121xf32>
    %1012 = vector.broadcast %1010 : f32 to vector<9x121xf32>
    %1013 = arith.mulf %1011, %1012 : vector<9x121xf32>
    %1014 = arith.addf %1009, %1013 : vector<9x121xf32>
    %c48_77 = arith.constant 48 : index
    %1015 = memref.load %arg5[%c48_77] : memref<144xf32, #tpu.memory_space<smem>>
    %1016 = vector.extract_strided_slice %757 {offsets = [2, 0], sizes = [9, 121], strides = [1, 1]} : vector<13x125xf32> to vector<9x121xf32>
    %1017 = vector.broadcast %1015 : f32 to vector<9x121xf32>
    %1018 = arith.mulf %1016, %1017 : vector<9x121xf32>
    %1019 = arith.addf %1014, %1018 : vector<9x121xf32>
    %c49_78 = arith.constant 49 : index
    %1020 = memref.load %arg5[%c49_78] : memref<144xf32, #tpu.memory_space<smem>>
    %1021 = vector.extract_strided_slice %757 {offsets = [2, 2], sizes = [9, 121], strides = [1, 1]} : vector<13x125xf32> to vector<9x121xf32>
    %1022 = vector.broadcast %1020 : f32 to vector<9x121xf32>
    %1023 = arith.mulf %1021, %1022 : vector<9x121xf32>
    %1024 = arith.addf %1019, %1023 : vector<9x121xf32>
    %c50_79 = arith.constant 50 : index
    %1025 = memref.load %arg5[%c50_79] : memref<144xf32, #tpu.memory_space<smem>>
    %1026 = vector.extract_strided_slice %757 {offsets = [2, 4], sizes = [9, 121], strides = [1, 1]} : vector<13x125xf32> to vector<9x121xf32>
    %1027 = vector.broadcast %1025 : f32 to vector<9x121xf32>
    %1028 = arith.mulf %1026, %1027 : vector<9x121xf32>
    %1029 = arith.addf %1024, %1028 : vector<9x121xf32>
    %c51_80 = arith.constant 51 : index
    %1030 = memref.load %arg5[%c51_80] : memref<144xf32, #tpu.memory_space<smem>>
    %1031 = vector.extract_strided_slice %757 {offsets = [4, 0], sizes = [9, 121], strides = [1, 1]} : vector<13x125xf32> to vector<9x121xf32>
    %1032 = vector.broadcast %1030 : f32 to vector<9x121xf32>
    %1033 = arith.mulf %1031, %1032 : vector<9x121xf32>
    %1034 = arith.addf %1029, %1033 : vector<9x121xf32>
    %c52_81 = arith.constant 52 : index
    %1035 = memref.load %arg5[%c52_81] : memref<144xf32, #tpu.memory_space<smem>>
    %1036 = vector.extract_strided_slice %757 {offsets = [4, 2], sizes = [9, 121], strides = [1, 1]} : vector<13x125xf32> to vector<9x121xf32>
    %1037 = vector.broadcast %1035 : f32 to vector<9x121xf32>
    %1038 = arith.mulf %1036, %1037 : vector<9x121xf32>
    %1039 = arith.addf %1034, %1038 : vector<9x121xf32>
    %c53_82 = arith.constant 53 : index
    %1040 = memref.load %arg5[%c53_82] : memref<144xf32, #tpu.memory_space<smem>>
    %1041 = vector.extract_strided_slice %757 {offsets = [4, 4], sizes = [9, 121], strides = [1, 1]} : vector<13x125xf32> to vector<9x121xf32>
    %1042 = vector.broadcast %1040 : f32 to vector<9x121xf32>
    %1043 = arith.mulf %1041, %1042 : vector<9x121xf32>
    %1044 = arith.addf %1039, %1043 : vector<9x121xf32>
    %c54_83 = arith.constant 54 : index
    %1045 = memref.load %arg5[%c54_83] : memref<144xf32, #tpu.memory_space<smem>>
    %1046 = vector.extract_strided_slice %764 {offsets = [0, 0], sizes = [9, 121], strides = [1, 1]} : vector<13x125xf32> to vector<9x121xf32>
    %1047 = vector.broadcast %1045 : f32 to vector<9x121xf32>
    %1048 = arith.mulf %1046, %1047 : vector<9x121xf32>
    %1049 = arith.addf %1044, %1048 : vector<9x121xf32>
    %c55_84 = arith.constant 55 : index
    %1050 = memref.load %arg5[%c55_84] : memref<144xf32, #tpu.memory_space<smem>>
    %1051 = vector.extract_strided_slice %764 {offsets = [0, 2], sizes = [9, 121], strides = [1, 1]} : vector<13x125xf32> to vector<9x121xf32>
    %1052 = vector.broadcast %1050 : f32 to vector<9x121xf32>
    %1053 = arith.mulf %1051, %1052 : vector<9x121xf32>
    %1054 = arith.addf %1049, %1053 : vector<9x121xf32>
    %c56_85 = arith.constant 56 : index
    %1055 = memref.load %arg5[%c56_85] : memref<144xf32, #tpu.memory_space<smem>>
    %1056 = vector.extract_strided_slice %764 {offsets = [0, 4], sizes = [9, 121], strides = [1, 1]} : vector<13x125xf32> to vector<9x121xf32>
    %1057 = vector.broadcast %1055 : f32 to vector<9x121xf32>
    %1058 = arith.mulf %1056, %1057 : vector<9x121xf32>
    %1059 = arith.addf %1054, %1058 : vector<9x121xf32>
    %c57_86 = arith.constant 57 : index
    %1060 = memref.load %arg5[%c57_86] : memref<144xf32, #tpu.memory_space<smem>>
    %1061 = vector.extract_strided_slice %764 {offsets = [2, 0], sizes = [9, 121], strides = [1, 1]} : vector<13x125xf32> to vector<9x121xf32>
    %1062 = vector.broadcast %1060 : f32 to vector<9x121xf32>
    %1063 = arith.mulf %1061, %1062 : vector<9x121xf32>
    %1064 = arith.addf %1059, %1063 : vector<9x121xf32>
    %c58_87 = arith.constant 58 : index
    %1065 = memref.load %arg5[%c58_87] : memref<144xf32, #tpu.memory_space<smem>>
    %1066 = vector.extract_strided_slice %764 {offsets = [2, 2], sizes = [9, 121], strides = [1, 1]} : vector<13x125xf32> to vector<9x121xf32>
    %1067 = vector.broadcast %1065 : f32 to vector<9x121xf32>
    %1068 = arith.mulf %1066, %1067 : vector<9x121xf32>
    %1069 = arith.addf %1064, %1068 : vector<9x121xf32>
    %c59_88 = arith.constant 59 : index
    %1070 = memref.load %arg5[%c59_88] : memref<144xf32, #tpu.memory_space<smem>>
    %1071 = vector.extract_strided_slice %764 {offsets = [2, 4], sizes = [9, 121], strides = [1, 1]} : vector<13x125xf32> to vector<9x121xf32>
    %1072 = vector.broadcast %1070 : f32 to vector<9x121xf32>
    %1073 = arith.mulf %1071, %1072 : vector<9x121xf32>
    %1074 = arith.addf %1069, %1073 : vector<9x121xf32>
    %c60_89 = arith.constant 60 : index
    %1075 = memref.load %arg5[%c60_89] : memref<144xf32, #tpu.memory_space<smem>>
    %1076 = vector.extract_strided_slice %764 {offsets = [4, 0], sizes = [9, 121], strides = [1, 1]} : vector<13x125xf32> to vector<9x121xf32>
    %1077 = vector.broadcast %1075 : f32 to vector<9x121xf32>
    %1078 = arith.mulf %1076, %1077 : vector<9x121xf32>
    %1079 = arith.addf %1074, %1078 : vector<9x121xf32>
    %c61_90 = arith.constant 61 : index
    %1080 = memref.load %arg5[%c61_90] : memref<144xf32, #tpu.memory_space<smem>>
    %1081 = vector.extract_strided_slice %764 {offsets = [4, 2], sizes = [9, 121], strides = [1, 1]} : vector<13x125xf32> to vector<9x121xf32>
    %1082 = vector.broadcast %1080 : f32 to vector<9x121xf32>
    %1083 = arith.mulf %1081, %1082 : vector<9x121xf32>
    %1084 = arith.addf %1079, %1083 : vector<9x121xf32>
    %c62_91 = arith.constant 62 : index
    %1085 = memref.load %arg5[%c62_91] : memref<144xf32, #tpu.memory_space<smem>>
    %1086 = vector.extract_strided_slice %764 {offsets = [4, 4], sizes = [9, 121], strides = [1, 1]} : vector<13x125xf32> to vector<9x121xf32>
    %1087 = vector.broadcast %1085 : f32 to vector<9x121xf32>
    %1088 = arith.mulf %1086, %1087 : vector<9x121xf32>
    %1089 = arith.addf %1084, %1088 : vector<9x121xf32>
    %c63_92 = arith.constant 63 : index
    %1090 = memref.load %arg5[%c63_92] : memref<144xf32, #tpu.memory_space<smem>>
    %1091 = vector.extract_strided_slice %771 {offsets = [0, 0], sizes = [9, 121], strides = [1, 1]} : vector<13x125xf32> to vector<9x121xf32>
    %1092 = vector.broadcast %1090 : f32 to vector<9x121xf32>
    %1093 = arith.mulf %1091, %1092 : vector<9x121xf32>
    %1094 = arith.addf %1089, %1093 : vector<9x121xf32>
    %c64_93 = arith.constant 64 : index
    %1095 = memref.load %arg5[%c64_93] : memref<144xf32, #tpu.memory_space<smem>>
    %1096 = vector.extract_strided_slice %771 {offsets = [0, 2], sizes = [9, 121], strides = [1, 1]} : vector<13x125xf32> to vector<9x121xf32>
    %1097 = vector.broadcast %1095 : f32 to vector<9x121xf32>
    %1098 = arith.mulf %1096, %1097 : vector<9x121xf32>
    %1099 = arith.addf %1094, %1098 : vector<9x121xf32>
    %c65_94 = arith.constant 65 : index
    %1100 = memref.load %arg5[%c65_94] : memref<144xf32, #tpu.memory_space<smem>>
    %1101 = vector.extract_strided_slice %771 {offsets = [0, 4], sizes = [9, 121], strides = [1, 1]} : vector<13x125xf32> to vector<9x121xf32>
    %1102 = vector.broadcast %1100 : f32 to vector<9x121xf32>
    %1103 = arith.mulf %1101, %1102 : vector<9x121xf32>
    %1104 = arith.addf %1099, %1103 : vector<9x121xf32>
    %c66_95 = arith.constant 66 : index
    %1105 = memref.load %arg5[%c66_95] : memref<144xf32, #tpu.memory_space<smem>>
    %1106 = vector.extract_strided_slice %771 {offsets = [2, 0], sizes = [9, 121], strides = [1, 1]} : vector<13x125xf32> to vector<9x121xf32>
    %1107 = vector.broadcast %1105 : f32 to vector<9x121xf32>
    %1108 = arith.mulf %1106, %1107 : vector<9x121xf32>
    %1109 = arith.addf %1104, %1108 : vector<9x121xf32>
    %c67_96 = arith.constant 67 : index
    %1110 = memref.load %arg5[%c67_96] : memref<144xf32, #tpu.memory_space<smem>>
    %1111 = vector.extract_strided_slice %771 {offsets = [2, 2], sizes = [9, 121], strides = [1, 1]} : vector<13x125xf32> to vector<9x121xf32>
    %1112 = vector.broadcast %1110 : f32 to vector<9x121xf32>
    %1113 = arith.mulf %1111, %1112 : vector<9x121xf32>
    %1114 = arith.addf %1109, %1113 : vector<9x121xf32>
    %c68_97 = arith.constant 68 : index
    %1115 = memref.load %arg5[%c68_97] : memref<144xf32, #tpu.memory_space<smem>>
    %1116 = vector.extract_strided_slice %771 {offsets = [2, 4], sizes = [9, 121], strides = [1, 1]} : vector<13x125xf32> to vector<9x121xf32>
    %1117 = vector.broadcast %1115 : f32 to vector<9x121xf32>
    %1118 = arith.mulf %1116, %1117 : vector<9x121xf32>
    %1119 = arith.addf %1114, %1118 : vector<9x121xf32>
    %c69_98 = arith.constant 69 : index
    %1120 = memref.load %arg5[%c69_98] : memref<144xf32, #tpu.memory_space<smem>>
    %1121 = vector.extract_strided_slice %771 {offsets = [4, 0], sizes = [9, 121], strides = [1, 1]} : vector<13x125xf32> to vector<9x121xf32>
    %1122 = vector.broadcast %1120 : f32 to vector<9x121xf32>
    %1123 = arith.mulf %1121, %1122 : vector<9x121xf32>
    %1124 = arith.addf %1119, %1123 : vector<9x121xf32>
    %c70_99 = arith.constant 70 : index
    %1125 = memref.load %arg5[%c70_99] : memref<144xf32, #tpu.memory_space<smem>>
    %1126 = vector.extract_strided_slice %771 {offsets = [4, 2], sizes = [9, 121], strides = [1, 1]} : vector<13x125xf32> to vector<9x121xf32>
    %1127 = vector.broadcast %1125 : f32 to vector<9x121xf32>
    %1128 = arith.mulf %1126, %1127 : vector<9x121xf32>
    %1129 = arith.addf %1124, %1128 : vector<9x121xf32>
    %c71_100 = arith.constant 71 : index
    %1130 = memref.load %arg5[%c71_100] : memref<144xf32, #tpu.memory_space<smem>>
    %1131 = vector.extract_strided_slice %771 {offsets = [4, 4], sizes = [9, 121], strides = [1, 1]} : vector<13x125xf32> to vector<9x121xf32>
    %1132 = vector.broadcast %1130 : f32 to vector<9x121xf32>
    %1133 = arith.mulf %1131, %1132 : vector<9x121xf32>
    %1134 = arith.addf %1129, %1133 : vector<9x121xf32>
    %c1_101 = arith.constant 1 : index
    %1135 = memref.load %arg6[%c1_101] : memref<4xf32, #tpu.memory_space<smem>>
    %1136 = vector.broadcast %1135 : f32 to vector<9x121xf32>
    %1137 = arith.addf %1134, %1136 : vector<9x121xf32>
    %cst_102 = arith.constant 0.000000e+00 : f32
    %1138 = vector.broadcast %cst_102 : f32 to vector<9x121xf32>
    %1139 = arith.maximumf %1137, %1138 : vector<9x121xf32>
    %c72_103 = arith.constant 72 : index
    %1140 = memref.load %arg5[%c72_103] : memref<144xf32, #tpu.memory_space<smem>>
    %1141 = vector.extract_strided_slice %750 {offsets = [0, 0], sizes = [9, 121], strides = [1, 1]} : vector<13x125xf32> to vector<9x121xf32>
    %1142 = vector.broadcast %1140 : f32 to vector<9x121xf32>
    %1143 = arith.mulf %1141, %1142 : vector<9x121xf32>
    %c73_104 = arith.constant 73 : index
    %1144 = memref.load %arg5[%c73_104] : memref<144xf32, #tpu.memory_space<smem>>
    %1145 = vector.extract_strided_slice %750 {offsets = [0, 2], sizes = [9, 121], strides = [1, 1]} : vector<13x125xf32> to vector<9x121xf32>
    %1146 = vector.broadcast %1144 : f32 to vector<9x121xf32>
    %1147 = arith.mulf %1145, %1146 : vector<9x121xf32>
    %1148 = arith.addf %1143, %1147 : vector<9x121xf32>
    %c74_105 = arith.constant 74 : index
    %1149 = memref.load %arg5[%c74_105] : memref<144xf32, #tpu.memory_space<smem>>
    %1150 = vector.extract_strided_slice %750 {offsets = [0, 4], sizes = [9, 121], strides = [1, 1]} : vector<13x125xf32> to vector<9x121xf32>
    %1151 = vector.broadcast %1149 : f32 to vector<9x121xf32>
    %1152 = arith.mulf %1150, %1151 : vector<9x121xf32>
    %1153 = arith.addf %1148, %1152 : vector<9x121xf32>
    %c75_106 = arith.constant 75 : index
    %1154 = memref.load %arg5[%c75_106] : memref<144xf32, #tpu.memory_space<smem>>
    %1155 = vector.extract_strided_slice %750 {offsets = [2, 0], sizes = [9, 121], strides = [1, 1]} : vector<13x125xf32> to vector<9x121xf32>
    %1156 = vector.broadcast %1154 : f32 to vector<9x121xf32>
    %1157 = arith.mulf %1155, %1156 : vector<9x121xf32>
    %1158 = arith.addf %1153, %1157 : vector<9x121xf32>
    %c76_107 = arith.constant 76 : index
    %1159 = memref.load %arg5[%c76_107] : memref<144xf32, #tpu.memory_space<smem>>
    %1160 = vector.extract_strided_slice %750 {offsets = [2, 2], sizes = [9, 121], strides = [1, 1]} : vector<13x125xf32> to vector<9x121xf32>
    %1161 = vector.broadcast %1159 : f32 to vector<9x121xf32>
    %1162 = arith.mulf %1160, %1161 : vector<9x121xf32>
    %1163 = arith.addf %1158, %1162 : vector<9x121xf32>
    %c77_108 = arith.constant 77 : index
    %1164 = memref.load %arg5[%c77_108] : memref<144xf32, #tpu.memory_space<smem>>
    %1165 = vector.extract_strided_slice %750 {offsets = [2, 4], sizes = [9, 121], strides = [1, 1]} : vector<13x125xf32> to vector<9x121xf32>
    %1166 = vector.broadcast %1164 : f32 to vector<9x121xf32>
    %1167 = arith.mulf %1165, %1166 : vector<9x121xf32>
    %1168 = arith.addf %1163, %1167 : vector<9x121xf32>
    %c78_109 = arith.constant 78 : index
    %1169 = memref.load %arg5[%c78_109] : memref<144xf32, #tpu.memory_space<smem>>
    %1170 = vector.extract_strided_slice %750 {offsets = [4, 0], sizes = [9, 121], strides = [1, 1]} : vector<13x125xf32> to vector<9x121xf32>
    %1171 = vector.broadcast %1169 : f32 to vector<9x121xf32>
    %1172 = arith.mulf %1170, %1171 : vector<9x121xf32>
    %1173 = arith.addf %1168, %1172 : vector<9x121xf32>
    %c79_110 = arith.constant 79 : index
    %1174 = memref.load %arg5[%c79_110] : memref<144xf32, #tpu.memory_space<smem>>
    %1175 = vector.extract_strided_slice %750 {offsets = [4, 2], sizes = [9, 121], strides = [1, 1]} : vector<13x125xf32> to vector<9x121xf32>
    %1176 = vector.broadcast %1174 : f32 to vector<9x121xf32>
    %1177 = arith.mulf %1175, %1176 : vector<9x121xf32>
    %1178 = arith.addf %1173, %1177 : vector<9x121xf32>
    %c80_111 = arith.constant 80 : index
    %1179 = memref.load %arg5[%c80_111] : memref<144xf32, #tpu.memory_space<smem>>
    %1180 = vector.extract_strided_slice %750 {offsets = [4, 4], sizes = [9, 121], strides = [1, 1]} : vector<13x125xf32> to vector<9x121xf32>
    %1181 = vector.broadcast %1179 : f32 to vector<9x121xf32>
    %1182 = arith.mulf %1180, %1181 : vector<9x121xf32>
    %1183 = arith.addf %1178, %1182 : vector<9x121xf32>
    %c81_112 = arith.constant 81 : index
    %1184 = memref.load %arg5[%c81_112] : memref<144xf32, #tpu.memory_space<smem>>
    %1185 = vector.extract_strided_slice %757 {offsets = [0, 0], sizes = [9, 121], strides = [1, 1]} : vector<13x125xf32> to vector<9x121xf32>
    %1186 = vector.broadcast %1184 : f32 to vector<9x121xf32>
    %1187 = arith.mulf %1185, %1186 : vector<9x121xf32>
    %1188 = arith.addf %1183, %1187 : vector<9x121xf32>
    %c82_113 = arith.constant 82 : index
    %1189 = memref.load %arg5[%c82_113] : memref<144xf32, #tpu.memory_space<smem>>
    %1190 = vector.extract_strided_slice %757 {offsets = [0, 2], sizes = [9, 121], strides = [1, 1]} : vector<13x125xf32> to vector<9x121xf32>
    %1191 = vector.broadcast %1189 : f32 to vector<9x121xf32>
    %1192 = arith.mulf %1190, %1191 : vector<9x121xf32>
    %1193 = arith.addf %1188, %1192 : vector<9x121xf32>
    %c83_114 = arith.constant 83 : index
    %1194 = memref.load %arg5[%c83_114] : memref<144xf32, #tpu.memory_space<smem>>
    %1195 = vector.extract_strided_slice %757 {offsets = [0, 4], sizes = [9, 121], strides = [1, 1]} : vector<13x125xf32> to vector<9x121xf32>
    %1196 = vector.broadcast %1194 : f32 to vector<9x121xf32>
    %1197 = arith.mulf %1195, %1196 : vector<9x121xf32>
    %1198 = arith.addf %1193, %1197 : vector<9x121xf32>
    %c84_115 = arith.constant 84 : index
    %1199 = memref.load %arg5[%c84_115] : memref<144xf32, #tpu.memory_space<smem>>
    %1200 = vector.extract_strided_slice %757 {offsets = [2, 0], sizes = [9, 121], strides = [1, 1]} : vector<13x125xf32> to vector<9x121xf32>
    %1201 = vector.broadcast %1199 : f32 to vector<9x121xf32>
    %1202 = arith.mulf %1200, %1201 : vector<9x121xf32>
    %1203 = arith.addf %1198, %1202 : vector<9x121xf32>
    %c85_116 = arith.constant 85 : index
    %1204 = memref.load %arg5[%c85_116] : memref<144xf32, #tpu.memory_space<smem>>
    %1205 = vector.extract_strided_slice %757 {offsets = [2, 2], sizes = [9, 121], strides = [1, 1]} : vector<13x125xf32> to vector<9x121xf32>
    %1206 = vector.broadcast %1204 : f32 to vector<9x121xf32>
    %1207 = arith.mulf %1205, %1206 : vector<9x121xf32>
    %1208 = arith.addf %1203, %1207 : vector<9x121xf32>
    %c86_117 = arith.constant 86 : index
    %1209 = memref.load %arg5[%c86_117] : memref<144xf32, #tpu.memory_space<smem>>
    %1210 = vector.extract_strided_slice %757 {offsets = [2, 4], sizes = [9, 121], strides = [1, 1]} : vector<13x125xf32> to vector<9x121xf32>
    %1211 = vector.broadcast %1209 : f32 to vector<9x121xf32>
    %1212 = arith.mulf %1210, %1211 : vector<9x121xf32>
    %1213 = arith.addf %1208, %1212 : vector<9x121xf32>
    %c87_118 = arith.constant 87 : index
    %1214 = memref.load %arg5[%c87_118] : memref<144xf32, #tpu.memory_space<smem>>
    %1215 = vector.extract_strided_slice %757 {offsets = [4, 0], sizes = [9, 121], strides = [1, 1]} : vector<13x125xf32> to vector<9x121xf32>
    %1216 = vector.broadcast %1214 : f32 to vector<9x121xf32>
    %1217 = arith.mulf %1215, %1216 : vector<9x121xf32>
    %1218 = arith.addf %1213, %1217 : vector<9x121xf32>
    %c88_119 = arith.constant 88 : index
    %1219 = memref.load %arg5[%c88_119] : memref<144xf32, #tpu.memory_space<smem>>
    %1220 = vector.extract_strided_slice %757 {offsets = [4, 2], sizes = [9, 121], strides = [1, 1]} : vector<13x125xf32> to vector<9x121xf32>
    %1221 = vector.broadcast %1219 : f32 to vector<9x121xf32>
    %1222 = arith.mulf %1220, %1221 : vector<9x121xf32>
    %1223 = arith.addf %1218, %1222 : vector<9x121xf32>
    %c89_120 = arith.constant 89 : index
    %1224 = memref.load %arg5[%c89_120] : memref<144xf32, #tpu.memory_space<smem>>
    %1225 = vector.extract_strided_slice %757 {offsets = [4, 4], sizes = [9, 121], strides = [1, 1]} : vector<13x125xf32> to vector<9x121xf32>
    %1226 = vector.broadcast %1224 : f32 to vector<9x121xf32>
    %1227 = arith.mulf %1225, %1226 : vector<9x121xf32>
    %1228 = arith.addf %1223, %1227 : vector<9x121xf32>
    %c90_121 = arith.constant 90 : index
    %1229 = memref.load %arg5[%c90_121] : memref<144xf32, #tpu.memory_space<smem>>
    %1230 = vector.extract_strided_slice %764 {offsets = [0, 0], sizes = [9, 121], strides = [1, 1]} : vector<13x125xf32> to vector<9x121xf32>
    %1231 = vector.broadcast %1229 : f32 to vector<9x121xf32>
    %1232 = arith.mulf %1230, %1231 : vector<9x121xf32>
    %1233 = arith.addf %1228, %1232 : vector<9x121xf32>
    %c91_122 = arith.constant 91 : index
    %1234 = memref.load %arg5[%c91_122] : memref<144xf32, #tpu.memory_space<smem>>
    %1235 = vector.extract_strided_slice %764 {offsets = [0, 2], sizes = [9, 121], strides = [1, 1]} : vector<13x125xf32> to vector<9x121xf32>
    %1236 = vector.broadcast %1234 : f32 to vector<9x121xf32>
    %1237 = arith.mulf %1235, %1236 : vector<9x121xf32>
    %1238 = arith.addf %1233, %1237 : vector<9x121xf32>
    %c92_123 = arith.constant 92 : index
    %1239 = memref.load %arg5[%c92_123] : memref<144xf32, #tpu.memory_space<smem>>
    %1240 = vector.extract_strided_slice %764 {offsets = [0, 4], sizes = [9, 121], strides = [1, 1]} : vector<13x125xf32> to vector<9x121xf32>
    %1241 = vector.broadcast %1239 : f32 to vector<9x121xf32>
    %1242 = arith.mulf %1240, %1241 : vector<9x121xf32>
    %1243 = arith.addf %1238, %1242 : vector<9x121xf32>
    %c93_124 = arith.constant 93 : index
    %1244 = memref.load %arg5[%c93_124] : memref<144xf32, #tpu.memory_space<smem>>
    %1245 = vector.extract_strided_slice %764 {offsets = [2, 0], sizes = [9, 121], strides = [1, 1]} : vector<13x125xf32> to vector<9x121xf32>
    %1246 = vector.broadcast %1244 : f32 to vector<9x121xf32>
    %1247 = arith.mulf %1245, %1246 : vector<9x121xf32>
    %1248 = arith.addf %1243, %1247 : vector<9x121xf32>
    %c94_125 = arith.constant 94 : index
    %1249 = memref.load %arg5[%c94_125] : memref<144xf32, #tpu.memory_space<smem>>
    %1250 = vector.extract_strided_slice %764 {offsets = [2, 2], sizes = [9, 121], strides = [1, 1]} : vector<13x125xf32> to vector<9x121xf32>
    %1251 = vector.broadcast %1249 : f32 to vector<9x121xf32>
    %1252 = arith.mulf %1250, %1251 : vector<9x121xf32>
    %1253 = arith.addf %1248, %1252 : vector<9x121xf32>
    %c95_126 = arith.constant 95 : index
    %1254 = memref.load %arg5[%c95_126] : memref<144xf32, #tpu.memory_space<smem>>
    %1255 = vector.extract_strided_slice %764 {offsets = [2, 4], sizes = [9, 121], strides = [1, 1]} : vector<13x125xf32> to vector<9x121xf32>
    %1256 = vector.broadcast %1254 : f32 to vector<9x121xf32>
    %1257 = arith.mulf %1255, %1256 : vector<9x121xf32>
    %1258 = arith.addf %1253, %1257 : vector<9x121xf32>
    %c96_127 = arith.constant 96 : index
    %1259 = memref.load %arg5[%c96_127] : memref<144xf32, #tpu.memory_space<smem>>
    %1260 = vector.extract_strided_slice %764 {offsets = [4, 0], sizes = [9, 121], strides = [1, 1]} : vector<13x125xf32> to vector<9x121xf32>
    %1261 = vector.broadcast %1259 : f32 to vector<9x121xf32>
    %1262 = arith.mulf %1260, %1261 : vector<9x121xf32>
    %1263 = arith.addf %1258, %1262 : vector<9x121xf32>
    %c97_128 = arith.constant 97 : index
    %1264 = memref.load %arg5[%c97_128] : memref<144xf32, #tpu.memory_space<smem>>
    %1265 = vector.extract_strided_slice %764 {offsets = [4, 2], sizes = [9, 121], strides = [1, 1]} : vector<13x125xf32> to vector<9x121xf32>
    %1266 = vector.broadcast %1264 : f32 to vector<9x121xf32>
    %1267 = arith.mulf %1265, %1266 : vector<9x121xf32>
    %1268 = arith.addf %1263, %1267 : vector<9x121xf32>
    %c98_129 = arith.constant 98 : index
    %1269 = memref.load %arg5[%c98_129] : memref<144xf32, #tpu.memory_space<smem>>
    %1270 = vector.extract_strided_slice %764 {offsets = [4, 4], sizes = [9, 121], strides = [1, 1]} : vector<13x125xf32> to vector<9x121xf32>
    %1271 = vector.broadcast %1269 : f32 to vector<9x121xf32>
    %1272 = arith.mulf %1270, %1271 : vector<9x121xf32>
    %1273 = arith.addf %1268, %1272 : vector<9x121xf32>
    %c99_130 = arith.constant 99 : index
    %1274 = memref.load %arg5[%c99_130] : memref<144xf32, #tpu.memory_space<smem>>
    %1275 = vector.extract_strided_slice %771 {offsets = [0, 0], sizes = [9, 121], strides = [1, 1]} : vector<13x125xf32> to vector<9x121xf32>
    %1276 = vector.broadcast %1274 : f32 to vector<9x121xf32>
    %1277 = arith.mulf %1275, %1276 : vector<9x121xf32>
    %1278 = arith.addf %1273, %1277 : vector<9x121xf32>
    %c100_131 = arith.constant 100 : index
    %1279 = memref.load %arg5[%c100_131] : memref<144xf32, #tpu.memory_space<smem>>
    %1280 = vector.extract_strided_slice %771 {offsets = [0, 2], sizes = [9, 121], strides = [1, 1]} : vector<13x125xf32> to vector<9x121xf32>
    %1281 = vector.broadcast %1279 : f32 to vector<9x121xf32>
    %1282 = arith.mulf %1280, %1281 : vector<9x121xf32>
    %1283 = arith.addf %1278, %1282 : vector<9x121xf32>
    %c101_132 = arith.constant 101 : index
    %1284 = memref.load %arg5[%c101_132] : memref<144xf32, #tpu.memory_space<smem>>
    %1285 = vector.extract_strided_slice %771 {offsets = [0, 4], sizes = [9, 121], strides = [1, 1]} : vector<13x125xf32> to vector<9x121xf32>
    %1286 = vector.broadcast %1284 : f32 to vector<9x121xf32>
    %1287 = arith.mulf %1285, %1286 : vector<9x121xf32>
    %1288 = arith.addf %1283, %1287 : vector<9x121xf32>
    %c102_133 = arith.constant 102 : index
    %1289 = memref.load %arg5[%c102_133] : memref<144xf32, #tpu.memory_space<smem>>
    %1290 = vector.extract_strided_slice %771 {offsets = [2, 0], sizes = [9, 121], strides = [1, 1]} : vector<13x125xf32> to vector<9x121xf32>
    %1291 = vector.broadcast %1289 : f32 to vector<9x121xf32>
    %1292 = arith.mulf %1290, %1291 : vector<9x121xf32>
    %1293 = arith.addf %1288, %1292 : vector<9x121xf32>
    %c103_134 = arith.constant 103 : index
    %1294 = memref.load %arg5[%c103_134] : memref<144xf32, #tpu.memory_space<smem>>
    %1295 = vector.extract_strided_slice %771 {offsets = [2, 2], sizes = [9, 121], strides = [1, 1]} : vector<13x125xf32> to vector<9x121xf32>
    %1296 = vector.broadcast %1294 : f32 to vector<9x121xf32>
    %1297 = arith.mulf %1295, %1296 : vector<9x121xf32>
    %1298 = arith.addf %1293, %1297 : vector<9x121xf32>
    %c104_135 = arith.constant 104 : index
    %1299 = memref.load %arg5[%c104_135] : memref<144xf32, #tpu.memory_space<smem>>
    %1300 = vector.extract_strided_slice %771 {offsets = [2, 4], sizes = [9, 121], strides = [1, 1]} : vector<13x125xf32> to vector<9x121xf32>
    %1301 = vector.broadcast %1299 : f32 to vector<9x121xf32>
    %1302 = arith.mulf %1300, %1301 : vector<9x121xf32>
    %1303 = arith.addf %1298, %1302 : vector<9x121xf32>
    %c105_136 = arith.constant 105 : index
    %1304 = memref.load %arg5[%c105_136] : memref<144xf32, #tpu.memory_space<smem>>
    %1305 = vector.extract_strided_slice %771 {offsets = [4, 0], sizes = [9, 121], strides = [1, 1]} : vector<13x125xf32> to vector<9x121xf32>
    %1306 = vector.broadcast %1304 : f32 to vector<9x121xf32>
    %1307 = arith.mulf %1305, %1306 : vector<9x121xf32>
    %1308 = arith.addf %1303, %1307 : vector<9x121xf32>
    %c106_137 = arith.constant 106 : index
    %1309 = memref.load %arg5[%c106_137] : memref<144xf32, #tpu.memory_space<smem>>
    %1310 = vector.extract_strided_slice %771 {offsets = [4, 2], sizes = [9, 121], strides = [1, 1]} : vector<13x125xf32> to vector<9x121xf32>
    %1311 = vector.broadcast %1309 : f32 to vector<9x121xf32>
    %1312 = arith.mulf %1310, %1311 : vector<9x121xf32>
    %1313 = arith.addf %1308, %1312 : vector<9x121xf32>
    %c107_138 = arith.constant 107 : index
    %1314 = memref.load %arg5[%c107_138] : memref<144xf32, #tpu.memory_space<smem>>
    %1315 = vector.extract_strided_slice %771 {offsets = [4, 4], sizes = [9, 121], strides = [1, 1]} : vector<13x125xf32> to vector<9x121xf32>
    %1316 = vector.broadcast %1314 : f32 to vector<9x121xf32>
    %1317 = arith.mulf %1315, %1316 : vector<9x121xf32>
    %1318 = arith.addf %1313, %1317 : vector<9x121xf32>
    %c2_139 = arith.constant 2 : index
    %1319 = memref.load %arg6[%c2_139] : memref<4xf32, #tpu.memory_space<smem>>
    %1320 = vector.broadcast %1319 : f32 to vector<9x121xf32>
    %1321 = arith.addf %1318, %1320 : vector<9x121xf32>
    %cst_140 = arith.constant 0.000000e+00 : f32
    %1322 = vector.broadcast %cst_140 : f32 to vector<9x121xf32>
    %1323 = arith.maximumf %1321, %1322 : vector<9x121xf32>
    %c108_141 = arith.constant 108 : index
    %1324 = memref.load %arg5[%c108_141] : memref<144xf32, #tpu.memory_space<smem>>
    %1325 = vector.extract_strided_slice %750 {offsets = [0, 0], sizes = [9, 121], strides = [1, 1]} : vector<13x125xf32> to vector<9x121xf32>
    %1326 = vector.broadcast %1324 : f32 to vector<9x121xf32>
    %1327 = arith.mulf %1325, %1326 : vector<9x121xf32>
    %c109_142 = arith.constant 109 : index
    %1328 = memref.load %arg5[%c109_142] : memref<144xf32, #tpu.memory_space<smem>>
    %1329 = vector.extract_strided_slice %750 {offsets = [0, 2], sizes = [9, 121], strides = [1, 1]} : vector<13x125xf32> to vector<9x121xf32>
    %1330 = vector.broadcast %1328 : f32 to vector<9x121xf32>
    %1331 = arith.mulf %1329, %1330 : vector<9x121xf32>
    %1332 = arith.addf %1327, %1331 : vector<9x121xf32>
    %c110_143 = arith.constant 110 : index
    %1333 = memref.load %arg5[%c110_143] : memref<144xf32, #tpu.memory_space<smem>>
    %1334 = vector.extract_strided_slice %750 {offsets = [0, 4], sizes = [9, 121], strides = [1, 1]} : vector<13x125xf32> to vector<9x121xf32>
    %1335 = vector.broadcast %1333 : f32 to vector<9x121xf32>
    %1336 = arith.mulf %1334, %1335 : vector<9x121xf32>
    %1337 = arith.addf %1332, %1336 : vector<9x121xf32>
    %c111_144 = arith.constant 111 : index
    %1338 = memref.load %arg5[%c111_144] : memref<144xf32, #tpu.memory_space<smem>>
    %1339 = vector.extract_strided_slice %750 {offsets = [2, 0], sizes = [9, 121], strides = [1, 1]} : vector<13x125xf32> to vector<9x121xf32>
    %1340 = vector.broadcast %1338 : f32 to vector<9x121xf32>
    %1341 = arith.mulf %1339, %1340 : vector<9x121xf32>
    %1342 = arith.addf %1337, %1341 : vector<9x121xf32>
    %c112_145 = arith.constant 112 : index
    %1343 = memref.load %arg5[%c112_145] : memref<144xf32, #tpu.memory_space<smem>>
    %1344 = vector.extract_strided_slice %750 {offsets = [2, 2], sizes = [9, 121], strides = [1, 1]} : vector<13x125xf32> to vector<9x121xf32>
    %1345 = vector.broadcast %1343 : f32 to vector<9x121xf32>
    %1346 = arith.mulf %1344, %1345 : vector<9x121xf32>
    %1347 = arith.addf %1342, %1346 : vector<9x121xf32>
    %c113_146 = arith.constant 113 : index
    %1348 = memref.load %arg5[%c113_146] : memref<144xf32, #tpu.memory_space<smem>>
    %1349 = vector.extract_strided_slice %750 {offsets = [2, 4], sizes = [9, 121], strides = [1, 1]} : vector<13x125xf32> to vector<9x121xf32>
    %1350 = vector.broadcast %1348 : f32 to vector<9x121xf32>
    %1351 = arith.mulf %1349, %1350 : vector<9x121xf32>
    %1352 = arith.addf %1347, %1351 : vector<9x121xf32>
    %c114_147 = arith.constant 114 : index
    %1353 = memref.load %arg5[%c114_147] : memref<144xf32, #tpu.memory_space<smem>>
    %1354 = vector.extract_strided_slice %750 {offsets = [4, 0], sizes = [9, 121], strides = [1, 1]} : vector<13x125xf32> to vector<9x121xf32>
    %1355 = vector.broadcast %1353 : f32 to vector<9x121xf32>
    %1356 = arith.mulf %1354, %1355 : vector<9x121xf32>
    %1357 = arith.addf %1352, %1356 : vector<9x121xf32>
    %c115_148 = arith.constant 115 : index
    %1358 = memref.load %arg5[%c115_148] : memref<144xf32, #tpu.memory_space<smem>>
    %1359 = vector.extract_strided_slice %750 {offsets = [4, 2], sizes = [9, 121], strides = [1, 1]} : vector<13x125xf32> to vector<9x121xf32>
    %1360 = vector.broadcast %1358 : f32 to vector<9x121xf32>
    %1361 = arith.mulf %1359, %1360 : vector<9x121xf32>
    %1362 = arith.addf %1357, %1361 : vector<9x121xf32>
    %c116_149 = arith.constant 116 : index
    %1363 = memref.load %arg5[%c116_149] : memref<144xf32, #tpu.memory_space<smem>>
    %1364 = vector.extract_strided_slice %750 {offsets = [4, 4], sizes = [9, 121], strides = [1, 1]} : vector<13x125xf32> to vector<9x121xf32>
    %1365 = vector.broadcast %1363 : f32 to vector<9x121xf32>
    %1366 = arith.mulf %1364, %1365 : vector<9x121xf32>
    %1367 = arith.addf %1362, %1366 : vector<9x121xf32>
    %c117_150 = arith.constant 117 : index
    %1368 = memref.load %arg5[%c117_150] : memref<144xf32, #tpu.memory_space<smem>>
    %1369 = vector.extract_strided_slice %757 {offsets = [0, 0], sizes = [9, 121], strides = [1, 1]} : vector<13x125xf32> to vector<9x121xf32>
    %1370 = vector.broadcast %1368 : f32 to vector<9x121xf32>
    %1371 = arith.mulf %1369, %1370 : vector<9x121xf32>
    %1372 = arith.addf %1367, %1371 : vector<9x121xf32>
    %c118_151 = arith.constant 118 : index
    %1373 = memref.load %arg5[%c118_151] : memref<144xf32, #tpu.memory_space<smem>>
    %1374 = vector.extract_strided_slice %757 {offsets = [0, 2], sizes = [9, 121], strides = [1, 1]} : vector<13x125xf32> to vector<9x121xf32>
    %1375 = vector.broadcast %1373 : f32 to vector<9x121xf32>
    %1376 = arith.mulf %1374, %1375 : vector<9x121xf32>
    %1377 = arith.addf %1372, %1376 : vector<9x121xf32>
    %c119_152 = arith.constant 119 : index
    %1378 = memref.load %arg5[%c119_152] : memref<144xf32, #tpu.memory_space<smem>>
    %1379 = vector.extract_strided_slice %757 {offsets = [0, 4], sizes = [9, 121], strides = [1, 1]} : vector<13x125xf32> to vector<9x121xf32>
    %1380 = vector.broadcast %1378 : f32 to vector<9x121xf32>
    %1381 = arith.mulf %1379, %1380 : vector<9x121xf32>
    %1382 = arith.addf %1377, %1381 : vector<9x121xf32>
    %c120_153 = arith.constant 120 : index
    %1383 = memref.load %arg5[%c120_153] : memref<144xf32, #tpu.memory_space<smem>>
    %1384 = vector.extract_strided_slice %757 {offsets = [2, 0], sizes = [9, 121], strides = [1, 1]} : vector<13x125xf32> to vector<9x121xf32>
    %1385 = vector.broadcast %1383 : f32 to vector<9x121xf32>
    %1386 = arith.mulf %1384, %1385 : vector<9x121xf32>
    %1387 = arith.addf %1382, %1386 : vector<9x121xf32>
    %c121_154 = arith.constant 121 : index
    %1388 = memref.load %arg5[%c121_154] : memref<144xf32, #tpu.memory_space<smem>>
    %1389 = vector.extract_strided_slice %757 {offsets = [2, 2], sizes = [9, 121], strides = [1, 1]} : vector<13x125xf32> to vector<9x121xf32>
    %1390 = vector.broadcast %1388 : f32 to vector<9x121xf32>
    %1391 = arith.mulf %1389, %1390 : vector<9x121xf32>
    %1392 = arith.addf %1387, %1391 : vector<9x121xf32>
    %c122_155 = arith.constant 122 : index
    %1393 = memref.load %arg5[%c122_155] : memref<144xf32, #tpu.memory_space<smem>>
    %1394 = vector.extract_strided_slice %757 {offsets = [2, 4], sizes = [9, 121], strides = [1, 1]} : vector<13x125xf32> to vector<9x121xf32>
    %1395 = vector.broadcast %1393 : f32 to vector<9x121xf32>
    %1396 = arith.mulf %1394, %1395 : vector<9x121xf32>
    %1397 = arith.addf %1392, %1396 : vector<9x121xf32>
    %c123_156 = arith.constant 123 : index
    %1398 = memref.load %arg5[%c123_156] : memref<144xf32, #tpu.memory_space<smem>>
    %1399 = vector.extract_strided_slice %757 {offsets = [4, 0], sizes = [9, 121], strides = [1, 1]} : vector<13x125xf32> to vector<9x121xf32>
    %1400 = vector.broadcast %1398 : f32 to vector<9x121xf32>
    %1401 = arith.mulf %1399, %1400 : vector<9x121xf32>
    %1402 = arith.addf %1397, %1401 : vector<9x121xf32>
    %c124_157 = arith.constant 124 : index
    %1403 = memref.load %arg5[%c124_157] : memref<144xf32, #tpu.memory_space<smem>>
    %1404 = vector.extract_strided_slice %757 {offsets = [4, 2], sizes = [9, 121], strides = [1, 1]} : vector<13x125xf32> to vector<9x121xf32>
    %1405 = vector.broadcast %1403 : f32 to vector<9x121xf32>
    %1406 = arith.mulf %1404, %1405 : vector<9x121xf32>
    %1407 = arith.addf %1402, %1406 : vector<9x121xf32>
    %c125_158 = arith.constant 125 : index
    %1408 = memref.load %arg5[%c125_158] : memref<144xf32, #tpu.memory_space<smem>>
    %1409 = vector.extract_strided_slice %757 {offsets = [4, 4], sizes = [9, 121], strides = [1, 1]} : vector<13x125xf32> to vector<9x121xf32>
    %1410 = vector.broadcast %1408 : f32 to vector<9x121xf32>
    %1411 = arith.mulf %1409, %1410 : vector<9x121xf32>
    %1412 = arith.addf %1407, %1411 : vector<9x121xf32>
    %c126_159 = arith.constant 126 : index
    %1413 = memref.load %arg5[%c126_159] : memref<144xf32, #tpu.memory_space<smem>>
    %1414 = vector.extract_strided_slice %764 {offsets = [0, 0], sizes = [9, 121], strides = [1, 1]} : vector<13x125xf32> to vector<9x121xf32>
    %1415 = vector.broadcast %1413 : f32 to vector<9x121xf32>
    %1416 = arith.mulf %1414, %1415 : vector<9x121xf32>
    %1417 = arith.addf %1412, %1416 : vector<9x121xf32>
    %c127_160 = arith.constant 127 : index
    %1418 = memref.load %arg5[%c127_160] : memref<144xf32, #tpu.memory_space<smem>>
    %1419 = vector.extract_strided_slice %764 {offsets = [0, 2], sizes = [9, 121], strides = [1, 1]} : vector<13x125xf32> to vector<9x121xf32>
    %1420 = vector.broadcast %1418 : f32 to vector<9x121xf32>
    %1421 = arith.mulf %1419, %1420 : vector<9x121xf32>
    %1422 = arith.addf %1417, %1421 : vector<9x121xf32>
    %c128_161 = arith.constant 128 : index
    %1423 = memref.load %arg5[%c128_161] : memref<144xf32, #tpu.memory_space<smem>>
    %1424 = vector.extract_strided_slice %764 {offsets = [0, 4], sizes = [9, 121], strides = [1, 1]} : vector<13x125xf32> to vector<9x121xf32>
    %1425 = vector.broadcast %1423 : f32 to vector<9x121xf32>
    %1426 = arith.mulf %1424, %1425 : vector<9x121xf32>
    %1427 = arith.addf %1422, %1426 : vector<9x121xf32>
    %c129_162 = arith.constant 129 : index
    %1428 = memref.load %arg5[%c129_162] : memref<144xf32, #tpu.memory_space<smem>>
    %1429 = vector.extract_strided_slice %764 {offsets = [2, 0], sizes = [9, 121], strides = [1, 1]} : vector<13x125xf32> to vector<9x121xf32>
    %1430 = vector.broadcast %1428 : f32 to vector<9x121xf32>
    %1431 = arith.mulf %1429, %1430 : vector<9x121xf32>
    %1432 = arith.addf %1427, %1431 : vector<9x121xf32>
    %c130_163 = arith.constant 130 : index
    %1433 = memref.load %arg5[%c130_163] : memref<144xf32, #tpu.memory_space<smem>>
    %1434 = vector.extract_strided_slice %764 {offsets = [2, 2], sizes = [9, 121], strides = [1, 1]} : vector<13x125xf32> to vector<9x121xf32>
    %1435 = vector.broadcast %1433 : f32 to vector<9x121xf32>
    %1436 = arith.mulf %1434, %1435 : vector<9x121xf32>
    %1437 = arith.addf %1432, %1436 : vector<9x121xf32>
    %c131_164 = arith.constant 131 : index
    %1438 = memref.load %arg5[%c131_164] : memref<144xf32, #tpu.memory_space<smem>>
    %1439 = vector.extract_strided_slice %764 {offsets = [2, 4], sizes = [9, 121], strides = [1, 1]} : vector<13x125xf32> to vector<9x121xf32>
    %1440 = vector.broadcast %1438 : f32 to vector<9x121xf32>
    %1441 = arith.mulf %1439, %1440 : vector<9x121xf32>
    %1442 = arith.addf %1437, %1441 : vector<9x121xf32>
    %c132_165 = arith.constant 132 : index
    %1443 = memref.load %arg5[%c132_165] : memref<144xf32, #tpu.memory_space<smem>>
    %1444 = vector.extract_strided_slice %764 {offsets = [4, 0], sizes = [9, 121], strides = [1, 1]} : vector<13x125xf32> to vector<9x121xf32>
    %1445 = vector.broadcast %1443 : f32 to vector<9x121xf32>
    %1446 = arith.mulf %1444, %1445 : vector<9x121xf32>
    %1447 = arith.addf %1442, %1446 : vector<9x121xf32>
    %c133_166 = arith.constant 133 : index
    %1448 = memref.load %arg5[%c133_166] : memref<144xf32, #tpu.memory_space<smem>>
    %1449 = vector.extract_strided_slice %764 {offsets = [4, 2], sizes = [9, 121], strides = [1, 1]} : vector<13x125xf32> to vector<9x121xf32>
    %1450 = vector.broadcast %1448 : f32 to vector<9x121xf32>
    %1451 = arith.mulf %1449, %1450 : vector<9x121xf32>
    %1452 = arith.addf %1447, %1451 : vector<9x121xf32>
    %c134_167 = arith.constant 134 : index
    %1453 = memref.load %arg5[%c134_167] : memref<144xf32, #tpu.memory_space<smem>>
    %1454 = vector.extract_strided_slice %764 {offsets = [4, 4], sizes = [9, 121], strides = [1, 1]} : vector<13x125xf32> to vector<9x121xf32>
    %1455 = vector.broadcast %1453 : f32 to vector<9x121xf32>
    %1456 = arith.mulf %1454, %1455 : vector<9x121xf32>
    %1457 = arith.addf %1452, %1456 : vector<9x121xf32>
    %c135_168 = arith.constant 135 : index
    %1458 = memref.load %arg5[%c135_168] : memref<144xf32, #tpu.memory_space<smem>>
    %1459 = vector.extract_strided_slice %771 {offsets = [0, 0], sizes = [9, 121], strides = [1, 1]} : vector<13x125xf32> to vector<9x121xf32>
    %1460 = vector.broadcast %1458 : f32 to vector<9x121xf32>
    %1461 = arith.mulf %1459, %1460 : vector<9x121xf32>
    %1462 = arith.addf %1457, %1461 : vector<9x121xf32>
    %c136_169 = arith.constant 136 : index
    %1463 = memref.load %arg5[%c136_169] : memref<144xf32, #tpu.memory_space<smem>>
    %1464 = vector.extract_strided_slice %771 {offsets = [0, 2], sizes = [9, 121], strides = [1, 1]} : vector<13x125xf32> to vector<9x121xf32>
    %1465 = vector.broadcast %1463 : f32 to vector<9x121xf32>
    %1466 = arith.mulf %1464, %1465 : vector<9x121xf32>
    %1467 = arith.addf %1462, %1466 : vector<9x121xf32>
    %c137_170 = arith.constant 137 : index
    %1468 = memref.load %arg5[%c137_170] : memref<144xf32, #tpu.memory_space<smem>>
    %1469 = vector.extract_strided_slice %771 {offsets = [0, 4], sizes = [9, 121], strides = [1, 1]} : vector<13x125xf32> to vector<9x121xf32>
    %1470 = vector.broadcast %1468 : f32 to vector<9x121xf32>
    %1471 = arith.mulf %1469, %1470 : vector<9x121xf32>
    %1472 = arith.addf %1467, %1471 : vector<9x121xf32>
    %c138_171 = arith.constant 138 : index
    %1473 = memref.load %arg5[%c138_171] : memref<144xf32, #tpu.memory_space<smem>>
    %1474 = vector.extract_strided_slice %771 {offsets = [2, 0], sizes = [9, 121], strides = [1, 1]} : vector<13x125xf32> to vector<9x121xf32>
    %1475 = vector.broadcast %1473 : f32 to vector<9x121xf32>
    %1476 = arith.mulf %1474, %1475 : vector<9x121xf32>
    %1477 = arith.addf %1472, %1476 : vector<9x121xf32>
    %c139_172 = arith.constant 139 : index
    %1478 = memref.load %arg5[%c139_172] : memref<144xf32, #tpu.memory_space<smem>>
    %1479 = vector.extract_strided_slice %771 {offsets = [2, 2], sizes = [9, 121], strides = [1, 1]} : vector<13x125xf32> to vector<9x121xf32>
    %1480 = vector.broadcast %1478 : f32 to vector<9x121xf32>
    %1481 = arith.mulf %1479, %1480 : vector<9x121xf32>
    %1482 = arith.addf %1477, %1481 : vector<9x121xf32>
    %c140_173 = arith.constant 140 : index
    %1483 = memref.load %arg5[%c140_173] : memref<144xf32, #tpu.memory_space<smem>>
    %1484 = vector.extract_strided_slice %771 {offsets = [2, 4], sizes = [9, 121], strides = [1, 1]} : vector<13x125xf32> to vector<9x121xf32>
    %1485 = vector.broadcast %1483 : f32 to vector<9x121xf32>
    %1486 = arith.mulf %1484, %1485 : vector<9x121xf32>
    %1487 = arith.addf %1482, %1486 : vector<9x121xf32>
    %c141_174 = arith.constant 141 : index
    %1488 = memref.load %arg5[%c141_174] : memref<144xf32, #tpu.memory_space<smem>>
    %1489 = vector.extract_strided_slice %771 {offsets = [4, 0], sizes = [9, 121], strides = [1, 1]} : vector<13x125xf32> to vector<9x121xf32>
    %1490 = vector.broadcast %1488 : f32 to vector<9x121xf32>
    %1491 = arith.mulf %1489, %1490 : vector<9x121xf32>
    %1492 = arith.addf %1487, %1491 : vector<9x121xf32>
    %c142_175 = arith.constant 142 : index
    %1493 = memref.load %arg5[%c142_175] : memref<144xf32, #tpu.memory_space<smem>>
    %1494 = vector.extract_strided_slice %771 {offsets = [4, 2], sizes = [9, 121], strides = [1, 1]} : vector<13x125xf32> to vector<9x121xf32>
    %1495 = vector.broadcast %1493 : f32 to vector<9x121xf32>
    %1496 = arith.mulf %1494, %1495 : vector<9x121xf32>
    %1497 = arith.addf %1492, %1496 : vector<9x121xf32>
    %c143_176 = arith.constant 143 : index
    %1498 = memref.load %arg5[%c143_176] : memref<144xf32, #tpu.memory_space<smem>>
    %1499 = vector.extract_strided_slice %771 {offsets = [4, 4], sizes = [9, 121], strides = [1, 1]} : vector<13x125xf32> to vector<9x121xf32>
    %1500 = vector.broadcast %1498 : f32 to vector<9x121xf32>
    %1501 = arith.mulf %1499, %1500 : vector<9x121xf32>
    %1502 = arith.addf %1497, %1501 : vector<9x121xf32>
    %c3_177 = arith.constant 3 : index
    %1503 = memref.load %arg6[%c3_177] : memref<4xf32, #tpu.memory_space<smem>>
    %1504 = vector.broadcast %1503 : f32 to vector<9x121xf32>
    %1505 = arith.addf %1502, %1504 : vector<9x121xf32>
    %cst_178 = arith.constant 0.000000e+00 : f32
    %1506 = vector.broadcast %cst_178 : f32 to vector<9x121xf32>
    %1507 = arith.maximumf %1505, %1506 : vector<9x121xf32>
    %1508 = arith.maximumf %955, %1139 : vector<9x121xf32>
    %1509 = arith.maximumf %1508, %1323 : vector<9x121xf32>
    %1510 = arith.maximumf %1509, %1507 : vector<9x121xf32>
    %1511 = vector.extract_strided_slice %1510 {offsets = [0, 0], sizes = [1, 121], strides = [1, 1]} : vector<9x121xf32> to vector<1x121xf32>
    %1512 = vector.extract_strided_slice %1510 {offsets = [2, 0], sizes = [1, 121], strides = [1, 1]} : vector<9x121xf32> to vector<1x121xf32>
    %1513 = arith.maximumf %1511, %1512 : vector<1x121xf32>
    %1514 = vector.extract_strided_slice %1510 {offsets = [4, 0], sizes = [1, 121], strides = [1, 1]} : vector<9x121xf32> to vector<1x121xf32>
    %1515 = arith.maximumf %1513, %1514 : vector<1x121xf32>
    %1516 = vector.extract_strided_slice %1510 {offsets = [6, 0], sizes = [1, 121], strides = [1, 1]} : vector<9x121xf32> to vector<1x121xf32>
    %1517 = arith.maximumf %1515, %1516 : vector<1x121xf32>
    %1518 = vector.extract_strided_slice %1510 {offsets = [8, 0], sizes = [1, 121], strides = [1, 1]} : vector<9x121xf32> to vector<1x121xf32>
    %1519 = arith.maximumf %1517, %1518 : vector<1x121xf32>
    %1520 = vector.extract_strided_slice %1519 {offsets = [0, 0], sizes = [1, 113], strides = [1, 1]} : vector<1x121xf32> to vector<1x113xf32>
    %1521 = vector.extract_strided_slice %1519 {offsets = [0, 2], sizes = [1, 113], strides = [1, 1]} : vector<1x121xf32> to vector<1x113xf32>
    %1522 = arith.maximumf %1520, %1521 : vector<1x113xf32>
    %c0_179 = arith.constant 0 : index
    %c0_180 = arith.constant 0 : index
    %c0_181 = arith.constant 0 : index
    %1523 = vector.load %arg2[%c0_179, %c0_180, %c0_181] : memref<4x113x32xf32, #tpu.memory_space<vmem>>, vector<1x113x32xf32>
    %1524 = vector.shape_cast %1523 : vector<1x113x32xf32> to vector<113x32xf32>
    %cst_182 = arith.constant dense<0.000000e+00> : vector<1x32xf32>
    %1525 = tpu.matmul %1522, %1524, %cst_182 {dimension_numbers = #tpu.dot_dimension_numbers<[1], [0], [0], [1], [0, 0, 1, 1], [], []>} : vector<1x113xf32>, vector<113x32xf32>, vector<1x32xf32> -> vector<1x32xf32>
    %1526 = vector.extract_strided_slice %1519 {offsets = [0, 2], sizes = [1, 113], strides = [1, 1]} : vector<1x121xf32> to vector<1x113xf32>
    %1527 = vector.extract_strided_slice %1519 {offsets = [0, 4], sizes = [1, 113], strides = [1, 1]} : vector<1x121xf32> to vector<1x113xf32>
    %1528 = arith.maximumf %1526, %1527 : vector<1x113xf32>
    %c1_183 = arith.constant 1 : index
    %c0_184 = arith.constant 0 : index
    %c0_185 = arith.constant 0 : index
    %1529 = vector.load %arg2[%c1_183, %c0_184, %c0_185] : memref<4x113x32xf32, #tpu.memory_space<vmem>>, vector<1x113x32xf32>
    %1530 = vector.shape_cast %1529 : vector<1x113x32xf32> to vector<113x32xf32>
    %cst_186 = arith.constant dense<0.000000e+00> : vector<1x32xf32>
    %1531 = tpu.matmul %1528, %1530, %cst_186 {dimension_numbers = #tpu.dot_dimension_numbers<[1], [0], [0], [1], [0, 0, 1, 1], [], []>} : vector<1x113xf32>, vector<113x32xf32>, vector<1x32xf32> -> vector<1x32xf32>
    %1532 = arith.addf %1525, %1531 : vector<1x32xf32>
    %1533 = vector.extract_strided_slice %1519 {offsets = [0, 4], sizes = [1, 113], strides = [1, 1]} : vector<1x121xf32> to vector<1x113xf32>
    %1534 = vector.extract_strided_slice %1519 {offsets = [0, 6], sizes = [1, 113], strides = [1, 1]} : vector<1x121xf32> to vector<1x113xf32>
    %1535 = arith.maximumf %1533, %1534 : vector<1x113xf32>
    %c2_187 = arith.constant 2 : index
    %c0_188 = arith.constant 0 : index
    %c0_189 = arith.constant 0 : index
    %1536 = vector.load %arg2[%c2_187, %c0_188, %c0_189] : memref<4x113x32xf32, #tpu.memory_space<vmem>>, vector<1x113x32xf32>
    %1537 = vector.shape_cast %1536 : vector<1x113x32xf32> to vector<113x32xf32>
    %cst_190 = arith.constant dense<0.000000e+00> : vector<1x32xf32>
    %1538 = tpu.matmul %1535, %1537, %cst_190 {dimension_numbers = #tpu.dot_dimension_numbers<[1], [0], [0], [1], [0, 0, 1, 1], [], []>} : vector<1x113xf32>, vector<113x32xf32>, vector<1x32xf32> -> vector<1x32xf32>
    %1539 = arith.addf %1532, %1538 : vector<1x32xf32>
    %1540 = vector.extract_strided_slice %1519 {offsets = [0, 6], sizes = [1, 113], strides = [1, 1]} : vector<1x121xf32> to vector<1x113xf32>
    %1541 = vector.extract_strided_slice %1519 {offsets = [0, 8], sizes = [1, 113], strides = [1, 1]} : vector<1x121xf32> to vector<1x113xf32>
    %1542 = arith.maximumf %1540, %1541 : vector<1x113xf32>
    %c3_191 = arith.constant 3 : index
    %c0_192 = arith.constant 0 : index
    %c0_193 = arith.constant 0 : index
    %1543 = vector.load %arg2[%c3_191, %c0_192, %c0_193] : memref<4x113x32xf32, #tpu.memory_space<vmem>>, vector<1x113x32xf32>
    %1544 = vector.shape_cast %1543 : vector<1x113x32xf32> to vector<113x32xf32>
    %cst_194 = arith.constant dense<0.000000e+00> : vector<1x32xf32>
    %1545 = tpu.matmul %1542, %1544, %cst_194 {dimension_numbers = #tpu.dot_dimension_numbers<[1], [0], [0], [1], [0, 0, 1, 1], [], []>} : vector<1x113xf32>, vector<113x32xf32>, vector<1x32xf32> -> vector<1x32xf32>
    %1546 = arith.addf %1539, %1545 : vector<1x32xf32>
    %c0_195 = arith.constant 0 : index
    %c0_196 = arith.constant 0 : index
    %c0_197 = arith.constant 0 : index
    %1547 = vector.load %arg7[%c0_195, %c0_196, %c0_197] : memref<1x1x32xf32, #tpu.memory_space<vmem>>, vector<1x1x32xf32>
    %1548 = vector.shape_cast %1547 : vector<1x1x32xf32> to vector<1x32xf32>
    %1549 = vector.shape_cast %1546 : vector<1x32xf32> to vector<1x1x32xf32>
    tpu.vector_store %arg7[%c0_195, %c0_196, %c0_197], %1549 {strides = array<i32>} : memref<1x1x32xf32, #tpu.memory_space<vmem>>, vector<1x1x32xf32>,
    return
  }
  func.func @transform_0(%arg0: i32) -> (i32, i32, i32, i32, i32) {
    %c0_i32 = arith.constant 0 : i32
    %c0_i32_0 = arith.constant 0 : i32
    %c0_i32_1 = arith.constant 0 : i32
    %c0_i32_2 = arith.constant 0 : i32
    %c0_i32_3 = arith.constant 0 : i32
    return %arg0, %c0_i32, %c0_i32_0, %c0_i32_1, %c0_i32_2 : i32, i32, i32, i32, i32
  }
  func.func @transform_1(%arg0: i32) -> (i32, i32, i32) {
    %c0_i32 = arith.constant 0 : i32
    %c0_i32_0 = arith.constant 0 : i32
    %c0_i32_1 = arith.constant 0 : i32
    %c0_i32_2 = arith.constant 0 : i32
    return %c0_i32, %c0_i32_0, %c0_i32_1 : i32, i32, i32
  }
  func.func @transform_2(%arg0: i32) -> i32 {
    %c0_i32 = arith.constant 0 : i32
    %c0_i32_0 = arith.constant 0 : i32
    return %c0_i32 : i32
  }
  func.func @transform_3(%arg0: i32) -> i32 {
    %c0_i32 = arith.constant 0 : i32
    %c0_i32_0 = arith.constant 0 : i32
    return %c0_i32 : i32
  }
  func.func @transform_4(%arg0: i32) -> i32 {
    %c0_i32 = arith.constant 0 : i32
    %c0_i32_0 = arith.constant 0 : i32
    return %c0_i32 : i32
  }
  func.func @transform_5(%arg0: i32) -> i32 {
    %c0_i32 = arith.constant 0 : i32
    %c0_i32_0 = arith.constant 0 : i32
    return %c0_i32 : i32
  }
  func.func @transform_6(%arg0: i32) -> (i32, i32, i32) {
    %c0_i32 = arith.constant 0 : i32
    %c0_i32_0 = arith.constant 0 : i32
    %c0_i32_1 = arith.constant 0 : i32
    return %arg0, %c0_i32, %c0_i32_0 : i32, i32, i32
  }
}

</mosaic_0001>

<llo_original>
// kernel: tpu_custom_call.1
$region0: #{tpu_custom_call.1}
  #allocation0 [shape = 'u32[]', space=smem, size = 0x4, offset = 0x4, fixed_abs, tag = 'smem constant byte address 0x4 - core index']
  #allocation1 [shape = 'u32[144,128]{1,0:T(1,128)}', space=vmem, size = 0x12000, scoped, tag = 'internal scratch']
  %s0 = inlined_call_operand.vmem [shape: f32[1,1,4,16,128], index: 0, kind: input, shape index: {}]
  %s1 = inlined_call_operand.vmem [shape: f32[4,113,32], index: 1, kind: input, shape index: {}]
  %s2 = inlined_call_operand.vmem [shape: f32[144], index: 2, kind: input, shape index: {}]
  %s3 = inlined_call_operand.vmem [shape: f32[4], index: 3, kind: input, shape index: {}]
  %s4 = inlined_call_operand.vmem [shape: f32[144], index: 4, kind: input, shape index: {}]
  %s5 = inlined_call_operand.vmem [shape: f32[4], index: 5, kind: input, shape index: {}]
  %s6 = inlined_call_operand.hbm [shape: f32[1,1,32], index: 6, kind: output, shape index: {}]
  %s7 = sld [smem:[#allocation0]]
  $region50: #{tpu_custom_call.1} parent=0
    _
  %s9 = ssub.s32 1, %s7
  %s10 = scalar_select 0, %s9, %s7
  $region1: #{tpu_custom_call.1} parent=0
    #allocation2 [shape = 'u8[1024]{0}', space=smem, size = 0x400, scoped, tag = 'input window, operand 2, single buffered']
    #allocation3 [shape = 's32[1]{0}', space=sflag, size = 0x4, scoped, tag = 'scoped memory for tpu_custom_call.1']
    #allocation4 [shape = 's32[1]{0}', space=sflag, size = 0x4, scoped, tag = 'scoped memory for tpu_custom_call.1']
    #allocation5 [shape = 'u8[512]{0}', space=smem, size = 0x200, scoped, tag = 'input window, operand 3, single buffered']
    #allocation6 [shape = 's32[1]{0}', space=sflag, size = 0x4, scoped, tag = 'scoped memory for tpu_custom_call.1']
    #allocation7 [shape = 'u8[1024]{0}', space=smem, size = 0x400, scoped, tag = 'input window, operand 4, single buffered']
    #allocation8 [shape = 'u8[512]{0}', space=smem, size = 0x200, scoped, tag = 'input window, operand 5, single buffered']
    #allocation9 [shape = 's32[1]{0}', space=sflag, size = 0x4, scoped, tag = 'scoped memory for tpu_custom_call.1']
    #allocation10 [shape = 'u8[512]{0}', space=vmem, size = 0x400, scoped, tag = 'output window, operand 0, single buffered']
    %11 = vsyncpa [#allocation4], 0
    %12 = vsyncpa [#allocation6], 0
    %13 = vsyncpa [#allocation9], 0
    %14 = vsyncpa [#allocation3], 0
    // Predicated region
    $region2: #{tpu_custom_call.1} parent=1 // pred_check
      _
    $region3: #{tpu_custom_call.1} parent=1 // pred_check_branch
      %16 = sbr.rel (0) target = $region5
    $region4: #{tpu_custom_call.1} parent=1 // pred_region
      _
    $region5: #{tpu_custom_call.1} parent=1 // pred_fallthru
      _
    // Predicated region
    $region6: #{tpu_custom_call.1} parent=1 // pred_check
      _
    $region7: #{tpu_custom_call.1} parent=1 // pred_check_branch
      %18 = sbr.rel (0) target = $region9
    $region8: #{tpu_custom_call.1} parent=1 // pred_region
      _
    $region9: #{tpu_custom_call.1} parent=1 // pred_fallthru
      _
    // Predicated region
    $region10: #{tpu_custom_call.1} parent=1 // pred_check
      _
    $region11: #{tpu_custom_call.1} parent=1 // pred_check_branch
      %20 = sbr.rel (0) target = $region13
    $region12: #{tpu_custom_call.1} parent=1 // pred_region
      %s22 = ssub.s32 32, 32
      %23 = vsyncadd [#allocation4], %s22
      %s25 = sshll.u32 %s2, 4
      %s26 = int_to_ptr.vmem [resolvable:$true] %s25
      %28 = dma.vmem_to_smem %s26, 32, [#allocation2], [#allocation4]
    $region13: #{tpu_custom_call.1} parent=1 // pred_fallthru
      _
    // Predicated region
    $region14: #{tpu_custom_call.1} parent=1 // pred_check
      _
    $region15: #{tpu_custom_call.1} parent=1 // pred_check_branch
      %30 = sbr.rel (0) target = $region17
    $region16: #{tpu_custom_call.1} parent=1 // pred_region
      %s32 = ssub.s32 16, 16
      %33 = vsyncadd [#allocation6], %s32
      %s35 = sshll.u32 %s3, 4
      %s36 = int_to_ptr.vmem [resolvable:$true] %s35
      %38 = dma.vmem_to_smem %s36, 16, [#allocation5], [#allocation6]
    $region17: #{tpu_custom_call.1} parent=1 // pred_fallthru
      _
    // Predicated region
    $region18: #{tpu_custom_call.1} parent=1 // pred_check
      _
    $region19: #{tpu_custom_call.1} parent=1 // pred_check_branch
      %40 = sbr.rel (0) target = $region21
    $region20: #{tpu_custom_call.1} parent=1 // pred_region
      %s42 = ssub.s32 32, 32
      %43 = vsyncadd [#allocation6], %s42
      %s45 = sshll.u32 %s4, 4
      %s46 = int_to_ptr.vmem [resolvable:$true] %s45
      %48 = dma.vmem_to_smem %s46, 32, [#allocation7], [#allocation6]
    $region21: #{tpu_custom_call.1} parent=1 // pred_fallthru
      _
    // Predicated region
    $region22: #{tpu_custom_call.1} parent=1 // pred_check
      _
    $region23: #{tpu_custom_call.1} parent=1 // pred_check_branch
      %50 = sbr.rel (0) target = $region25
    $region24: #{tpu_custom_call.1} parent=1 // pred_region
      %s52 = ssub.s32 16, 16
      %53 = vsyncadd [#allocation9], %s52
      %s55 = sshll.u32 %s5, 4
      %s56 = int_to_ptr.vmem [resolvable:$true] %s55
      %58 = dma.vmem_to_smem %s56, 16, [#allocation8], [#allocation9]
    $region25: #{tpu_custom_call.1} parent=1 // pred_fallthru
      _
    // Predicated region
    $region26: #{tpu_custom_call.1} parent=1 // pred_check
      _
    $region27: #{tpu_custom_call.1} parent=1 // pred_check_branch
      %60 = sbr.rel (0) target = $region29
    $region28: #{tpu_custom_call.1} parent=1 // pred_region
      %61 = dma.done [#allocation4], 32
    $region29: #{tpu_custom_call.1} parent=1 // pred_fallthru
      _
    // Predicated region
    $region30: #{tpu_custom_call.1} parent=1 // pred_check
      _
    $region31: #{tpu_custom_call.1} parent=1 // pred_check_branch
      %63 = sbr.rel (0) target = $region33
    $region32: #{tpu_custom_call.1} parent=1 // pred_region
      %64 = dma.done [#allocation6], 16
    $region33: #{tpu_custom_call.1} parent=1 // pred_fallthru
      _
    // Predicated region
    $region34: #{tpu_custom_call.1} parent=1 // pred_check
      _
    $region35: #{tpu_custom_call.1} parent=1 // pred_check_branch
      %66 = sbr.rel (0) target = $region37
    $region36: #{tpu_custom_call.1} parent=1 // pred_region
      %67 = dma.done [#allocation6], 32
    $region37: #{tpu_custom_call.1} parent=1 // pred_fallthru
      _
    // Predicated region
    $region38: #{tpu_custom_call.1} parent=1 // pred_check
      _
    $region39: #{tpu_custom_call.1} parent=1 // pred_check_branch
      %69 = sbr.rel (0) target = $region41
    $region40: #{tpu_custom_call.1} parent=1 // pred_region
      %70 = dma.done [#allocation9], 16
    $region41: #{tpu_custom_call.1} parent=1 // pred_fallthru
      _
    %71 = sfence
    %v72 = vld [vmem:[%s0] sm:$0xff]
    %v73 = vld [vmem:[%s0 + $0x8] sm:$0xff]
    %s74 = scalar_lea.vmem %s0, 16
    %v75 = vld [vmem:[%s74] sm:$0xff]
    %v76 = vld [vmem:[%s74 + $0x8] sm:$0xff]
    %s77 = scalar_lea.vmem %s0, 32
    %v78 = vld [vmem:[%s77] sm:$0xff]
    %v79 = vld [vmem:[%s77 + $0x8] sm:$0xff]
    %s80 = scalar_lea.vmem %s0, 48
    %v81 = vld [vmem:[%s80] sm:$0xff]
    %v82 = vld [vmem:[%s80 + $0x8] sm:$0xff]
    %s83 = sld [smem:[#allocation2]]
    %v84 = vstv %s83
    %v85 = vmul.f32 %v72, %v84
    %v86 = vmul.f32 %v73, %v84
    %s87 = sld [smem:[#allocation2 + $0x1]]
    %v88 = vstv %s87
    %v89 = vmul.f32 %v72, %v88
    %v90 = vmul.f32 %v73, %v88
    %93 = vrot.lane.b32.xlu0 %v89, 127
    %v94 = vpop.permute.xlu0 %93
    %95 = vrot.lane.b32.xlu0 %v90, 127
    %v96 = vpop.permute.xlu0 %95
    %v99 = vadd.f32 %v85, %v94
    %v100 = vadd.f32 %v86, %v96
    %s101 = sld [smem:[#allocation2 + $0x2]]
    %v102 = vstv %s101
    %v103 = vmul.f32 %v72, %v102
    %v104 = vmul.f32 %v73, %v102
    %107 = vrot.lane.b32.xlu0 %v103, 126
    %v108 = vpop.permute.xlu0 %107
    %109 = vrot.lane.b32.xlu0 %v104, 126
    %v110 = vpop.permute.xlu0 %109
    %v113 = vadd.f32 %v99, %v108
    %v114 = vadd.f32 %v100, %v110
    %s115 = sld [smem:[#allocation2 + $0x3]]
    %v116 = vstv %s115
    %v117 = vmul.f32 %v72, %v116
    %v118 = vmul.f32 %v73, %v116
    %vm121 = vcmask 1046528
    %v122 = vrot.slane %v117, 1
    %v123 = vrot.slane %v118, 1
    %v124 = vsel %vm121, %v122, %v123
    %v127 = vadd.f32 %v113, %v124
    %v128 = vadd.f32 %v114, %v123
    %s129 = sld [smem:[#allocation2 + $0x4]]
    %v130 = vstv %s129
    %v131 = vmul.f32 %v72, %v130
    %v132 = vmul.f32 %v73, %v130
    %v135 = vrot.slane %v131, 1
    %v136 = vrot.slane %v132, 1
    %v137 = vsel %vm121, %v135, %v136
    %138 = vrot.lane.b32.xlu0 %v137, 127
    %v139 = vpop.permute.xlu0 %138
    %140 = vrot.lane.b32.xlu0 %v136, 127
    %v141 = vpop.permute.xlu0 %140
    %v144 = vadd.f32 %v127, %v139
    %v145 = vadd.f32 %v128, %v141
    %s146 = sld [smem:[#allocation2 + $0x5]]
    %v147 = vstv %s146
    %v148 = vmul.f32 %v72, %v147
    %v149 = vmul.f32 %v73, %v147
    %v152 = vrot.slane %v148, 1
    %v153 = vrot.slane %v149, 1
    %v154 = vsel %vm121, %v152, %v153
    %155 = vrot.lane.b32.xlu0 %v154, 126
    %v156 = vpop.permute.xlu0 %155
    %157 = vrot.lane.b32.xlu0 %v153, 126
    %v158 = vpop.permute.xlu0 %157
    %v161 = vadd.f32 %v144, %v156
    %v162 = vadd.f32 %v145, %v158
    %s163 = sld [smem:[#allocation2 + $0x6]]
    %v164 = vstv %s163
    %v165 = vmul.f32 %v72, %v164
    %v166 = vmul.f32 %v73, %v164
    %vm169 = vcmask 1045504
    %v170 = vrot.slane %v165, 2
    %v171 = vrot.slane %v166, 2
    %v172 = vsel %vm169, %v170, %v171
    %v175 = vadd.f32 %v161, %v172
    %v176 = vadd.f32 %v162, %v171
    %s177 = sld [smem:[#allocation2 + $0x7]]
    %v178 = vstv %s177
    %v179 = vmul.f32 %v72, %v178
    %v180 = vmul.f32 %v73, %v178
    %v183 = vrot.slane %v179, 2
    %v184 = vrot.slane %v180, 2
    %v185 = vsel %vm169, %v183, %v184
    %186 = vrot.lane.b32.xlu0 %v185, 127
    %v187 = vpop.permute.xlu0 %186
    %188 = vrot.lane.b32.xlu0 %v184, 127
    %v189 = vpop.permute.xlu0 %188
    %v192 = vadd.f32 %v175, %v187
    %v193 = vadd.f32 %v176, %v189
    %s194 = sld [smem:[#allocation2 + $0x8]]
    %v195 = vstv %s194
    %v196 = vmul.f32 %v72, %v195
    %v197 = vmul.f32 %v73, %v195
    %v200 = vrot.slane %v196, 2
    %v201 = vrot.slane %v197, 2
    %v202 = vsel %vm169, %v200, %v201
    %203 = vrot.lane.b32.xlu0 %v202, 126
    %v204 = vpop.permute.xlu0 %203
    %205 = vrot.lane.b32.xlu0 %v201, 126
    %v206 = vpop.permute.xlu0 %205
    %v209 = vadd.f32 %v192, %v204
    %v210 = vadd.f32 %v193, %v206
    %s211 = sld [smem:[#allocation2 + $0x9]]
    %v212 = vstv %s211
    %v213 = vmul.f32 %v75, %v212
    %v214 = vmul.f32 %v76, %v212
    %v215 = vadd.f32 %v209, %v213
    %v216 = vadd.f32 %v210, %v214
    %s217 = sld [smem:[#allocation2 + $0xa]]
    %v218 = vstv %s217
    %v219 = vmul.f32 %v75, %v218
    %v220 = vmul.f32 %v76, %v218
    %223 = vrot.lane.b32.xlu0 %v219, 127
    %v224 = vpop.permute.xlu0 %223
    %225 = vrot.lane.b32.xlu0 %v220, 127
    %v226 = vpop.permute.xlu0 %225
    %v229 = vadd.f32 %v215, %v224
    %v230 = vadd.f32 %v216, %v226
    %s231 = sld [smem:[#allocation2 + $0xb]]
    %v232 = vstv %s231
    %v233 = vmul.f32 %v75, %v232
    %v234 = vmul.f32 %v76, %v232
    %237 = vrot.lane.b32.xlu0 %v233, 126
    %v238 = vpop.permute.xlu0 %237
    %239 = vrot.lane.b32.xlu0 %v234, 126
    %v240 = vpop.permute.xlu0 %239
    %v243 = vadd.f32 %v229, %v238
    %v244 = vadd.f32 %v230, %v240
    %s245 = sld [smem:[#allocation2 + $0xc]]
    %v246 = vstv %s245
    %v247 = vmul.f32 %v75, %v246
    %v248 = vmul.f32 %v76, %v246
    %v251 = vrot.slane %v247, 1
    %v252 = vrot.slane %v248, 1
    %v253 = vsel %vm121, %v251, %v252
    %v256 = vadd.f32 %v243, %v253
    %v257 = vadd.f32 %v244, %v252
    %s258 = sld [smem:[#allocation2 + $0xd]]
    %v259 = vstv %s258
    %v260 = vmul.f32 %v75, %v259
    %v261 = vmul.f32 %v76, %v259
    %v264 = vrot.slane %v260, 1
    %v265 = vrot.slane %v261, 1
    %v266 = vsel %vm121, %v264, %v265
    %267 = vrot.lane.b32.xlu0 %v266, 127
    %v268 = vpop.permute.xlu0 %267
    %269 = vrot.lane.b32.xlu0 %v265, 127
    %v270 = vpop.permute.xlu0 %269
    %v273 = vadd.f32 %v256, %v268
    %v274 = vadd.f32 %v257, %v270
    %s275 = sld [smem:[#allocation2 + $0xe]]
    %v276 = vstv %s275
    %v277 = vmul.f32 %v75, %v276
    %v278 = vmul.f32 %v76, %v276
    %v281 = vrot.slane %v277, 1
    %v282 = vrot.slane %v278, 1
    %v283 = vsel %vm121, %v281, %v282
    %284 = vrot.lane.b32.xlu0 %v283, 126
    %v285 = vpop.permute.xlu0 %284
    %286 = vrot.lane.b32.xlu0 %v282, 126
    %v287 = vpop.permute.xlu0 %286
    %v290 = vadd.f32 %v273, %v285
    %v291 = vadd.f32 %v274, %v287
    %s292 = sld [smem:[#allocation2 + $0xf]]
    %v293 = vstv %s292
    %v294 = vmul.f32 %v75, %v293
    %v295 = vmul.f32 %v76, %v293
    %v298 = vrot.slane %v294, 2
    %v299 = vrot.slane %v295, 2
    %v300 = vsel %vm169, %v298, %v299
    %v303 = vadd.f32 %v290, %v300
    %v304 = vadd.f32 %v291, %v299
    %s305 = sld [smem:[#allocation2 + $0x10]]
    %v306 = vstv %s305
    %v307 = vmul.f32 %v75, %v306
    %v308 = vmul.f32 %v76, %v306
    %v311 = vrot.slane %v307, 2
    %v312 = vrot.slane %v308, 2
    %v313 = vsel %vm169, %v311, %v312
    %314 = vrot.lane.b32.xlu0 %v313, 127
    %v315 = vpop.permute.xlu0 %314
    %316 = vrot.lane.b32.xlu0 %v312, 127
    %v317 = vpop.permute.xlu0 %316
    %v320 = vadd.f32 %v303, %v315
    %v321 = vadd.f32 %v304, %v317
    %s322 = sld [smem:[#allocation2 + $0x11]]
    %v323 = vstv %s322
    %v324 = vmul.f32 %v75, %v323
    %v325 = vmul.f32 %v76, %v323
    %v328 = vrot.slane %v324, 2
    %v329 = vrot.slane %v325, 2
    %v330 = vsel %vm169, %v328, %v329
    %331 = vrot.lane.b32.xlu0 %v330, 126
    %v332 = vpop.permute.xlu0 %331
    %333 = vrot.lane.b32.xlu0 %v329, 126
    %v334 = vpop.permute.xlu0 %333
    %v337 = vadd.f32 %v320, %v332
    %v338 = vadd.f32 %v321, %v334
    %s339 = sld [smem:[#allocation2 + $0x12]]
    %v340 = vstv %s339
    %v341 = vmul.f32 %v78, %v340
    %v342 = vmul.f32 %v79, %v340
    %v343 = vadd.f32 %v337, %v341
    %v344 = vadd.f32 %v338, %v342
    %s345 = sld [smem:[#allocation2 + $0x13]]
    %v346 = vstv %s345
    %v347 = vmul.f32 %v78, %v346
    %v348 = vmul.f32 %v79, %v346
    %351 = vrot.lane.b32.xlu0 %v347, 127
    %v352 = vpop.permute.xlu0 %351
    %353 = vrot.lane.b32.xlu0 %v348, 127
    %v354 = vpop.permute.xlu0 %353
    %v357 = vadd.f32 %v343, %v352
    %v358 = vadd.f32 %v344, %v354
    %s359 = sld [smem:[#allocation2 + $0x14]]
    %v360 = vstv %s359
    %v361 = vmul.f32 %v78, %v360
    %v362 = vmul.f32 %v79, %v360
    %365 = vrot.lane.b32.xlu0 %v361, 126
    %v366 = vpop.permute.xlu0 %365
    %367 = vrot.lane.b32.xlu0 %v362, 126
    %v368 = vpop.permute.xlu0 %367
    %v371 = vadd.f32 %v357, %v366
    %v372 = vadd.f32 %v358, %v368
    %s373 = sld [smem:[#allocation2 + $0x15]]
    %v374 = vstv %s373
    %v375 = vmul.f32 %v78, %v374
    %v376 = vmul.f32 %v79, %v374
    %v379 = vrot.slane %v375, 1
    %v380 = vrot.slane %v376, 1
    %v381 = vsel %vm121, %v379, %v380
    %v384 = vadd.f32 %v371, %v381
    %v385 = vadd.f32 %v372, %v380
    %s386 = sld [smem:[#allocation2 + $0x16]]
    %v387 = vstv %s386
    %v388 = vmul.f32 %v78, %v387
    %v389 = vmul.f32 %v79, %v387
    %v392 = vrot.slane %v388, 1
    %v393 = vrot.slane %v389, 1
    %v394 = vsel %vm121, %v392, %v393
    %395 = vrot.lane.b32.xlu0 %v394, 127
    %v396 = vpop.permute.xlu0 %395
    %397 = vrot.lane.b32.xlu0 %v393, 127
    %v398 = vpop.permute.xlu0 %397
    %v401 = vadd.f32 %v384, %v396
    %v402 = vadd.f32 %v385, %v398
    %s403 = sld [smem:[#allocation2 + $0x17]]
    %v404 = vstv %s403
    %v405 = vmul.f32 %v78, %v404
    %v406 = vmul.f32 %v79, %v404
    %v409 = vrot.slane %v405, 1
    %v410 = vrot.slane %v406, 1
    %v411 = vsel %vm121, %v409, %v410
    %412 = vrot.lane.b32.xlu0 %v411, 126
    %v413 = vpop.permute.xlu0 %412
    %414 = vrot.lane.b32.xlu0 %v410, 126
    %v415 = vpop.permute.xlu0 %414
    %v418 = vadd.f32 %v401, %v413
    %v419 = vadd.f32 %v402, %v415
    %s420 = sld [smem:[#allocation2 + $0x18]]
    %v421 = vstv %s420
    %v422 = vmul.f32 %v78, %v421
    %v423 = vmul.f32 %v79, %v421
    %v426 = vrot.slane %v422, 2
    %v427 = vrot.slane %v423, 2
    %v428 = vsel %vm169, %v426, %v427
    %v431 = vadd.f32 %v418, %v428
    %v432 = vadd.f32 %v419, %v427
    %s433 = sld [smem:[#allocation2 + $0x19]]
    %v434 = vstv %s433
    %v435 = vmul.f32 %v78, %v434
    %v436 = vmul.f32 %v79, %v434
    %v439 = vrot.slane %v435, 2
    %v440 = vrot.slane %v436, 2
    %v441 = vsel %vm169, %v439, %v440
    %442 = vrot.lane.b32.xlu0 %v441, 127
    %v443 = vpop.permute.xlu0 %442
    %444 = vrot.lane.b32.xlu0 %v440, 127
    %v445 = vpop.permute.xlu0 %444
    %v448 = vadd.f32 %v431, %v443
    %v449 = vadd.f32 %v432, %v445
    %s450 = sld [smem:[#allocation2 + $0x1a]]
    %v451 = vstv %s450
    %v452 = vmul.f32 %v78, %v451
    %v453 = vmul.f32 %v79, %v451
    %v456 = vrot.slane %v452, 2
    %v457 = vrot.slane %v453, 2
    %v458 = vsel %vm169, %v456, %v457
    %459 = vrot.lane.b32.xlu0 %v458, 126
    %v460 = vpop.permute.xlu0 %459
    %461 = vrot.lane.b32.xlu0 %v457, 126
    %v462 = vpop.permute.xlu0 %461
    %v465 = vadd.f32 %v448, %v460
    %v466 = vadd.f32 %v449, %v462
    %s467 = sld [smem:[#allocation2 + $0x1b]]
    %v468 = vstv %s467
    %v469 = vmul.f32 %v81, %v468
    %v470 = vmul.f32 %v82, %v468
    %v471 = vadd.f32 %v465, %v469
    %v472 = vadd.f32 %v466, %v470
    %s473 = sld [smem:[#allocation2 + $0x1c]]
    %v474 = vstv %s473
    %v475 = vmul.f32 %v81, %v474
    %v476 = vmul.f32 %v82, %v474
    %479 = vrot.lane.b32.xlu0 %v475, 127
    %v480 = vpop.permute.xlu0 %479
    %481 = vrot.lane.b32.xlu0 %v476, 127
    %v482 = vpop.permute.xlu0 %481
    %v485 = vadd.f32 %v471, %v480
    %v486 = vadd.f32 %v472, %v482
    %s487 = sld [smem:[#allocation2 + $0x1d]]
    %v488 = vstv %s487
    %v489 = vmul.f32 %v81, %v488
    %v490 = vmul.f32 %v82, %v488
    %493 = vrot.lane.b32.xlu0 %v489, 126
    %v494 = vpop.permute.xlu0 %493
    %495 = vrot.lane.b32.xlu0 %v490, 126
    %v496 = vpop.permute.xlu0 %495
    %v499 = vadd.f32 %v485, %v494
    %v500 = vadd.f32 %v486, %v496
    %s501 = sld [smem:[#allocation2 + $0x1e]]
    %v502 = vstv %s501
    %v503 = vmul.f32 %v81, %v502
    %v504 = vmul.f32 %v82, %v502
    %v507 = vrot.slane %v503, 1
    %v508 = vrot.slane %v504, 1
    %v509 = vsel %vm121, %v507, %v508
    %v512 = vadd.f32 %v499, %v509
    %v513 = vadd.f32 %v500, %v508
    %s514 = sld [smem:[#allocation2 + $0x1f]]
    %v515 = vstv %s514
    %v516 = vmul.f32 %v81, %v515
    %v517 = vmul.f32 %v82, %v515
    %v520 = vrot.slane %v516, 1
    %v521 = vrot.slane %v517, 1
    %v522 = vsel %vm121, %v520, %v521
    %523 = vrot.lane.b32.xlu0 %v522, 127
    %v524 = vpop.permute.xlu0 %523
    %525 = vrot.lane.b32.xlu0 %v521, 127
    %v526 = vpop.permute.xlu0 %525
    %v529 = vadd.f32 %v512, %v524
    %v530 = vadd.f32 %v513, %v526
    %s531 = sld [smem:[#allocation2 + $0x20]]
    %v532 = vstv %s531
    %v533 = vmul.f32 %v81, %v532
    %v534 = vmul.f32 %v82, %v532
    %v537 = vrot.slane %v533, 1
    %v538 = vrot.slane %v534, 1
    %v539 = vsel %vm121, %v537, %v538
    %540 = vrot.lane.b32.xlu0 %v539, 126
    %v541 = vpop.permute.xlu0 %540
    %542 = vrot.lane.b32.xlu0 %v538, 126
    %v543 = vpop.permute.xlu0 %542
    %v546 = vadd.f32 %v529, %v541
    %v547 = vadd.f32 %v530, %v543
    %s548 = sld [smem:[#allocation2 + $0x21]]
    %v549 = vstv %s548
    %v550 = vmul.f32 %v81, %v549
    %v551 = vmul.f32 %v82, %v549
    %v554 = vrot.slane %v550, 2
    %v555 = vrot.slane %v551, 2
    %v556 = vsel %vm169, %v554, %v555
    %v559 = vadd.f32 %v546, %v556
    %v560 = vadd.f32 %v547, %v555
    %s561 = sld [smem:[#allocation2 + $0x22]]
    %v562 = vstv %s561
    %v563 = vmul.f32 %v81, %v562
    %v564 = vmul.f32 %v82, %v562
    %v567 = vrot.slane %v563, 2
    %v568 = vrot.slane %v564, 2
    %v569 = vsel %vm169, %v567, %v568
    %570 = vrot.lane.b32.xlu0 %v569, 127
    %v571 = vpop.permute.xlu0 %570
    %572 = vrot.lane.b32.xlu0 %v568, 127
    %v573 = vpop.permute.xlu0 %572
    %v576 = vadd.f32 %v559, %v571
    %v577 = vadd.f32 %v560, %v573
    %s578 = sld [smem:[#allocation2 + $0x23]]
    %v579 = vstv %s578
    %v580 = vmul.f32 %v81, %v579
    %v581 = vmul.f32 %v82, %v579
    %v584 = vrot.slane %v580, 2
    %v585 = vrot.slane %v581, 2
    %v586 = vsel %vm169, %v584, %v585
    %587 = vrot.lane.b32.xlu0 %v586, 126
    %v588 = vpop.permute.xlu0 %587
    %589 = vrot.lane.b32.xlu0 %v585, 126
    %v590 = vpop.permute.xlu0 %589
    %v593 = vadd.f32 %v576, %v588
    %v594 = vadd.f32 %v577, %v590
    %s595 = sld [smem:[#allocation5]]
    %v596 = vstv %s595
    %v597 = vadd.f32 %v593, %v596
    %v598 = vadd.f32 %v594, %v596
    %v599 = vmax.f32 %v597, 0.0
    %v600 = vmax.f32 %v598, 0.0
    %s601 = sld [smem:[#allocation2 + $0x24]]
    %v602 = vstv %s601
    %v603 = vmul.f32 %v72, %v602
    %v604 = vmul.f32 %v73, %v602
    %s605 = sld [smem:[#allocation2 + $0x25]]
    %v606 = vstv %s605
    %v607 = vmul.f32 %v72, %v606
    %v608 = vmul.f32 %v73, %v606
    %611 = vrot.lane.b32.xlu0 %v607, 127
    %v612 = vpop.permute.xlu0 %611
    %613 = vrot.lane.b32.xlu0 %v608, 127
    %v614 = vpop.permute.xlu0 %613
    %v617 = vadd.f32 %v603, %v612
    %v618 = vadd.f32 %v604, %v614
    %s619 = sld [smem:[#allocation2 + $0x26]]
    %v620 = vstv %s619
    %v621 = vmul.f32 %v72, %v620
    %v622 = vmul.f32 %v73, %v620
    %625 = vrot.lane.b32.xlu0 %v621, 126
    %v626 = vpop.permute.xlu0 %625
    %627 = vrot.lane.b32.xlu0 %v622, 126
    %v628 = vpop.permute.xlu0 %627
    %v631 = vadd.f32 %v617, %v626
    %v632 = vadd.f32 %v618, %v628
    %s633 = sld [smem:[#allocation2 + $0x27]]
    %v634 = vstv %s633
    %v635 = vmul.f32 %v72, %v634
    %v636 = vmul.f32 %v73, %v634
    %v639 = vrot.slane %v635, 1
    %v640 = vrot.slane %v636, 1
    %v641 = vsel %vm121, %v639, %v640
    %v644 = vadd.f32 %v631, %v641
    %v645 = vadd.f32 %v632, %v640
    %s646 = sld [smem:[#allocation2 + $0x28]]
    %v647 = vstv %s646
    %v648 = vmul.f32 %v72, %v647
    %v649 = vmul.f32 %v73, %v647
    %v652 = vrot.slane %v648, 1
    %v653 = vrot.slane %v649, 1
    %v654 = vsel %vm121, %v652, %v653
    %655 = vrot.lane.b32.xlu0 %v654, 127
    %v656 = vpop.permute.xlu0 %655
    %657 = vrot.lane.b32.xlu0 %v653, 127
    %v658 = vpop.permute.xlu0 %657
    %v661 = vadd.f32 %v644, %v656
    %v662 = vadd.f32 %v645, %v658
    %s663 = sld [smem:[#allocation2 + $0x29]]
    %v664 = vstv %s663
    %v665 = vmul.f32 %v72, %v664
    %v666 = vmul.f32 %v73, %v664
    %v669 = vrot.slane %v665, 1
    %v670 = vrot.slane %v666, 1
    %v671 = vsel %vm121, %v669, %v670
    %672 = vrot.lane.b32.xlu0 %v671, 126
    %v673 = vpop.permute.xlu0 %672
    %674 = vrot.lane.b32.xlu0 %v670, 126
    %v675 = vpop.permute.xlu0 %674
    %v678 = vadd.f32 %v661, %v673
    %v679 = vadd.f32 %v662, %v675
    %s680 = sld [smem:[#allocation2 + $0x2a]]
    %v681 = vstv %s680
    %v682 = vmul.f32 %v72, %v681
    %v683 = vmul.f32 %v73, %v681
    %v686 = vrot.slane %v682, 2
    %v687 = vrot.slane %v683, 2
    %v688 = vsel %vm169, %v686, %v687
    %v691 = vadd.f32 %v678, %v688
    %v692 = vadd.f32 %v679, %v687
    %s693 = sld [smem:[#allocation2 + $0x2b]]
    %v694 = vstv %s693
    %v695 = vmul.f32 %v72, %v694
    %v696 = vmul.f32 %v73, %v694
    %v699 = vrot.slane %v695, 2
    %v700 = vrot.slane %v696, 2
    %v701 = vsel %vm169, %v699, %v700
    %702 = vrot.lane.b32.xlu0 %v701, 127
    %v703 = vpop.permute.xlu0 %702
    %704 = vrot.lane.b32.xlu0 %v700, 127
    %v705 = vpop.permute.xlu0 %704
    %v708 = vadd.f32 %v691, %v703
    %v709 = vadd.f32 %v692, %v705
    %s710 = sld [smem:[#allocation2 + $0x2c]]
    %v711 = vstv %s710
    %v712 = vmul.f32 %v72, %v711
    %v713 = vmul.f32 %v73, %v711
    %v716 = vrot.slane %v712, 2
    %v717 = vrot.slane %v713, 2
    %v718 = vsel %vm169, %v716, %v717
    %719 = vrot.lane.b32.xlu0 %v718, 126
    %v720 = vpop.permute.xlu0 %719
    %721 = vrot.lane.b32.xlu0 %v717, 126
    %v722 = vpop.permute.xlu0 %721
    %v725 = vadd.f32 %v708, %v720
    %v726 = vadd.f32 %v709, %v722
    %s727 = sld [smem:[#allocation2 + $0x2d]]
    %v728 = vstv %s727
    %v729 = vmul.f32 %v75, %v728
    %v730 = vmul.f32 %v76, %v728
    %v731 = vadd.f32 %v725, %v729
    %v732 = vadd.f32 %v726, %v730
    %s733 = sld [smem:[#allocation2 + $0x2e]]
    %v734 = vstv %s733
    %v735 = vmul.f32 %v75, %v734
    %v736 = vmul.f32 %v76, %v734
    %739 = vrot.lane.b32.xlu0 %v735, 127
    %v740 = vpop.permute.xlu0 %739
    %741 = vrot.lane.b32.xlu0 %v736, 127
    %v742 = vpop.permute.xlu0 %741
    %v745 = vadd.f32 %v731, %v740
    %v746 = vadd.f32 %v732, %v742
    %s747 = sld [smem:[#allocation2 + $0x2f]]
    %v748 = vstv %s747
    %v749 = vmul.f32 %v75, %v748
    %v750 = vmul.f32 %v76, %v748
    %753 = vrot.lane.b32.xlu0 %v749, 126
    %v754 = vpop.permute.xlu0 %753
    %755 = vrot.lane.b32.xlu0 %v750, 126
    %v756 = vpop.permute.xlu0 %755
    %v759 = vadd.f32 %v745, %v754
    %v760 = vadd.f32 %v746, %v756
    %s761 = sld [smem:[#allocation2 + $0x30]]
    %v762 = vstv %s761
    %v763 = vmul.f32 %v75, %v762
    %v764 = vmul.f32 %v76, %v762
    %v767 = vrot.slane %v763, 1
    %v768 = vrot.slane %v764, 1
    %v769 = vsel %vm121, %v767, %v768
    %v772 = vadd.f32 %v759, %v769
    %v773 = vadd.f32 %v760, %v768
    %s774 = sld [smem:[#allocation2 + $0x31]]
    %v775 = vstv %s774
    %v776 = vmul.f32 %v75, %v775
    %v777 = vmul.f32 %v76, %v775
    %v780 = vrot.slane %v776, 1
    %v781 = vrot.slane %v777, 1
    %v782 = vsel %vm121, %v780, %v781
    %783 = vrot.lane.b32.xlu0 %v782, 127
    %v784 = vpop.permute.xlu0 %783
    %785 = vrot.lane.b32.xlu0 %v781, 127
    %v786 = vpop.permute.xlu0 %785
    %v789 = vadd.f32 %v772, %v784
    %v790 = vadd.f32 %v773, %v786
    %s791 = sld [smem:[#allocation2 + $0x32]]
    %v792 = vstv %s791
    %v793 = vmul.f32 %v75, %v792
    %v794 = vmul.f32 %v76, %v792
    %v797 = vrot.slane %v793, 1
    %v798 = vrot.slane %v794, 1
    %v799 = vsel %vm121, %v797, %v798
    %800 = vrot.lane.b32.xlu0 %v799, 126
    %v801 = vpop.permute.xlu0 %800
    %802 = vrot.lane.b32.xlu0 %v798, 126
    %v803 = vpop.permute.xlu0 %802
    %v806 = vadd.f32 %v789, %v801
    %v807 = vadd.f32 %v790, %v803
    %s808 = sld [smem:[#allocation2 + $0x33]]
    %v809 = vstv %s808
    %v810 = vmul.f32 %v75, %v809
    %v811 = vmul.f32 %v76, %v809
    %v814 = vrot.slane %v810, 2
    %v815 = vrot.slane %v811, 2
    %v816 = vsel %vm169, %v814, %v815
    %v819 = vadd.f32 %v806, %v816
    %v820 = vadd.f32 %v807, %v815
    %s821 = sld [smem:[#allocation2 + $0x34]]
    %v822 = vstv %s821
    %v823 = vmul.f32 %v75, %v822
    %v824 = vmul.f32 %v76, %v822
    %v827 = vrot.slane %v823, 2
    %v828 = vrot.slane %v824, 2
    %v829 = vsel %vm169, %v827, %v828
    %830 = vrot.lane.b32.xlu0 %v829, 127
    %v831 = vpop.permute.xlu0 %830
    %832 = vrot.lane.b32.xlu0 %v828, 127
    %v833 = vpop.permute.xlu0 %832
    %v836 = vadd.f32 %v819, %v831
    %v837 = vadd.f32 %v820, %v833
    %s838 = sld [smem:[#allocation2 + $0x35]]
    %v839 = vstv %s838
    %v840 = vmul.f32 %v75, %v839
    %v841 = vmul.f32 %v76, %v839
    %v844 = vrot.slane %v840, 2
    %v845 = vrot.slane %v841, 2
    %v846 = vsel %vm169, %v844, %v845
    %847 = vrot.lane.b32.xlu0 %v846, 126
    %v848 = vpop.permute.xlu0 %847
    %849 = vrot.lane.b32.xlu0 %v845, 126
    %v850 = vpop.permute.xlu0 %849
    %v853 = vadd.f32 %v836, %v848
    %v854 = vadd.f32 %v837, %v850
    %s855 = sld [smem:[#allocation2 + $0x36]]
    %v856 = vstv %s855
    %v857 = vmul.f32 %v78, %v856
    %v858 = vmul.f32 %v79, %v856
    %v859 = vadd.f32 %v853, %v857
    %v860 = vadd.f32 %v854, %v858
    %s861 = sld [smem:[#allocation2 + $0x37]]
    %v862 = vstv %s861
    %v863 = vmul.f32 %v78, %v862
    %v864 = vmul.f32 %v79, %v862
    %867 = vrot.lane.b32.xlu0 %v863, 127
    %v868 = vpop.permute.xlu0 %867
    %869 = vrot.lane.b32.xlu0 %v864, 127
    %v870 = vpop.permute.xlu0 %869
    %v873 = vadd.f32 %v859, %v868
    %v874 = vadd.f32 %v860, %v870
    %s875 = sld [smem:[#allocation2 + $0x38]]
    %v876 = vstv %s875
    %v877 = vmul.f32 %v78, %v876
    %v878 = vmul.f32 %v79, %v876
    %881 = vrot.lane.b32.xlu0 %v877, 126
    %v882 = vpop.permute.xlu0 %881
    %883 = vrot.lane.b32.xlu0 %v878, 126
    %v884 = vpop.permute.xlu0 %883
    %v887 = vadd.f32 %v873, %v882
    %v888 = vadd.f32 %v874, %v884
    %s889 = sld [smem:[#allocation2 + $0x39]]
    %v890 = vstv %s889
    %v891 = vmul.f32 %v78, %v890
    %v892 = vmul.f32 %v79, %v890
    %v895 = vrot.slane %v891, 1
    %v896 = vrot.slane %v892, 1
    %v897 = vsel %vm121, %v895, %v896
    %v900 = vadd.f32 %v887, %v897
    %v901 = vadd.f32 %v888, %v896
    %s902 = sld [smem:[#allocation2 + $0x3a]]
    %v903 = vstv %s902
    %v904 = vmul.f32 %v78, %v903
    %v905 = vmul.f32 %v79, %v903
    %v908 = vrot.slane %v904, 1
    %v909 = vrot.slane %v905, 1
    %v910 = vsel %vm121, %v908, %v909
    %911 = vrot.lane.b32.xlu0 %v910, 127
    %v912 = vpop.permute.xlu0 %911
    %913 = vrot.lane.b32.xlu0 %v909, 127
    %v914 = vpop.permute.xlu0 %913
    %v917 = vadd.f32 %v900, %v912
    %v918 = vadd.f32 %v901, %v914
    %s919 = sld [smem:[#allocation2 + $0x3b]]
    %v920 = vstv %s919
    %v921 = vmul.f32 %v78, %v920
    %v922 = vmul.f32 %v79, %v920
    %v925 = vrot.slane %v921, 1
    %v926 = vrot.slane %v922, 1
    %v927 = vsel %vm121, %v925, %v926
    %928 = vrot.lane.b32.xlu0 %v927, 126
    %v929 = vpop.permute.xlu0 %928
    %930 = vrot.lane.b32.xlu0 %v926, 126
    %v931 = vpop.permute.xlu0 %930
    %v934 = vadd.f32 %v917, %v929
    %v935 = vadd.f32 %v918, %v931
    %s936 = sld [smem:[#allocation2 + $0x3c]]
    %v937 = vstv %s936
    %v938 = vmul.f32 %v78, %v937
    %v939 = vmul.f32 %v79, %v937
    %v942 = vrot.slane %v938, 2
    %v943 = vrot.slane %v939, 2
    %v944 = vsel %vm169, %v942, %v943
    %v947 = vadd.f32 %v934, %v944
    %v948 = vadd.f32 %v935, %v943
    %s949 = sld [smem:[#allocation2 + $0x3d]]
    %v950 = vstv %s949
    %v951 = vmul.f32 %v78, %v950
    %v952 = vmul.f32 %v79, %v950
    %v955 = vrot.slane %v951, 2
    %v956 = vrot.slane %v952, 2
    %v957 = vsel %vm169, %v955, %v956
    %958 = vrot.lane.b32.xlu0 %v957, 127
    %v959 = vpop.permute.xlu0 %958
    %960 = vrot.lane.b32.xlu0 %v956, 127
    %v961 = vpop.permute.xlu0 %960
    %v964 = vadd.f32 %v947, %v959
    %v965 = vadd.f32 %v948, %v961
    %s966 = sld [smem:[#allocation2 + $0x3e]]
    %v967 = vstv %s966
    %v968 = vmul.f32 %v78, %v967
    %v969 = vmul.f32 %v79, %v967
    %v972 = vrot.slane %v968, 2
    %v973 = vrot.slane %v969, 2
    %v974 = vsel %vm169, %v972, %v973
    %975 = vrot.lane.b32.xlu0 %v974, 126
    %v976 = vpop.permute.xlu0 %975
    %977 = vrot.lane.b32.xlu0 %v973, 126
    %v978 = vpop.permute.xlu0 %977
    %v981 = vadd.f32 %v964, %v976
    %v982 = vadd.f32 %v965, %v978
    %s983 = sld [smem:[#allocation2 + $0x3f]]
    %v984 = vstv %s983
    %v985 = vmul.f32 %v81, %v984
    %v986 = vmul.f32 %v82, %v984
    %v987 = vadd.f32 %v981, %v985
    %v988 = vadd.f32 %v982, %v986
    %s989 = sld [smem:[#allocation2 + $0x40]]
    %v990 = vstv %s989
    %v991 = vmul.f32 %v81, %v990
    %v992 = vmul.f32 %v82, %v990
    %995 = vrot.lane.b32.xlu0 %v991, 127
    %v996 = vpop.permute.xlu0 %995
    %997 = vrot.lane.b32.xlu0 %v992, 127
    %v998 = vpop.permute.xlu0 %997
    %v1001 = vadd.f32 %v987, %v996
    %v1002 = vadd.f32 %v988, %v998
    %s1003 = sld [smem:[#allocation2 + $0x41]]
    %v1004 = vstv %s1003
    %v1005 = vmul.f32 %v81, %v1004
    %v1006 = vmul.f32 %v82, %v1004
    %1009 = vrot.lane.b32.xlu0 %v1005, 126
    %v1010 = vpop.permute.xlu0 %1009
    %1011 = vrot.lane.b32.xlu0 %v1006, 126
    %v1012 = vpop.permute.xlu0 %1011
    %v1015 = vadd.f32 %v1001, %v1010
    %v1016 = vadd.f32 %v1002, %v1012
    %s1017 = sld [smem:[#allocation2 + $0x42]]
    %v1018 = vstv %s1017
    %v1019 = vmul.f32 %v81, %v1018
    %v1020 = vmul.f32 %v82, %v1018
    %v1023 = vrot.slane %v1019, 1
    %v1024 = vrot.slane %v1020, 1
    %v1025 = vsel %vm121, %v1023, %v1024
    %v1028 = vadd.f32 %v1015, %v1025
    %v1029 = vadd.f32 %v1016, %v1024
    %s1030 = sld [smem:[#allocation2 + $0x43]]
    %v1031 = vstv %s1030
    %v1032 = vmul.f32 %v81, %v1031
    %v1033 = vmul.f32 %v82, %v1031
    %v1036 = vrot.slane %v1032, 1
    %v1037 = vrot.slane %v1033, 1
    %v1038 = vsel %vm121, %v1036, %v1037
    %1039 = vrot.lane.b32.xlu0 %v1038, 127
    %v1040 = vpop.permute.xlu0 %1039
    %1041 = vrot.lane.b32.xlu0 %v1037, 127
    %v1042 = vpop.permute.xlu0 %1041
    %v1045 = vadd.f32 %v1028, %v1040
    %v1046 = vadd.f32 %v1029, %v1042
    %s1047 = sld [smem:[#allocation2 + $0x44]]
    %v1048 = vstv %s1047
    %v1049 = vmul.f32 %v81, %v1048
    %v1050 = vmul.f32 %v82, %v1048
    %v1053 = vrot.slane %v1049, 1
    %v1054 = vrot.slane %v1050, 1
    %v1055 = vsel %vm121, %v1053, %v1054
    %1056 = vrot.lane.b32.xlu0 %v1055, 126
    %v1057 = vpop.permute.xlu0 %1056
    %1058 = vrot.lane.b32.xlu0 %v1054, 126
    %v1059 = vpop.permute.xlu0 %1058
    %v1062 = vadd.f32 %v1045, %v1057
    %v1063 = vadd.f32 %v1046, %v1059
    %s1064 = sld [smem:[#allocation2 + $0x45]]
    %v1065 = vstv %s1064
    %v1066 = vmul.f32 %v81, %v1065
    %v1067 = vmul.f32 %v82, %v1065
    %v1070 = vrot.slane %v1066, 2
    %v1071 = vrot.slane %v1067, 2
    %v1072 = vsel %vm169, %v1070, %v1071
    %v1075 = vadd.f32 %v1062, %v1072
    %v1076 = vadd.f32 %v1063, %v1071
    %s1077 = sld [smem:[#allocation2 + $0x46]]
    %v1078 = vstv %s1077
    %v1079 = vmul.f32 %v81, %v1078
    %v1080 = vmul.f32 %v82, %v1078
    %v1083 = vrot.slane %v1079, 2
    %v1084 = vrot.slane %v1080, 2
    %v1085 = vsel %vm169, %v1083, %v1084
    %1086 = vrot.lane.b32.xlu0 %v1085, 127
    %v1087 = vpop.permute.xlu0 %1086
    %1088 = vrot.lane.b32.xlu0 %v1084, 127
    %v1089 = vpop.permute.xlu0 %1088
    %v1092 = vadd.f32 %v1075, %v1087
    %v1093 = vadd.f32 %v1076, %v1089
    %s1094 = sld [smem:[#allocation2 + $0x47]]
    %v1095 = vstv %s1094
    %v1096 = vmul.f32 %v81, %v1095
    %v1097 = vmul.f32 %v82, %v1095
    %v1100 = vrot.slane %v1096, 2
    %v1101 = vrot.slane %v1097, 2
    %v1102 = vsel %vm169, %v1100, %v1101
    %1103 = vrot.lane.b32.xlu0 %v1102, 126
    %v1104 = vpop.permute.xlu0 %1103
    %1105 = vrot.lane.b32.xlu0 %v1101, 126
    %v1106 = vpop.permute.xlu0 %1105
    %v1109 = vadd.f32 %v1092, %v1104
    %v1110 = vadd.f32 %v1093, %v1106
    %s1111 = sld [smem:[#allocation5 + $0x1]]
    %v1112 = vstv %s1111
    %v1113 = vadd.f32 %v1109, %v1112
    %v1114 = vadd.f32 %v1110, %v1112
    %v1115 = vmax.f32 %v1113, 0.0
    %v1116 = vmax.f32 %v1114, 0.0
    %s1117 = sld [smem:[#allocation2 + $0x48]]
    %v1118 = vstv %s1117
    %v1119 = vmul.f32 %v72, %v1118
    %v1120 = vmul.f32 %v73, %v1118
    %s1121 = sld [smem:[#allocation2 + $0x49]]
    %v1122 = vstv %s1121
    %v1123 = vmul.f32 %v72, %v1122
    %v1124 = vmul.f32 %v73, %v1122
    %1127 = vrot.lane.b32.xlu0 %v1123, 127
    %v1128 = vpop.permute.xlu0 %1127
    %1129 = vrot.lane.b32.xlu0 %v1124, 127
    %v1130 = vpop.permute.xlu0 %1129
    %v1133 = vadd.f32 %v1119, %v1128
    %v1134 = vadd.f32 %v1120, %v1130
    %s1135 = sld [smem:[#allocation2 + $0x4a]]
    %v1136 = vstv %s1135
    %v1137 = vmul.f32 %v72, %v1136
    %v1138 = vmul.f32 %v73, %v1136
    %1141 = vrot.lane.b32.xlu0 %v1137, 126
    %v1142 = vpop.permute.xlu0 %1141
    %1143 = vrot.lane.b32.xlu0 %v1138, 126
    %v1144 = vpop.permute.xlu0 %1143
    %v1147 = vadd.f32 %v1133, %v1142
    %v1148 = vadd.f32 %v1134, %v1144
    %s1149 = sld [smem:[#allocation2 + $0x4b]]
    %v1150 = vstv %s1149
    %v1151 = vmul.f32 %v72, %v1150
    %v1152 = vmul.f32 %v73, %v1150
    %v1155 = vrot.slane %v1151, 1
    %v1156 = vrot.slane %v1152, 1
    %v1157 = vsel %vm121, %v1155, %v1156
    %v1160 = vadd.f32 %v1147, %v1157
    %v1161 = vadd.f32 %v1148, %v1156
    %s1162 = sld [smem:[#allocation2 + $0x4c]]
    %v1163 = vstv %s1162
    %v1164 = vmul.f32 %v72, %v1163
    %v1165 = vmul.f32 %v73, %v1163
    %v1168 = vrot.slane %v1164, 1
    %v1169 = vrot.slane %v1165, 1
    %v1170 = vsel %vm121, %v1168, %v1169
    %1171 = vrot.lane.b32.xlu0 %v1170, 127
    %v1172 = vpop.permute.xlu0 %1171
    %1173 = vrot.lane.b32.xlu0 %v1169, 127
    %v1174 = vpop.permute.xlu0 %1173
    %v1177 = vadd.f32 %v1160, %v1172
    %v1178 = vadd.f32 %v1161, %v1174
    %s1179 = sld [smem:[#allocation2 + $0x4d]]
    %v1180 = vstv %s1179
    %v1181 = vmul.f32 %v72, %v1180
    %v1182 = vmul.f32 %v73, %v1180
    %v1185 = vrot.slane %v1181, 1
    %v1186 = vrot.slane %v1182, 1
    %v1187 = vsel %vm121, %v1185, %v1186
    %1188 = vrot.lane.b32.xlu0 %v1187, 126
    %v1189 = vpop.permute.xlu0 %1188
    %1190 = vrot.lane.b32.xlu0 %v1186, 126
    %v1191 = vpop.permute.xlu0 %1190
    %v1194 = vadd.f32 %v1177, %v1189
    %v1195 = vadd.f32 %v1178, %v1191
    %s1196 = sld [smem:[#allocation2 + $0x4e]]
    %v1197 = vstv %s1196
    %v1198 = vmul.f32 %v72, %v1197
    %v1199 = vmul.f32 %v73, %v1197
    %v1202 = vrot.slane %v1198, 2
    %v1203 = vrot.slane %v1199, 2
    %v1204 = vsel %vm169, %v1202, %v1203
    %v1207 = vadd.f32 %v1194, %v1204
    %v1208 = vadd.f32 %v1195, %v1203
    %s1209 = sld [smem:[#allocation2 + $0x4f]]
    %v1210 = vstv %s1209
    %v1211 = vmul.f32 %v72, %v1210
    %v1212 = vmul.f32 %v73, %v1210
    %v1215 = vrot.slane %v1211, 2
    %v1216 = vrot.slane %v1212, 2
    %v1217 = vsel %vm169, %v1215, %v1216
    %1218 = vrot.lane.b32.xlu0 %v1217, 127
    %v1219 = vpop.permute.xlu0 %1218
    %1220 = vrot.lane.b32.xlu0 %v1216, 127
    %v1221 = vpop.permute.xlu0 %1220
    %v1224 = vadd.f32 %v1207, %v1219
    %v1225 = vadd.f32 %v1208, %v1221
    %s1226 = sld [smem:[#allocation2 + $0x50]]
    %v1227 = vstv %s1226
    %v1228 = vmul.f32 %v72, %v1227
    %v1229 = vmul.f32 %v73, %v1227
    %v1232 = vrot.slane %v1228, 2
    %v1233 = vrot.slane %v1229, 2
    %v1234 = vsel %vm169, %v1232, %v1233
    %1235 = vrot.lane.b32.xlu0 %v1234, 126
    %v1236 = vpop.permute.xlu0 %1235
    %1237 = vrot.lane.b32.xlu0 %v1233, 126
    %v1238 = vpop.permute.xlu0 %1237
    %v1241 = vadd.f32 %v1224, %v1236
    %v1242 = vadd.f32 %v1225, %v1238
    %s1243 = sld [smem:[#allocation2 + $0x51]]
    %v1244 = vstv %s1243
    %v1245 = vmul.f32 %v75, %v1244
    %v1246 = vmul.f32 %v76, %v1244
    %v1247 = vadd.f32 %v1241, %v1245
    %v1248 = vadd.f32 %v1242, %v1246
    %s1249 = sld [smem:[#allocation2 + $0x52]]
    %v1250 = vstv %s1249
    %v1251 = vmul.f32 %v75, %v1250
    %v1252 = vmul.f32 %v76, %v1250
    %1255 = vrot.lane.b32.xlu0 %v1251, 127
    %v1256 = vpop.permute.xlu0 %1255
    %1257 = vrot.lane.b32.xlu0 %v1252, 127
    %v1258 = vpop.permute.xlu0 %1257
    %v1261 = vadd.f32 %v1247, %v1256
    %v1262 = vadd.f32 %v1248, %v1258
    %s1263 = sld [smem:[#allocation2 + $0x53]]
    %v1264 = vstv %s1263
    %v1265 = vmul.f32 %v75, %v1264
    %v1266 = vmul.f32 %v76, %v1264
    %1269 = vrot.lane.b32.xlu0 %v1265, 126
    %v1270 = vpop.permute.xlu0 %1269
    %1271 = vrot.lane.b32.xlu0 %v1266, 126
    %v1272 = vpop.permute.xlu0 %1271
    %v1275 = vadd.f32 %v1261, %v1270
    %v1276 = vadd.f32 %v1262, %v1272
    %s1277 = sld [smem:[#allocation2 + $0x54]]
    %v1278 = vstv %s1277
    %v1279 = vmul.f32 %v75, %v1278
    %v1280 = vmul.f32 %v76, %v1278
    %v1283 = vrot.slane %v1279, 1
    %v1284 = vrot.slane %v1280, 1
    %v1285 = vsel %vm121, %v1283, %v1284
    %v1288 = vadd.f32 %v1275, %v1285
    %v1289 = vadd.f32 %v1276, %v1284
    %s1290 = sld [smem:[#allocation2 + $0x55]]
    %v1291 = vstv %s1290
    %v1292 = vmul.f32 %v75, %v1291
    %v1293 = vmul.f32 %v76, %v1291
    %v1296 = vrot.slane %v1292, 1
    %v1297 = vrot.slane %v1293, 1
    %v1298 = vsel %vm121, %v1296, %v1297
    %1299 = vrot.lane.b32.xlu0 %v1298, 127
    %v1300 = vpop.permute.xlu0 %1299
    %1301 = vrot.lane.b32.xlu0 %v1297, 127
    %v1302 = vpop.permute.xlu0 %1301
    %v1305 = vadd.f32 %v1288, %v1300
    %v1306 = vadd.f32 %v1289, %v1302
    %s1307 = sld [smem:[#allocation2 + $0x56]]
    %v1308 = vstv %s1307
    %v1309 = vmul.f32 %v75, %v1308
    %v1310 = vmul.f32 %v76, %v1308
    %v1313 = vrot.slane %v1309, 1
    %v1314 = vrot.slane %v1310, 1
    %v1315 = vsel %vm121, %v1313, %v1314
    %1316 = vrot.lane.b32.xlu0 %v1315, 126
    %v1317 = vpop.permute.xlu0 %1316
    %1318 = vrot.lane.b32.xlu0 %v1314, 126
    %v1319 = vpop.permute.xlu0 %1318
    %v1322 = vadd.f32 %v1305, %v1317
    %v1323 = vadd.f32 %v1306, %v1319
    %s1324 = sld [smem:[#allocation2 + $0x57]]
    %v1325 = vstv %s1324
    %v1326 = vmul.f32 %v75, %v1325
    %v1327 = vmul.f32 %v76, %v1325
    %v1330 = vrot.slane %v1326, 2
    %v1331 = vrot.slane %v1327, 2
    %v1332 = vsel %vm169, %v1330, %v1331
    %v1335 = vadd.f32 %v1322, %v1332
    %v1336 = vadd.f32 %v1323, %v1331
    %s1337 = sld [smem:[#allocation2 + $0x58]]
    %v1338 = vstv %s1337
    %v1339 = vmul.f32 %v75, %v1338
    %v1340 = vmul.f32 %v76, %v1338
    %v1343 = vrot.slane %v1339, 2
    %v1344 = vrot.slane %v1340, 2
    %v1345 = vsel %vm169, %v1343, %v1344
    %1346 = vrot.lane.b32.xlu0 %v1345, 127
    %v1347 = vpop.permute.xlu0 %1346
    %1348 = vrot.lane.b32.xlu0 %v1344, 127
    %v1349 = vpop.permute.xlu0 %1348
    %v1352 = vadd.f32 %v1335, %v1347
    %v1353 = vadd.f32 %v1336, %v1349
    %s1354 = sld [smem:[#allocation2 + $0x59]]
    %v1355 = vstv %s1354
    %v1356 = vmul.f32 %v75, %v1355
    %v1357 = vmul.f32 %v76, %v1355
    %v1360 = vrot.slane %v1356, 2
    %v1361 = vrot.slane %v1357, 2
    %v1362 = vsel %vm169, %v1360, %v1361
    %1363 = vrot.lane.b32.xlu0 %v1362, 126
    %v1364 = vpop.permute.xlu0 %1363
    %1365 = vrot.lane.b32.xlu0 %v1361, 126
    %v1366 = vpop.permute.xlu0 %1365
    %v1369 = vadd.f32 %v1352, %v1364
    %v1370 = vadd.f32 %v1353, %v1366
    %s1371 = sld [smem:[#allocation2 + $0x5a]]
    %v1372 = vstv %s1371
    %v1373 = vmul.f32 %v78, %v1372
    %v1374 = vmul.f32 %v79, %v1372
    %v1375 = vadd.f32 %v1369, %v1373
    %v1376 = vadd.f32 %v1370, %v1374
    %s1377 = sld [smem:[#allocation2 + $0x5b]]
    %v1378 = vstv %s1377
    %v1379 = vmul.f32 %v78, %v1378
    %v1380 = vmul.f32 %v79, %v1378
    %1383 = vrot.lane.b32.xlu0 %v1379, 127
    %v1384 = vpop.permute.xlu0 %1383
    %1385 = vrot.lane.b32.xlu0 %v1380, 127
    %v1386 = vpop.permute.xlu0 %1385
    %v1389 = vadd.f32 %v1375, %v1384
    %v1390 = vadd.f32 %v1376, %v1386
    %s1391 = sld [smem:[#allocation2 + $0x5c]]
    %v1392 = vstv %s1391
    %v1393 = vmul.f32 %v78, %v1392
    %v1394 = vmul.f32 %v79, %v1392
    %1397 = vrot.lane.b32.xlu0 %v1393, 126
    %v1398 = vpop.permute.xlu0 %1397
    %1399 = vrot.lane.b32.xlu0 %v1394, 126
    %v1400 = vpop.permute.xlu0 %1399
    %v1403 = vadd.f32 %v1389, %v1398
    %v1404 = vadd.f32 %v1390, %v1400
    %s1405 = sld [smem:[#allocation2 + $0x5d]]
    %v1406 = vstv %s1405
    %v1407 = vmul.f32 %v78, %v1406
    %v1408 = vmul.f32 %v79, %v1406
    %v1411 = vrot.slane %v1407, 1
    %v1412 = vrot.slane %v1408, 1
    %v1413 = vsel %vm121, %v1411, %v1412
    %v1416 = vadd.f32 %v1403, %v1413
    %v1417 = vadd.f32 %v1404, %v1412
    %s1418 = sld [smem:[#allocation2 + $0x5e]]
    %v1419 = vstv %s1418
    %v1420 = vmul.f32 %v78, %v1419
    %v1421 = vmul.f32 %v79, %v1419
    %v1424 = vrot.slane %v1420, 1
    %v1425 = vrot.slane %v1421, 1
    %v1426 = vsel %vm121, %v1424, %v1425
    %1427 = vrot.lane.b32.xlu0 %v1426, 127
    %v1428 = vpop.permute.xlu0 %1427
    %1429 = vrot.lane.b32.xlu0 %v1425, 127
    %v1430 = vpop.permute.xlu0 %1429
    %v1433 = vadd.f32 %v1416, %v1428
    %v1434 = vadd.f32 %v1417, %v1430
    %s1435 = sld [smem:[#allocation2 + $0x5f]]
    %v1436 = vstv %s1435
    %v1437 = vmul.f32 %v78, %v1436
    %v1438 = vmul.f32 %v79, %v1436
    %v1441 = vrot.slane %v1437, 1
    %v1442 = vrot.slane %v1438, 1
    %v1443 = vsel %vm121, %v1441, %v1442
    %1444 = vrot.lane.b32.xlu0 %v1443, 126
    %v1445 = vpop.permute.xlu0 %1444
    %1446 = vrot.lane.b32.xlu0 %v1442, 126
    %v1447 = vpop.permute.xlu0 %1446
    %v1450 = vadd.f32 %v1433, %v1445
    %v1451 = vadd.f32 %v1434, %v1447
    %s1452 = sld [smem:[#allocation2 + $0x60]]
    %v1453 = vstv %s1452
    %v1454 = vmul.f32 %v78, %v1453
    %v1455 = vmul.f32 %v79, %v1453
    %v1458 = vrot.slane %v1454, 2
    %v1459 = vrot.slane %v1455, 2
    %v1460 = vsel %vm169, %v1458, %v1459
    %v1463 = vadd.f32 %v1450, %v1460
    %v1464 = vadd.f32 %v1451, %v1459
    %s1465 = sld [smem:[#allocation2 + $0x61]]
    %v1466 = vstv %s1465
    %v1467 = vmul.f32 %v78, %v1466
    %v1468 = vmul.f32 %v79, %v1466
    %v1471 = vrot.slane %v1467, 2
    %v1472 = vrot.slane %v1468, 2
    %v1473 = vsel %vm169, %v1471, %v1472
    %1474 = vrot.lane.b32.xlu0 %v1473, 127
    %v1475 = vpop.permute.xlu0 %1474
    %1476 = vrot.lane.b32.xlu0 %v1472, 127
    %v1477 = vpop.permute.xlu0 %1476
    %v1480 = vadd.f32 %v1463, %v1475
    %v1481 = vadd.f32 %v1464, %v1477
    %s1482 = sld [smem:[#allocation2 + $0x62]]
    %v1483 = vstv %s1482
    %v1484 = vmul.f32 %v78, %v1483
    %v1485 = vmul.f32 %v79, %v1483
    %v1488 = vrot.slane %v1484, 2
    %v1489 = vrot.slane %v1485, 2
    %v1490 = vsel %vm169, %v1488, %v1489
    %1491 = vrot.lane.b32.xlu0 %v1490, 126
    %v1492 = vpop.permute.xlu0 %1491
    %1493 = vrot.lane.b32.xlu0 %v1489, 126
    %v1494 = vpop.permute.xlu0 %1493
    %v1497 = vadd.f32 %v1480, %v1492
    %v1498 = vadd.f32 %v1481, %v1494
    %s1499 = sld [smem:[#allocation2 + $0x63]]
    %v1500 = vstv %s1499
    %v1501 = vmul.f32 %v81, %v1500
    %v1502 = vmul.f32 %v82, %v1500
    %v1503 = vadd.f32 %v1497, %v1501
    %v1504 = vadd.f32 %v1498, %v1502
    %s1505 = sld [smem:[#allocation2 + $0x64]]
    %v1506 = vstv %s1505
    %v1507 = vmul.f32 %v81, %v1506
    %v1508 = vmul.f32 %v82, %v1506
    %1511 = vrot.lane.b32.xlu0 %v1507, 127
    %v1512 = vpop.permute.xlu0 %1511
    %1513 = vrot.lane.b32.xlu0 %v1508, 127
    %v1514 = vpop.permute.xlu0 %1513
    %v1517 = vadd.f32 %v1503, %v1512
    %v1518 = vadd.f32 %v1504, %v1514
    %s1519 = sld [smem:[#allocation2 + $0x65]]
    %v1520 = vstv %s1519
    %v1521 = vmul.f32 %v81, %v1520
    %v1522 = vmul.f32 %v82, %v1520
    %1525 = vrot.lane.b32.xlu0 %v1521, 126
    %v1526 = vpop.permute.xlu0 %1525
    %1527 = vrot.lane.b32.xlu0 %v1522, 126
    %v1528 = vpop.permute.xlu0 %1527
    %v1531 = vadd.f32 %v1517, %v1526
    %v1532 = vadd.f32 %v1518, %v1528
    %s1533 = sld [smem:[#allocation2 + $0x66]]
    %v1534 = vstv %s1533
    %v1535 = vmul.f32 %v81, %v1534
    %v1536 = vmul.f32 %v82, %v1534
    %v1539 = vrot.slane %v1535, 1
    %v1540 = vrot.slane %v1536, 1
    %v1541 = vsel %vm121, %v1539, %v1540
    %v1544 = vadd.f32 %v1531, %v1541
    %v1545 = vadd.f32 %v1532, %v1540
    %s1546 = sld [smem:[#allocation2 + $0x67]]
    %v1547 = vstv %s1546
    %v1548 = vmul.f32 %v81, %v1547
    %v1549 = vmul.f32 %v82, %v1547
    %v1552 = vrot.slane %v1548, 1
    %v1553 = vrot.slane %v1549, 1
    %v1554 = vsel %vm121, %v1552, %v1553
    %1555 = vrot.lane.b32.xlu0 %v1554, 127
    %v1556 = vpop.permute.xlu0 %1555
    %1557 = vrot.lane.b32.xlu0 %v1553, 127
    %v1558 = vpop.permute.xlu0 %1557
    %v1561 = vadd.f32 %v1544, %v1556
    %v1562 = vadd.f32 %v1545, %v1558
    %s1563 = sld [smem:[#allocation2 + $0x68]]
    %v1564 = vstv %s1563
    %v1565 = vmul.f32 %v81, %v1564
    %v1566 = vmul.f32 %v82, %v1564
    %v1569 = vrot.slane %v1565, 1
    %v1570 = vrot.slane %v1566, 1
    %v1571 = vsel %vm121, %v1569, %v1570
    %1572 = vrot.lane.b32.xlu0 %v1571, 126
    %v1573 = vpop.permute.xlu0 %1572
    %1574 = vrot.lane.b32.xlu0 %v1570, 126
    %v1575 = vpop.permute.xlu0 %1574
    %v1578 = vadd.f32 %v1561, %v1573
    %v1579 = vadd.f32 %v1562, %v1575
    %s1580 = sld [smem:[#allocation2 + $0x69]]
    %v1581 = vstv %s1580
    %v1582 = vmul.f32 %v81, %v1581
    %v1583 = vmul.f32 %v82, %v1581
    %v1586 = vrot.slane %v1582, 2
    %v1587 = vrot.slane %v1583, 2
    %v1588 = vsel %vm169, %v1586, %v1587
    %v1591 = vadd.f32 %v1578, %v1588
    %v1592 = vadd.f32 %v1579, %v1587
    %s1593 = sld [smem:[#allocation2 + $0x6a]]
    %v1594 = vstv %s1593
    %v1595 = vmul.f32 %v81, %v1594
    %v1596 = vmul.f32 %v82, %v1594
    %v1599 = vrot.slane %v1595, 2
    %v1600 = vrot.slane %v1596, 2
    %v1601 = vsel %vm169, %v1599, %v1600
    %1602 = vrot.lane.b32.xlu0 %v1601, 127
    %v1603 = vpop.permute.xlu0 %1602
    %1604 = vrot.lane.b32.xlu0 %v1600, 127
    %v1605 = vpop.permute.xlu0 %1604
    %v1608 = vadd.f32 %v1591, %v1603
    %v1609 = vadd.f32 %v1592, %v1605
    %s1610 = sld [smem:[#allocation2 + $0x6b]]
    %v1611 = vstv %s1610
    %v1612 = vmul.f32 %v81, %v1611
    %v1613 = vmul.f32 %v82, %v1611
    %v1616 = vrot.slane %v1612, 2
    %v1617 = vrot.slane %v1613, 2
    %v1618 = vsel %vm169, %v1616, %v1617
    %1619 = vrot.lane.b32.xlu0 %v1618, 126
    %v1620 = vpop.permute.xlu0 %1619
    %1621 = vrot.lane.b32.xlu0 %v1617, 126
    %v1622 = vpop.permute.xlu0 %1621
    %v1625 = vadd.f32 %v1608, %v1620
    %v1626 = vadd.f32 %v1609, %v1622
    %s1627 = sld [smem:[#allocation5 + $0x2]]
    %v1628 = vstv %s1627
    %v1629 = vadd.f32 %v1625, %v1628
    %v1630 = vadd.f32 %v1626, %v1628
    %v1631 = vmax.f32 %v1629, 0.0
    %v1632 = vmax.f32 %v1630, 0.0
    %s1633 = sld [smem:[#allocation2 + $0x6c]]
    %v1634 = vstv %s1633
    %v1635 = vmul.f32 %v72, %v1634
    %v1636 = vmul.f32 %v73, %v1634
    %s1637 = sld [smem:[#allocation2 + $0x6d]]
    %v1638 = vstv %s1637
    %v1639 = vmul.f32 %v72, %v1638
    %v1640 = vmul.f32 %v73, %v1638
    %1643 = vrot.lane.b32.xlu0 %v1639, 127
    %v1644 = vpop.permute.xlu0 %1643
    %1645 = vrot.lane.b32.xlu0 %v1640, 127
    %v1646 = vpop.permute.xlu0 %1645
    %v1649 = vadd.f32 %v1635, %v1644
    %v1650 = vadd.f32 %v1636, %v1646
    %s1651 = sld [smem:[#allocation2 + $0x6e]]
    %v1652 = vstv %s1651
    %v1653 = vmul.f32 %v72, %v1652
    %v1654 = vmul.f32 %v73, %v1652
    %1657 = vrot.lane.b32.xlu0 %v1653, 126
    %v1658 = vpop.permute.xlu0 %1657
    %1659 = vrot.lane.b32.xlu0 %v1654, 126
    %v1660 = vpop.permute.xlu0 %1659
    %v1663 = vadd.f32 %v1649, %v1658
    %v1664 = vadd.f32 %v1650, %v1660
    %s1665 = sld [smem:[#allocation2 + $0x6f]]
    %v1666 = vstv %s1665
    %v1667 = vmul.f32 %v72, %v1666
    %v1668 = vmul.f32 %v73, %v1666
    %v1671 = vrot.slane %v1667, 1
    %v1672 = vrot.slane %v1668, 1
    %v1673 = vsel %vm121, %v1671, %v1672
    %v1676 = vadd.f32 %v1663, %v1673
    %v1677 = vadd.f32 %v1664, %v1672
    %s1678 = sld [smem:[#allocation2 + $0x70]]
    %v1679 = vstv %s1678
    %v1680 = vmul.f32 %v72, %v1679
    %v1681 = vmul.f32 %v73, %v1679
    %v1684 = vrot.slane %v1680, 1
    %v1685 = vrot.slane %v1681, 1
    %v1686 = vsel %vm121, %v1684, %v1685
    %1687 = vrot.lane.b32.xlu0 %v1686, 127
    %v1688 = vpop.permute.xlu0 %1687
    %1689 = vrot.lane.b32.xlu0 %v1685, 127
    %v1690 = vpop.permute.xlu0 %1689
    %v1693 = vadd.f32 %v1676, %v1688
    %v1694 = vadd.f32 %v1677, %v1690
    %s1695 = sld [smem:[#allocation2 + $0x71]]
    %v1696 = vstv %s1695
    %v1697 = vmul.f32 %v72, %v1696
    %v1698 = vmul.f32 %v73, %v1696
    %v1701 = vrot.slane %v1697, 1
    %v1702 = vrot.slane %v1698, 1
    %v1703 = vsel %vm121, %v1701, %v1702
    %1704 = vrot.lane.b32.xlu0 %v1703, 126
    %v1705 = vpop.permute.xlu0 %1704
    %1706 = vrot.lane.b32.xlu0 %v1702, 126
    %v1707 = vpop.permute.xlu0 %1706
    %v1710 = vadd.f32 %v1693, %v1705
    %v1711 = vadd.f32 %v1694, %v1707
    %s1712 = sld [smem:[#allocation2 + $0x72]]
    %v1713 = vstv %s1712
    %v1714 = vmul.f32 %v72, %v1713
    %v1715 = vmul.f32 %v73, %v1713
    %v1718 = vrot.slane %v1714, 2
    %v1719 = vrot.slane %v1715, 2
    %v1720 = vsel %vm169, %v1718, %v1719
    %v1723 = vadd.f32 %v1710, %v1720
    %v1724 = vadd.f32 %v1711, %v1719
    %s1725 = sld [smem:[#allocation2 + $0x73]]
    %v1726 = vstv %s1725
    %v1727 = vmul.f32 %v72, %v1726
    %v1728 = vmul.f32 %v73, %v1726
    %v1731 = vrot.slane %v1727, 2
    %v1732 = vrot.slane %v1728, 2
    %v1733 = vsel %vm169, %v1731, %v1732
    %1734 = vrot.lane.b32.xlu0 %v1733, 127
    %v1735 = vpop.permute.xlu0 %1734
    %1736 = vrot.lane.b32.xlu0 %v1732, 127
    %v1737 = vpop.permute.xlu0 %1736
    %v1740 = vadd.f32 %v1723, %v1735
    %v1741 = vadd.f32 %v1724, %v1737
    %s1742 = sld [smem:[#allocation2 + $0x74]]
    %v1743 = vstv %s1742
    %v1744 = vmul.f32 %v72, %v1743
    %v1745 = vmul.f32 %v73, %v1743
    %v1748 = vrot.slane %v1744, 2
    %v1749 = vrot.slane %v1745, 2
    %v1750 = vsel %vm169, %v1748, %v1749
    %1751 = vrot.lane.b32.xlu0 %v1750, 126
    %v1752 = vpop.permute.xlu0 %1751
    %1753 = vrot.lane.b32.xlu0 %v1749, 126
    %v1754 = vpop.permute.xlu0 %1753
    %v1757 = vadd.f32 %v1740, %v1752
    %v1758 = vadd.f32 %v1741, %v1754
    %s1759 = sld [smem:[#allocation2 + $0x75]]
    %v1760 = vstv %s1759
    %v1761 = vmul.f32 %v75, %v1760
    %v1762 = vmul.f32 %v76, %v1760
    %v1763 = vadd.f32 %v1757, %v1761
    %v1764 = vadd.f32 %v1758, %v1762
    %s1765 = sld [smem:[#allocation2 + $0x76]]
    %v1766 = vstv %s1765
    %v1767 = vmul.f32 %v75, %v1766
    %v1768 = vmul.f32 %v76, %v1766
    %1771 = vrot.lane.b32.xlu0 %v1767, 127
    %v1772 = vpop.permute.xlu0 %1771
    %1773 = vrot.lane.b32.xlu0 %v1768, 127
    %v1774 = vpop.permute.xlu0 %1773
    %v1777 = vadd.f32 %v1763, %v1772
    %v1778 = vadd.f32 %v1764, %v1774
    %s1779 = sld [smem:[#allocation2 + $0x77]]
    %v1780 = vstv %s1779
    %v1781 = vmul.f32 %v75, %v1780
    %v1782 = vmul.f32 %v76, %v1780
    %1785 = vrot.lane.b32.xlu0 %v1781, 126
    %v1786 = vpop.permute.xlu0 %1785
    %1787 = vrot.lane.b32.xlu0 %v1782, 126
    %v1788 = vpop.permute.xlu0 %1787
    %v1791 = vadd.f32 %v1777, %v1786
    %v1792 = vadd.f32 %v1778, %v1788
    %s1793 = sld [smem:[#allocation2 + $0x78]]
    %v1794 = vstv %s1793
    %v1795 = vmul.f32 %v75, %v1794
    %v1796 = vmul.f32 %v76, %v1794
    %v1799 = vrot.slane %v1795, 1
    %v1800 = vrot.slane %v1796, 1
    %v1801 = vsel %vm121, %v1799, %v1800
    %v1804 = vadd.f32 %v1791, %v1801
    %v1805 = vadd.f32 %v1792, %v1800
    %s1806 = sld [smem:[#allocation2 + $0x79]]
    %v1807 = vstv %s1806
    %v1808 = vmul.f32 %v75, %v1807
    %v1809 = vmul.f32 %v76, %v1807
    %v1812 = vrot.slane %v1808, 1
    %v1813 = vrot.slane %v1809, 1
    %v1814 = vsel %vm121, %v1812, %v1813
    %1815 = vrot.lane.b32.xlu0 %v1814, 127
    %v1816 = vpop.permute.xlu0 %1815
    %1817 = vrot.lane.b32.xlu0 %v1813, 127
    %v1818 = vpop.permute.xlu0 %1817
    %v1821 = vadd.f32 %v1804, %v1816
    %v1822 = vadd.f32 %v1805, %v1818
    %s1823 = sld [smem:[#allocation2 + $0x7a]]
    %v1824 = vstv %s1823
    %v1825 = vmul.f32 %v75, %v1824
    %v1826 = vmul.f32 %v76, %v1824
    %v1829 = vrot.slane %v1825, 1
    %v1830 = vrot.slane %v1826, 1
    %v1831 = vsel %vm121, %v1829, %v1830
    %1832 = vrot.lane.b32.xlu0 %v1831, 126
    %v1833 = vpop.permute.xlu0 %1832
    %1834 = vrot.lane.b32.xlu0 %v1830, 126
    %v1835 = vpop.permute.xlu0 %1834
    %v1838 = vadd.f32 %v1821, %v1833
    %v1839 = vadd.f32 %v1822, %v1835
    %s1840 = sld [smem:[#allocation2 + $0x7b]]
    %v1841 = vstv %s1840
    %v1842 = vmul.f32 %v75, %v1841
    %v1843 = vmul.f32 %v76, %v1841
    %v1846 = vrot.slane %v1842, 2
    %v1847 = vrot.slane %v1843, 2
    %v1848 = vsel %vm169, %v1846, %v1847
    %v1851 = vadd.f32 %v1838, %v1848
    %v1852 = vadd.f32 %v1839, %v1847
    %s1853 = sld [smem:[#allocation2 + $0x7c]]
    %v1854 = vstv %s1853
    %v1855 = vmul.f32 %v75, %v1854
    %v1856 = vmul.f32 %v76, %v1854
    %v1859 = vrot.slane %v1855, 2
    %v1860 = vrot.slane %v1856, 2
    %v1861 = vsel %vm169, %v1859, %v1860
    %1862 = vrot.lane.b32.xlu0 %v1861, 127
    %v1863 = vpop.permute.xlu0 %1862
    %1864 = vrot.lane.b32.xlu0 %v1860, 127
    %v1865 = vpop.permute.xlu0 %1864
    %v1868 = vadd.f32 %v1851, %v1863
    %v1869 = vadd.f32 %v1852, %v1865
    %s1870 = sld [smem:[#allocation2 + $0x7d]]
    %v1871 = vstv %s1870
    %v1872 = vmul.f32 %v75, %v1871
    %v1873 = vmul.f32 %v76, %v1871
    %v1876 = vrot.slane %v1872, 2
    %v1877 = vrot.slane %v1873, 2
    %v1878 = vsel %vm169, %v1876, %v1877
    %1879 = vrot.lane.b32.xlu0 %v1878, 126
    %v1880 = vpop.permute.xlu0 %1879
    %1881 = vrot.lane.b32.xlu0 %v1877, 126
    %v1882 = vpop.permute.xlu0 %1881
    %v1885 = vadd.f32 %v1868, %v1880
    %v1886 = vadd.f32 %v1869, %v1882
    %s1887 = sld [smem:[#allocation2 + $0x7e]]
    %v1888 = vstv %s1887
    %v1889 = vmul.f32 %v78, %v1888
    %v1890 = vmul.f32 %v79, %v1888
    %v1891 = vadd.f32 %v1885, %v1889
    %v1892 = vadd.f32 %v1886, %v1890
    %s1893 = sld [smem:[#allocation2 + $0x7f]]
    %v1894 = vstv %s1893
    %v1895 = vmul.f32 %v78, %v1894
    %v1896 = vmul.f32 %v79, %v1894
    %1899 = vrot.lane.b32.xlu0 %v1895, 127
    %v1900 = vpop.permute.xlu0 %1899
    %1901 = vrot.lane.b32.xlu0 %v1896, 127
    %v1902 = vpop.permute.xlu0 %1901
    %v1905 = vadd.f32 %v1891, %v1900
    %v1906 = vadd.f32 %v1892, %v1902
    %s1907 = sld [smem:[#allocation2 + $0x80]]
    %v1908 = vstv %s1907
    %v1909 = vmul.f32 %v78, %v1908
    %v1910 = vmul.f32 %v79, %v1908
    %1913 = vrot.lane.b32.xlu0 %v1909, 126
    %v1914 = vpop.permute.xlu0 %1913
    %1915 = vrot.lane.b32.xlu0 %v1910, 126
    %v1916 = vpop.permute.xlu0 %1915
    %v1919 = vadd.f32 %v1905, %v1914
    %v1920 = vadd.f32 %v1906, %v1916
    %s1921 = sld [smem:[#allocation2 + $0x81]]
    %v1922 = vstv %s1921
    %v1923 = vmul.f32 %v78, %v1922
    %v1924 = vmul.f32 %v79, %v1922
    %v1927 = vrot.slane %v1923, 1
    %v1928 = vrot.slane %v1924, 1
    %v1929 = vsel %vm121, %v1927, %v1928
    %v1932 = vadd.f32 %v1919, %v1929
    %v1933 = vadd.f32 %v1920, %v1928
    %s1934 = sld [smem:[#allocation2 + $0x82]]
    %v1935 = vstv %s1934
    %v1936 = vmul.f32 %v78, %v1935
    %v1937 = vmul.f32 %v79, %v1935
    %v1940 = vrot.slane %v1936, 1
    %v1941 = vrot.slane %v1937, 1
    %v1942 = vsel %vm121, %v1940, %v1941
    %1943 = vrot.lane.b32.xlu0 %v1942, 127
    %v1944 = vpop.permute.xlu0 %1943
    %1945 = vrot.lane.b32.xlu0 %v1941, 127
    %v1946 = vpop.permute.xlu0 %1945
    %v1949 = vadd.f32 %v1932, %v1944
    %v1950 = vadd.f32 %v1933, %v1946
    %s1951 = sld [smem:[#allocation2 + $0x83]]
    %v1952 = vstv %s1951
    %v1953 = vmul.f32 %v78, %v1952
    %v1954 = vmul.f32 %v79, %v1952
    %v1957 = vrot.slane %v1953, 1
    %v1958 = vrot.slane %v1954, 1
    %v1959 = vsel %vm121, %v1957, %v1958
    %1960 = vrot.lane.b32.xlu0 %v1959, 126
    %v1961 = vpop.permute.xlu0 %1960
    %1962 = vrot.lane.b32.xlu0 %v1958, 126
    %v1963 = vpop.permute.xlu0 %1962
    %v1966 = vadd.f32 %v1949, %v1961
    %v1967 = vadd.f32 %v1950, %v1963
    %s1968 = sld [smem:[#allocation2 + $0x84]]
    %v1969 = vstv %s1968
    %v1970 = vmul.f32 %v78, %v1969
    %v1971 = vmul.f32 %v79, %v1969
    %v1974 = vrot.slane %v1970, 2
    %v1975 = vrot.slane %v1971, 2
    %v1976 = vsel %vm169, %v1974, %v1975
    %v1979 = vadd.f32 %v1966, %v1976
    %v1980 = vadd.f32 %v1967, %v1975
    %s1981 = sld [smem:[#allocation2 + $0x85]]
    %v1982 = vstv %s1981
    %v1983 = vmul.f32 %v78, %v1982
    %v1984 = vmul.f32 %v79, %v1982
    %v1987 = vrot.slane %v1983, 2
    %v1988 = vrot.slane %v1984, 2
    %v1989 = vsel %vm169, %v1987, %v1988
    %1990 = vrot.lane.b32.xlu0 %v1989, 127
    %v1991 = vpop.permute.xlu0 %1990
    %1992 = vrot.lane.b32.xlu0 %v1988, 127
    %v1993 = vpop.permute.xlu0 %1992
    %v1996 = vadd.f32 %v1979, %v1991
    %v1997 = vadd.f32 %v1980, %v1993
    %s1998 = sld [smem:[#allocation2 + $0x86]]
    %v1999 = vstv %s1998
    %v2000 = vmul.f32 %v78, %v1999
    %v2001 = vmul.f32 %v79, %v1999
    %v2004 = vrot.slane %v2000, 2
    %v2005 = vrot.slane %v2001, 2
    %v2006 = vsel %vm169, %v2004, %v2005
    %2007 = vrot.lane.b32.xlu0 %v2006, 126
    %v2008 = vpop.permute.xlu0 %2007
    %2009 = vrot.lane.b32.xlu0 %v2005, 126
    %v2010 = vpop.permute.xlu0 %2009
    %v2013 = vadd.f32 %v1996, %v2008
    %v2014 = vadd.f32 %v1997, %v2010
    %s2015 = sld [smem:[#allocation2 + $0x87]]
    %v2016 = vstv %s2015
    %v2017 = vmul.f32 %v81, %v2016
    %v2018 = vmul.f32 %v82, %v2016
    %v2019 = vadd.f32 %v2013, %v2017
    %v2020 = vadd.f32 %v2014, %v2018
    %s2021 = sld [smem:[#allocation2 + $0x88]]
    %v2022 = vstv %s2021
    %v2023 = vmul.f32 %v81, %v2022
    %v2024 = vmul.f32 %v82, %v2022
    %2027 = vrot.lane.b32.xlu0 %v2023, 127
    %v2028 = vpop.permute.xlu0 %2027
    %2029 = vrot.lane.b32.xlu0 %v2024, 127
    %v2030 = vpop.permute.xlu0 %2029
    %v2033 = vadd.f32 %v2019, %v2028
    %v2034 = vadd.f32 %v2020, %v2030
    %s2035 = sld [smem:[#allocation2 + $0x89]]
    %v2036 = vstv %s2035
    %v2037 = vmul.f32 %v81, %v2036
    %v2038 = vmul.f32 %v82, %v2036
    %2041 = vrot.lane.b32.xlu0 %v2037, 126
    %v2042 = vpop.permute.xlu0 %2041
    %2043 = vrot.lane.b32.xlu0 %v2038, 126
    %v2044 = vpop.permute.xlu0 %2043
    %v2047 = vadd.f32 %v2033, %v2042
    %v2048 = vadd.f32 %v2034, %v2044
    %s2049 = sld [smem:[#allocation2 + $0x8a]]
    %v2050 = vstv %s2049
    %v2051 = vmul.f32 %v81, %v2050
    %v2052 = vmul.f32 %v82, %v2050
    %v2055 = vrot.slane %v2051, 1
    %v2056 = vrot.slane %v2052, 1
    %v2057 = vsel %vm121, %v2055, %v2056
    %v2060 = vadd.f32 %v2047, %v2057
    %v2061 = vadd.f32 %v2048, %v2056
    %s2062 = sld [smem:[#allocation2 + $0x8b]]
    %v2063 = vstv %s2062
    %v2064 = vmul.f32 %v81, %v2063
    %v2065 = vmul.f32 %v82, %v2063
    %v2068 = vrot.slane %v2064, 1
    %v2069 = vrot.slane %v2065, 1
    %v2070 = vsel %vm121, %v2068, %v2069
    %2071 = vrot.lane.b32.xlu0 %v2070, 127
    %v2072 = vpop.permute.xlu0 %2071
    %2073 = vrot.lane.b32.xlu0 %v2069, 127
    %v2074 = vpop.permute.xlu0 %2073
    %v2077 = vadd.f32 %v2060, %v2072
    %v2078 = vadd.f32 %v2061, %v2074
    %s2079 = sld [smem:[#allocation2 + $0x8c]]
    %v2080 = vstv %s2079
    %v2081 = vmul.f32 %v81, %v2080
    %v2082 = vmul.f32 %v82, %v2080
    %v2085 = vrot.slane %v2081, 1
    %v2086 = vrot.slane %v2082, 1
    %v2087 = vsel %vm121, %v2085, %v2086
    %2088 = vrot.lane.b32.xlu0 %v2087, 126
    %v2089 = vpop.permute.xlu0 %2088
    %2090 = vrot.lane.b32.xlu0 %v2086, 126
    %v2091 = vpop.permute.xlu0 %2090
    %v2094 = vadd.f32 %v2077, %v2089
    %v2095 = vadd.f32 %v2078, %v2091
    %s2096 = sld [smem:[#allocation2 + $0x8d]]
    %v2097 = vstv %s2096
    %v2098 = vmul.f32 %v81, %v2097
    %v2099 = vmul.f32 %v82, %v2097
    %v2102 = vrot.slane %v2098, 2
    %v2103 = vrot.slane %v2099, 2
    %v2104 = vsel %vm169, %v2102, %v2103
    %v2107 = vadd.f32 %v2094, %v2104
    %v2108 = vadd.f32 %v2095, %v2103
    %s2109 = sld [smem:[#allocation2 + $0x8e]]
    %v2110 = vstv %s2109
    %v2111 = vmul.f32 %v81, %v2110
    %v2112 = vmul.f32 %v82, %v2110
    %v2115 = vrot.slane %v2111, 2
    %v2116 = vrot.slane %v2112, 2
    %v2117 = vsel %vm169, %v2115, %v2116
    %2118 = vrot.lane.b32.xlu0 %v2117, 127
    %v2119 = vpop.permute.xlu0 %2118
    %2120 = vrot.lane.b32.xlu0 %v2116, 127
    %v2121 = vpop.permute.xlu0 %2120
    %v2124 = vadd.f32 %v2107, %v2119
    %v2125 = vadd.f32 %v2108, %v2121
    %s2126 = sld [smem:[#allocation2 + $0x8f]]
    %v2127 = vstv %s2126
    %v2128 = vmul.f32 %v81, %v2127
    %v2129 = vmul.f32 %v82, %v2127
    %v2132 = vrot.slane %v2128, 2
    %v2133 = vrot.slane %v2129, 2
    %v2134 = vsel %vm169, %v2132, %v2133
    %2135 = vrot.lane.b32.xlu0 %v2134, 126
    %v2136 = vpop.permute.xlu0 %2135
    %2137 = vrot.lane.b32.xlu0 %v2133, 126
    %v2138 = vpop.permute.xlu0 %2137
    %v2141 = vadd.f32 %v2124, %v2136
    %v2142 = vadd.f32 %v2125, %v2138
    %s2143 = sld [smem:[#allocation5 + $0x3]]
    %v2144 = vstv %s2143
    %v2145 = vadd.f32 %v2141, %v2144
    %v2146 = vadd.f32 %v2142, %v2144
    %v2147 = vmax.f32 %v2145, 0.0
    %v2148 = vmax.f32 %v2146, 0.0
    %2151 = vrot.lane.b32.xlu0 %v599, 127
    %v2152 = vpop.permute.xlu0 %2151
    %2153 = vrot.lane.b32.xlu0 %v600, 127
    %v2154 = vpop.permute.xlu0 %2153
    %v2157 = vmax.f32 %v599, %v2152
    %v2158 = vmax.f32 %v600, %v2154
    %v2159 = vrot.slane %v599, 1
    %v2160 = vrot.slane %v600, 1
    %v2161 = vsel %vm121, %v2159, %v2160
    %v2164 = vmax.f32 %v2157, %v2161
    %v2165 = vmax.f32 %v2158, %v2160
    %2166 = vrot.lane.b32.xlu0 %v2161, 127
    %v2167 = vpop.permute.xlu0 %2166
    %2168 = vrot.lane.b32.xlu0 %v2160, 127
    %v2169 = vpop.permute.xlu0 %2168
    %v2172 = vmax.f32 %v2164, %v2167
    %v2173 = vmax.f32 %v2165, %v2169
    %2176 = vrot.lane.b32.xlu0 %v1115, 127
    %v2177 = vpop.permute.xlu0 %2176
    %2178 = vrot.lane.b32.xlu0 %v1116, 127
    %v2179 = vpop.permute.xlu0 %2178
    %v2182 = vmax.f32 %v1115, %v2177
    %v2183 = vmax.f32 %v1116, %v2179
    %v2184 = vrot.slane %v1115, 1
    %v2185 = vrot.slane %v1116, 1
    %v2186 = vsel %vm121, %v2184, %v2185
    %v2189 = vmax.f32 %v2182, %v2186
    %v2190 = vmax.f32 %v2183, %v2185
    %2191 = vrot.lane.b32.xlu0 %v2186, 127
    %v2192 = vpop.permute.xlu0 %2191
    %2193 = vrot.lane.b32.xlu0 %v2185, 127
    %v2194 = vpop.permute.xlu0 %2193
    %v2197 = vmax.f32 %v2189, %v2192
    %v2198 = vmax.f32 %v2190, %v2194
    %2201 = vrot.lane.b32.xlu0 %v1631, 127
    %v2202 = vpop.permute.xlu0 %2201
    %2203 = vrot.lane.b32.xlu0 %v1632, 127
    %v2204 = vpop.permute.xlu0 %2203
    %v2207 = vmax.f32 %v1631, %v2202
    %v2208 = vmax.f32 %v1632, %v2204
    %v2209 = vrot.slane %v1631, 1
    %v2210 = vrot.slane %v1632, 1
    %v2211 = vsel %vm121, %v2209, %v2210
    %v2214 = vmax.f32 %v2207, %v2211
    %v2215 = vmax.f32 %v2208, %v2210
    %2216 = vrot.lane.b32.xlu0 %v2211, 127
    %v2217 = vpop.permute.xlu0 %2216
    %2218 = vrot.lane.b32.xlu0 %v2210, 127
    %v2219 = vpop.permute.xlu0 %2218
    %v2222 = vmax.f32 %v2214, %v2217
    %v2223 = vmax.f32 %v2215, %v2219
    %2226 = vrot.lane.b32.xlu0 %v2147, 127
    %v2227 = vpop.permute.xlu0 %2226
    %2228 = vrot.lane.b32.xlu0 %v2148, 127
    %v2229 = vpop.permute.xlu0 %2228
    %v2232 = vmax.f32 %v2147, %v2227
    %v2233 = vmax.f32 %v2148, %v2229
    %v2234 = vrot.slane %v2147, 1
    %v2235 = vrot.slane %v2148, 1
    %v2236 = vsel %vm121, %v2234, %v2235
    %v2239 = vmax.f32 %v2232, %v2236
    %v2240 = vmax.f32 %v2233, %v2235
    %2241 = vrot.lane.b32.xlu0 %v2236, 127
    %v2242 = vpop.permute.xlu0 %2241
    %2243 = vrot.lane.b32.xlu0 %v2235, 127
    %v2244 = vpop.permute.xlu0 %2243
    %v2247 = vmax.f32 %v2239, %v2242
    %v2248 = vmax.f32 %v2240, %v2244
    %s2249 = sld [smem:[#allocation7]]
    %v2250 = vstv %s2249
    %v2251 = vmul.f32 %v2172, %v2250
    %v2252 = vmul.f32 %v2173, %v2250
    %s2253 = sld [smem:[#allocation7 + $0x1]]
    %v2254 = vstv %s2253
    %v2255 = vmul.f32 %v2172, %v2254
    %v2256 = vmul.f32 %v2173, %v2254
    %2259 = vrot.lane.b32.xlu0 %v2255, 126
    %v2260 = vpop.permute.xlu0 %2259
    %2261 = vrot.lane.b32.xlu0 %v2256, 126
    %v2262 = vpop.permute.xlu0 %2261
    %v2265 = vadd.f32 %v2251, %v2260
    %v2266 = vadd.f32 %v2252, %v2262
    %s2267 = sld [smem:[#allocation7 + $0x2]]
    %v2268 = vstv %s2267
    %v2269 = vmul.f32 %v2172, %v2268
    %v2270 = vmul.f32 %v2173, %v2268
    %2273 = vrot.lane.b32.xlu0 %v2269, 124
    %v2274 = vpop.permute.xlu0 %2273
    %2275 = vrot.lane.b32.xlu0 %v2270, 124
    %v2276 = vpop.permute.xlu0 %2275
    %v2279 = vadd.f32 %v2265, %v2274
    %v2280 = vadd.f32 %v2266, %v2276
    %s2281 = sld [smem:[#allocation7 + $0x3]]
    %v2282 = vstv %s2281
    %v2283 = vmul.f32 %v2172, %v2282
    %v2284 = vmul.f32 %v2173, %v2282
    %v2287 = vrot.slane %v2283, 2
    %v2288 = vrot.slane %v2284, 2
    %v2289 = vsel %vm169, %v2287, %v2288
    %v2292 = vadd.f32 %v2279, %v2289
    %v2293 = vadd.f32 %v2280, %v2288
    %s2294 = sld [smem:[#allocation7 + $0x4]]
    %v2295 = vstv %s2294
    %v2296 = vmul.f32 %v2172, %v2295
    %v2297 = vmul.f32 %v2173, %v2295
    %v2300 = vrot.slane %v2296, 2
    %v2301 = vrot.slane %v2297, 2
    %v2302 = vsel %vm169, %v2300, %v2301
    %2303 = vrot.lane.b32.xlu0 %v2302, 126
    %v2304 = vpop.permute.xlu0 %2303
    %2305 = vrot.lane.b32.xlu0 %v2301, 126
    %v2306 = vpop.permute.xlu0 %2305
    %v2309 = vadd.f32 %v2292, %v2304
    %v2310 = vadd.f32 %v2293, %v2306
    %s2311 = sld [smem:[#allocation7 + $0x5]]
    %v2312 = vstv %s2311
    %v2313 = vmul.f32 %v2172, %v2312
    %v2314 = vmul.f32 %v2173, %v2312
    %v2317 = vrot.slane %v2313, 2
    %v2318 = vrot.slane %v2314, 2
    %v2319 = vsel %vm169, %v2317, %v2318
    %2320 = vrot.lane.b32.xlu0 %v2319, 124
    %v2321 = vpop.permute.xlu0 %2320
    %2322 = vrot.lane.b32.xlu0 %v2318, 124
    %v2323 = vpop.permute.xlu0 %2322
    %v2326 = vadd.f32 %v2309, %v2321
    %v2327 = vadd.f32 %v2310, %v2323
    %s2328 = sld [smem:[#allocation7 + $0x6]]
    %v2329 = vstv %s2328
    %v2330 = vmul.f32 %v2172, %v2329
    %v2331 = vmul.f32 %v2173, %v2329
    %vm2334 = vcmask 1043456
    %v2335 = vrot.slane %v2330, 4
    %v2336 = vrot.slane %v2331, 4
    %v2337 = vsel %vm2334, %v2335, %v2336
    %v2340 = vadd.f32 %v2326, %v2337
    %v2341 = vadd.f32 %v2327, %v2336
    %s2342 = sld [smem:[#allocation7 + $0x7]]
    %v2343 = vstv %s2342
    %v2344 = vmul.f32 %v2172, %v2343
    %v2345 = vmul.f32 %v2173, %v2343
    %v2348 = vrot.slane %v2344, 4
    %v2349 = vrot.slane %v2345, 4
    %v2350 = vsel %vm2334, %v2348, %v2349
    %2351 = vrot.lane.b32.xlu0 %v2350, 126
    %v2352 = vpop.permute.xlu0 %2351
    %2353 = vrot.lane.b32.xlu0 %v2349, 126
    %v2354 = vpop.permute.xlu0 %2353
    %v2357 = vadd.f32 %v2340, %v2352
    %v2358 = vadd.f32 %v2341, %v2354
    %s2359 = sld [smem:[#allocation7 + $0x8]]
    %v2360 = vstv %s2359
    %v2361 = vmul.f32 %v2172, %v2360
    %v2362 = vmul.f32 %v2173, %v2360
    %v2365 = vrot.slane %v2361, 4
    %v2366 = vrot.slane %v2362, 4
    %v2367 = vsel %vm2334, %v2365, %v2366
    %2368 = vrot.lane.b32.xlu0 %v2367, 124
    %v2369 = vpop.permute.xlu0 %2368
    %2370 = vrot.lane.b32.xlu0 %v2366, 124
    %v2371 = vpop.permute.xlu0 %2370
    %v2374 = vadd.f32 %v2357, %v2369
    %v2375 = vadd.f32 %v2358, %v2371
    %s2376 = sld [smem:[#allocation7 + $0x9]]
    %v2377 = vstv %s2376
    %v2378 = vmul.f32 %v2197, %v2377
    %v2379 = vmul.f32 %v2198, %v2377
    %v2380 = vadd.f32 %v2374, %v2378
    %v2381 = vadd.f32 %v2375, %v2379
    %s2382 = sld [smem:[#allocation7 + $0xa]]
    %v2383 = vstv %s2382
    %v2384 = vmul.f32 %v2197, %v2383
    %v2385 = vmul.f32 %v2198, %v2383
    %2388 = vrot.lane.b32.xlu0 %v2384, 126
    %v2389 = vpop.permute.xlu0 %2388
    %2390 = vrot.lane.b32.xlu0 %v2385, 126
    %v2391 = vpop.permute.xlu0 %2390
    %v2394 = vadd.f32 %v2380, %v2389
    %v2395 = vadd.f32 %v2381, %v2391
    %s2396 = sld [smem:[#allocation7 + $0xb]]
    %v2397 = vstv %s2396
    %v2398 = vmul.f32 %v2197, %v2397
    %v2399 = vmul.f32 %v2198, %v2397
    %2402 = vrot.lane.b32.xlu0 %v2398, 124
    %v2403 = vpop.permute.xlu0 %2402
    %2404 = vrot.lane.b32.xlu0 %v2399, 124
    %v2405 = vpop.permute.xlu0 %2404
    %v2408 = vadd.f32 %v2394, %v2403
    %v2409 = vadd.f32 %v2395, %v2405
    %s2410 = sld [smem:[#allocation7 + $0xc]]
    %v2411 = vstv %s2410
    %v2412 = vmul.f32 %v2197, %v2411
    %v2413 = vmul.f32 %v2198, %v2411
    %v2416 = vrot.slane %v2412, 2
    %v2417 = vrot.slane %v2413, 2
    %v2418 = vsel %vm169, %v2416, %v2417
    %v2421 = vadd.f32 %v2408, %v2418
    %v2422 = vadd.f32 %v2409, %v2417
    %s2423 = sld [smem:[#allocation7 + $0xd]]
    %v2424 = vstv %s2423
    %v2425 = vmul.f32 %v2197, %v2424
    %v2426 = vmul.f32 %v2198, %v2424
    %v2429 = vrot.slane %v2425, 2
    %v2430 = vrot.slane %v2426, 2
    %v2431 = vsel %vm169, %v2429, %v2430
    %2432 = vrot.lane.b32.xlu0 %v2431, 126
    %v2433 = vpop.permute.xlu0 %2432
    %2434 = vrot.lane.b32.xlu0 %v2430, 126
    %v2435 = vpop.permute.xlu0 %2434
    %v2438 = vadd.f32 %v2421, %v2433
    %v2439 = vadd.f32 %v2422, %v2435
    %s2440 = sld [smem:[#allocation7 + $0xe]]
    %v2441 = vstv %s2440
    %v2442 = vmul.f32 %v2197, %v2441
    %v2443 = vmul.f32 %v2198, %v2441
    %v2446 = vrot.slane %v2442, 2
    %v2447 = vrot.slane %v2443, 2
    %v2448 = vsel %vm169, %v2446, %v2447
    %2449 = vrot.lane.b32.xlu0 %v2448, 124
    %v2450 = vpop.permute.xlu0 %2449
    %2451 = vrot.lane.b32.xlu0 %v2447, 124
    %v2452 = vpop.permute.xlu0 %2451
    %v2455 = vadd.f32 %v2438, %v2450
    %v2456 = vadd.f32 %v2439, %v2452
    %s2457 = sld [smem:[#allocation7 + $0xf]]
    %v2458 = vstv %s2457
    %v2459 = vmul.f32 %v2197, %v2458
    %v2460 = vmul.f32 %v2198, %v2458
    %v2463 = vrot.slane %v2459, 4
    %v2464 = vrot.slane %v2460, 4
    %v2465 = vsel %vm2334, %v2463, %v2464
    %v2468 = vadd.f32 %v2455, %v2465
    %v2469 = vadd.f32 %v2456, %v2464
    %s2470 = sld [smem:[#allocation7 + $0x10]]
    %v2471 = vstv %s2470
    %v2472 = vmul.f32 %v2197, %v2471
    %v2473 = vmul.f32 %v2198, %v2471
    %v2476 = vrot.slane %v2472, 4
    %v2477 = vrot.slane %v2473, 4
    %v2478 = vsel %vm2334, %v2476, %v2477
    %2479 = vrot.lane.b32.xlu0 %v2478, 126
    %v2480 = vpop.permute.xlu0 %2479
    %2481 = vrot.lane.b32.xlu0 %v2477, 126
    %v2482 = vpop.permute.xlu0 %2481
    %v2485 = vadd.f32 %v2468, %v2480
    %v2486 = vadd.f32 %v2469, %v2482
    %s2487 = sld [smem:[#allocation7 + $0x11]]
    %v2488 = vstv %s2487
    %v2489 = vmul.f32 %v2197, %v2488
    %v2490 = vmul.f32 %v2198, %v2488
    %v2493 = vrot.slane %v2489, 4
    %v2494 = vrot.slane %v2490, 4
    %v2495 = vsel %vm2334, %v2493, %v2494
    %2496 = vrot.lane.b32.xlu0 %v2495, 124
    %v2497 = vpop.permute.xlu0 %2496
    %2498 = vrot.lane.b32.xlu0 %v2494, 124
    %v2499 = vpop.permute.xlu0 %2498
    %v2502 = vadd.f32 %v2485, %v2497
    %v2503 = vadd.f32 %v2486, %v2499
    %s2504 = sld [smem:[#allocation7 + $0x12]]
    %v2505 = vstv %s2504
    %v2506 = vmul.f32 %v2222, %v2505
    %v2507 = vmul.f32 %v2223, %v2505
    %v2508 = vadd.f32 %v2502, %v2506
    %v2509 = vadd.f32 %v2503, %v2507
    %s2510 = sld [smem:[#allocation7 + $0x13]]
    %v2511 = vstv %s2510
    %v2512 = vmul.f32 %v2222, %v2511
    %v2513 = vmul.f32 %v2223, %v2511
    %2516 = vrot.lane.b32.xlu0 %v2512, 126
    %v2517 = vpop.permute.xlu0 %2516
    %2518 = vrot.lane.b32.xlu0 %v2513, 126
    %v2519 = vpop.permute.xlu0 %2518
    %v2522 = vadd.f32 %v2508, %v2517
    %v2523 = vadd.f32 %v2509, %v2519
    %s2524 = sld [smem:[#allocation7 + $0x14]]
    %v2525 = vstv %s2524
    %v2526 = vmul.f32 %v2222, %v2525
    %v2527 = vmul.f32 %v2223, %v2525
    %2530 = vrot.lane.b32.xlu0 %v2526, 124
    %v2531 = vpop.permute.xlu0 %2530
    %2532 = vrot.lane.b32.xlu0 %v2527, 124
    %v2533 = vpop.permute.xlu0 %2532
    %v2536 = vadd.f32 %v2522, %v2531
    %v2537 = vadd.f32 %v2523, %v2533
    %s2538 = sld [smem:[#allocation7 + $0x15]]
    %v2539 = vstv %s2538
    %v2540 = vmul.f32 %v2222, %v2539
    %v2541 = vmul.f32 %v2223, %v2539
    %v2544 = vrot.slane %v2540, 2
    %v2545 = vrot.slane %v2541, 2
    %v2546 = vsel %vm169, %v2544, %v2545
    %v2549 = vadd.f32 %v2536, %v2546
    %v2550 = vadd.f32 %v2537, %v2545
    %s2551 = sld [smem:[#allocation7 + $0x16]]
    %v2552 = vstv %s2551
    %v2553 = vmul.f32 %v2222, %v2552
    %v2554 = vmul.f32 %v2223, %v2552
    %v2557 = vrot.slane %v2553, 2
    %v2558 = vrot.slane %v2554, 2
    %v2559 = vsel %vm169, %v2557, %v2558
    %2560 = vrot.lane.b32.xlu0 %v2559, 126
    %v2561 = vpop.permute.xlu0 %2560
    %2562 = vrot.lane.b32.xlu0 %v2558, 126
    %v2563 = vpop.permute.xlu0 %2562
    %v2566 = vadd.f32 %v2549, %v2561
    %v2567 = vadd.f32 %v2550, %v2563
    %s2568 = sld [smem:[#allocation7 + $0x17]]
    %v2569 = vstv %s2568
    %v2570 = vmul.f32 %v2222, %v2569
    %v2571 = vmul.f32 %v2223, %v2569
    %v2574 = vrot.slane %v2570, 2
    %v2575 = vrot.slane %v2571, 2
    %v2576 = vsel %vm169, %v2574, %v2575
    %2577 = vrot.lane.b32.xlu0 %v2576, 124
    %v2578 = vpop.permute.xlu0 %2577
    %2579 = vrot.lane.b32.xlu0 %v2575, 124
    %v2580 = vpop.permute.xlu0 %2579
    %v2583 = vadd.f32 %v2566, %v2578
    %v2584 = vadd.f32 %v2567, %v2580
    %s2585 = sld [smem:[#allocation7 + $0x18]]
    %v2586 = vstv %s2585
    %v2587 = vmul.f32 %v2222, %v2586
    %v2588 = vmul.f32 %v2223, %v2586
    %v2591 = vrot.slane %v2587, 4
    %v2592 = vrot.slane %v2588, 4
    %v2593 = vsel %vm2334, %v2591, %v2592
    %v2596 = vadd.f32 %v2583, %v2593
    %v2597 = vadd.f32 %v2584, %v2592
    %s2598 = sld [smem:[#allocation7 + $0x19]]
    %v2599 = vstv %s2598
    %v2600 = vmul.f32 %v2222, %v2599
    %v2601 = vmul.f32 %v2223, %v2599
    %v2604 = vrot.slane %v2600, 4
    %v2605 = vrot.slane %v2601, 4
    %v2606 = vsel %vm2334, %v2604, %v2605
    %2607 = vrot.lane.b32.xlu0 %v2606, 126
    %v2608 = vpop.permute.xlu0 %2607
    %2609 = vrot.lane.b32.xlu0 %v2605, 126
    %v2610 = vpop.permute.xlu0 %2609
    %v2613 = vadd.f32 %v2596, %v2608
    %v2614 = vadd.f32 %v2597, %v2610
    %s2615 = sld [smem:[#allocation7 + $0x1a]]
    %v2616 = vstv %s2615
    %v2617 = vmul.f32 %v2222, %v2616
    %v2618 = vmul.f32 %v2223, %v2616
    %v2621 = vrot.slane %v2617, 4
    %v2622 = vrot.slane %v2618, 4
    %v2623 = vsel %vm2334, %v2621, %v2622
    %2624 = vrot.lane.b32.xlu0 %v2623, 124
    %v2625 = vpop.permute.xlu0 %2624
    %2626 = vrot.lane.b32.xlu0 %v2622, 124
    %v2627 = vpop.permute.xlu0 %2626
    %v2630 = vadd.f32 %v2613, %v2625
    %v2631 = vadd.f32 %v2614, %v2627
    %s2632 = sld [smem:[#allocation7 + $0x1b]]
    %v2633 = vstv %s2632
    %v2634 = vmul.f32 %v2247, %v2633
    %v2635 = vmul.f32 %v2248, %v2633
    %v2636 = vadd.f32 %v2630, %v2634
    %v2637 = vadd.f32 %v2631, %v2635
    %s2638 = sld [smem:[#allocation7 + $0x1c]]
    %v2639 = vstv %s2638
    %v2640 = vmul.f32 %v2247, %v2639
    %v2641 = vmul.f32 %v2248, %v2639
    %2644 = vrot.lane.b32.xlu0 %v2640, 126
    %v2645 = vpop.permute.xlu0 %2644
    %2646 = vrot.lane.b32.xlu0 %v2641, 126
    %v2647 = vpop.permute.xlu0 %2646
    %v2650 = vadd.f32 %v2636, %v2645
    %v2651 = vadd.f32 %v2637, %v2647
    %s2652 = sld [smem:[#allocation7 + $0x1d]]
    %v2653 = vstv %s2652
    %v2654 = vmul.f32 %v2247, %v2653
    %v2655 = vmul.f32 %v2248, %v2653
    %2658 = vrot.lane.b32.xlu0 %v2654, 124
    %v2659 = vpop.permute.xlu0 %2658
    %2660 = vrot.lane.b32.xlu0 %v2655, 124
    %v2661 = vpop.permute.xlu0 %2660
    %v2664 = vadd.f32 %v2650, %v2659
    %v2665 = vadd.f32 %v2651, %v2661
    %s2666 = sld [smem:[#allocation7 + $0x1e]]
    %v2667 = vstv %s2666
    %v2668 = vmul.f32 %v2247, %v2667
    %v2669 = vmul.f32 %v2248, %v2667
    %v2672 = vrot.slane %v2668, 2
    %v2673 = vrot.slane %v2669, 2
    %v2674 = vsel %vm169, %v2672, %v2673
    %v2677 = vadd.f32 %v2664, %v2674
    %v2678 = vadd.f32 %v2665, %v2673
    %s2679 = sld [smem:[#allocation7 + $0x1f]]
    %v2680 = vstv %s2679
    %v2681 = vmul.f32 %v2247, %v2680
    %v2682 = vmul.f32 %v2248, %v2680
    %v2685 = vrot.slane %v2681, 2
    %v2686 = vrot.slane %v2682, 2
    %v2687 = vsel %vm169, %v2685, %v2686
    %2688 = vrot.lane.b32.xlu0 %v2687, 126
    %v2689 = vpop.permute.xlu0 %2688
    %2690 = vrot.lane.b32.xlu0 %v2686, 126
    %v2691 = vpop.permute.xlu0 %2690
    %v2694 = vadd.f32 %v2677, %v2689
    %v2695 = vadd.f32 %v2678, %v2691
    %s2696 = sld [smem:[#allocation7 + $0x20]]
    %v2697 = vstv %s2696
    %v2698 = vmul.f32 %v2247, %v2697
    %v2699 = vmul.f32 %v2248, %v2697
    %v2702 = vrot.slane %v2698, 2
    %v2703 = vrot.slane %v2699, 2
    %v2704 = vsel %vm169, %v2702, %v2703
    %2705 = vrot.lane.b32.xlu0 %v2704, 124
    %v2706 = vpop.permute.xlu0 %2705
    %2707 = vrot.lane.b32.xlu0 %v2703, 124
    %v2708 = vpop.permute.xlu0 %2707
    %v2711 = vadd.f32 %v2694, %v2706
    %v2712 = vadd.f32 %v2695, %v2708
    %s2713 = sld [smem:[#allocation7 + $0x21]]
    %v2714 = vstv %s2713
    %v2715 = vmul.f32 %v2247, %v2714
    %v2716 = vmul.f32 %v2248, %v2714
    %v2719 = vrot.slane %v2715, 4
    %v2720 = vrot.slane %v2716, 4
    %v2721 = vsel %vm2334, %v2719, %v2720
    %v2724 = vadd.f32 %v2711, %v2721
    %v2725 = vadd.f32 %v2712, %v2720
    %s2726 = sld [smem:[#allocation7 + $0x22]]
    %v2727 = vstv %s2726
    %v2728 = vmul.f32 %v2247, %v2727
    %v2729 = vmul.f32 %v2248, %v2727
    %v2732 = vrot.slane %v2728, 4
    %v2733 = vrot.slane %v2729, 4
    %v2734 = vsel %vm2334, %v2732, %v2733
    %2735 = vrot.lane.b32.xlu0 %v2734, 126
    %v2736 = vpop.permute.xlu0 %2735
    %2737 = vrot.lane.b32.xlu0 %v2733, 126
    %v2738 = vpop.permute.xlu0 %2737
    %v2741 = vadd.f32 %v2724, %v2736
    %v2742 = vadd.f32 %v2725, %v2738
    %s2743 = sld [smem:[#allocation7 + $0x23]]
    %v2744 = vstv %s2743
    %v2745 = vmul.f32 %v2247, %v2744
    %v2746 = vmul.f32 %v2248, %v2744
    %v2749 = vrot.slane %v2745, 4
    %v2750 = vrot.slane %v2746, 4
    %v2751 = vsel %vm2334, %v2749, %v2750
    %2752 = vrot.lane.b32.xlu0 %v2751, 124
    %v2753 = vpop.permute.xlu0 %2752
    %2754 = vrot.lane.b32.xlu0 %v2750, 124
    %v2755 = vpop.permute.xlu0 %2754
    %v2758 = vadd.f32 %v2741, %v2753
    %v2759 = vadd.f32 %v2742, %v2755
    %s2760 = sld [smem:[#allocation8]]
    %v2761 = vstv %s2760
    %v2762 = vadd.f32 %v2758, %v2761
    %v2763 = vadd.f32 %v2759, %v2761
    %v2764 = vmax.f32 %v2762, 0.0
    %v2765 = vmax.f32 %v2763, 0.0
    %s2766 = sld [smem:[#allocation7 + $0x24]]
    %v2767 = vstv %s2766
    %v2768 = vmul.f32 %v2172, %v2767
    %v2769 = vmul.f32 %v2173, %v2767
    %s2770 = sld [smem:[#allocation7 + $0x25]]
    %v2771 = vstv %s2770
    %v2772 = vmul.f32 %v2172, %v2771
    %v2773 = vmul.f32 %v2173, %v2771
    %2776 = vrot.lane.b32.xlu0 %v2772, 126
    %v2777 = vpop.permute.xlu0 %2776
    %2778 = vrot.lane.b32.xlu0 %v2773, 126
    %v2779 = vpop.permute.xlu0 %2778
    %v2782 = vadd.f32 %v2768, %v2777
    %v2783 = vadd.f32 %v2769, %v2779
    %s2784 = sld [smem:[#allocation7 + $0x26]]
    %v2785 = vstv %s2784
    %v2786 = vmul.f32 %v2172, %v2785
    %v2787 = vmul.f32 %v2173, %v2785
    %2790 = vrot.lane.b32.xlu0 %v2786, 124
    %v2791 = vpop.permute.xlu0 %2790
    %2792 = vrot.lane.b32.xlu0 %v2787, 124
    %v2793 = vpop.permute.xlu0 %2792
    %v2796 = vadd.f32 %v2782, %v2791
    %v2797 = vadd.f32 %v2783, %v2793
    %s2798 = sld [smem:[#allocation7 + $0x27]]
    %v2799 = vstv %s2798
    %v2800 = vmul.f32 %v2172, %v2799
    %v2801 = vmul.f32 %v2173, %v2799
    %v2804 = vrot.slane %v2800, 2
    %v2805 = vrot.slane %v2801, 2
    %v2806 = vsel %vm169, %v2804, %v2805
    %v2809 = vadd.f32 %v2796, %v2806
    %v2810 = vadd.f32 %v2797, %v2805
    %s2811 = sld [smem:[#allocation7 + $0x28]]
    %v2812 = vstv %s2811
    %v2813 = vmul.f32 %v2172, %v2812
    %v2814 = vmul.f32 %v2173, %v2812
    %v2817 = vrot.slane %v2813, 2
    %v2818 = vrot.slane %v2814, 2
    %v2819 = vsel %vm169, %v2817, %v2818
    %2820 = vrot.lane.b32.xlu0 %v2819, 126
    %v2821 = vpop.permute.xlu0 %2820
    %2822 = vrot.lane.b32.xlu0 %v2818, 126
    %v2823 = vpop.permute.xlu0 %2822
    %v2826 = vadd.f32 %v2809, %v2821
    %v2827 = vadd.f32 %v2810, %v2823
    %s2828 = sld [smem:[#allocation7 + $0x29]]
    %v2829 = vstv %s2828
    %v2830 = vmul.f32 %v2172, %v2829
    %v2831 = vmul.f32 %v2173, %v2829
    %v2834 = vrot.slane %v2830, 2
    %v2835 = vrot.slane %v2831, 2
    %v2836 = vsel %vm169, %v2834, %v2835
    %2837 = vrot.lane.b32.xlu0 %v2836, 124
    %v2838 = vpop.permute.xlu0 %2837
    %2839 = vrot.lane.b32.xlu0 %v2835, 124
    %v2840 = vpop.permute.xlu0 %2839
    %v2843 = vadd.f32 %v2826, %v2838
    %v2844 = vadd.f32 %v2827, %v2840
    %s2845 = sld [smem:[#allocation7 + $0x2a]]
    %v2846 = vstv %s2845
    %v2847 = vmul.f32 %v2172, %v2846
    %v2848 = vmul.f32 %v2173, %v2846
    %v2851 = vrot.slane %v2847, 4
    %v2852 = vrot.slane %v2848, 4
    %v2853 = vsel %vm2334, %v2851, %v2852
    %v2856 = vadd.f32 %v2843, %v2853
    %v2857 = vadd.f32 %v2844, %v2852
    %s2858 = sld [smem:[#allocation7 + $0x2b]]
    %v2859 = vstv %s2858
    %v2860 = vmul.f32 %v2172, %v2859
    %v2861 = vmul.f32 %v2173, %v2859
    %v2864 = vrot.slane %v2860, 4
    %v2865 = vrot.slane %v2861, 4
    %v2866 = vsel %vm2334, %v2864, %v2865
    %2867 = vrot.lane.b32.xlu0 %v2866, 126
    %v2868 = vpop.permute.xlu0 %2867
    %2869 = vrot.lane.b32.xlu0 %v2865, 126
    %v2870 = vpop.permute.xlu0 %2869
    %v2873 = vadd.f32 %v2856, %v2868
    %v2874 = vadd.f32 %v2857, %v2870
    %s2875 = sld [smem:[#allocation7 + $0x2c]]
    %v2876 = vstv %s2875
    %v2877 = vmul.f32 %v2172, %v2876
    %v2878 = vmul.f32 %v2173, %v2876
    %v2881 = vrot.slane %v2877, 4
    %v2882 = vrot.slane %v2878, 4
    %v2883 = vsel %vm2334, %v2881, %v2882
    %2884 = vrot.lane.b32.xlu0 %v2883, 124
    %v2885 = vpop.permute.xlu0 %2884
    %2886 = vrot.lane.b32.xlu0 %v2882, 124
    %v2887 = vpop.permute.xlu0 %2886
    %v2890 = vadd.f32 %v2873, %v2885
    %v2891 = vadd.f32 %v2874, %v2887
    %s2892 = sld [smem:[#allocation7 + $0x2d]]
    %v2893 = vstv %s2892
    %v2894 = vmul.f32 %v2197, %v2893
    %v2895 = vmul.f32 %v2198, %v2893
    %v2896 = vadd.f32 %v2890, %v2894
    %v2897 = vadd.f32 %v2891, %v2895
    %s2898 = sld [smem:[#allocation7 + $0x2e]]
    %v2899 = vstv %s2898
    %v2900 = vmul.f32 %v2197, %v2899
    %v2901 = vmul.f32 %v2198, %v2899
    %2904 = vrot.lane.b32.xlu0 %v2900, 126
    %v2905 = vpop.permute.xlu0 %2904
    %2906 = vrot.lane.b32.xlu0 %v2901, 126
    %v2907 = vpop.permute.xlu0 %2906
    %v2910 = vadd.f32 %v2896, %v2905
    %v2911 = vadd.f32 %v2897, %v2907
    %s2912 = sld [smem:[#allocation7 + $0x2f]]
    %v2913 = vstv %s2912
    %v2914 = vmul.f32 %v2197, %v2913
    %v2915 = vmul.f32 %v2198, %v2913
    %2918 = vrot.lane.b32.xlu0 %v2914, 124
    %v2919 = vpop.permute.xlu0 %2918
    %2920 = vrot.lane.b32.xlu0 %v2915, 124
    %v2921 = vpop.permute.xlu0 %2920
    %v2924 = vadd.f32 %v2910, %v2919
    %v2925 = vadd.f32 %v2911, %v2921
    %s2926 = sld [smem:[#allocation7 + $0x30]]
    %v2927 = vstv %s2926
    %v2928 = vmul.f32 %v2197, %v2927
    %v2929 = vmul.f32 %v2198, %v2927
    %v2932 = vrot.slane %v2928, 2
    %v2933 = vrot.slane %v2929, 2
    %v2934 = vsel %vm169, %v2932, %v2933
    %v2937 = vadd.f32 %v2924, %v2934
    %v2938 = vadd.f32 %v2925, %v2933
    %s2939 = sld [smem:[#allocation7 + $0x31]]
    %v2940 = vstv %s2939
    %v2941 = vmul.f32 %v2197, %v2940
    %v2942 = vmul.f32 %v2198, %v2940
    %v2945 = vrot.slane %v2941, 2
    %v2946 = vrot.slane %v2942, 2
    %v2947 = vsel %vm169, %v2945, %v2946
    %2948 = vrot.lane.b32.xlu0 %v2947, 126
    %v2949 = vpop.permute.xlu0 %2948
    %2950 = vrot.lane.b32.xlu0 %v2946, 126
    %v2951 = vpop.permute.xlu0 %2950
    %v2954 = vadd.f32 %v2937, %v2949
    %v2955 = vadd.f32 %v2938, %v2951
    %s2956 = sld [smem:[#allocation7 + $0x32]]
    %v2957 = vstv %s2956
    %v2958 = vmul.f32 %v2197, %v2957
    %v2959 = vmul.f32 %v2198, %v2957
    %v2962 = vrot.slane %v2958, 2
    %v2963 = vrot.slane %v2959, 2
    %v2964 = vsel %vm169, %v2962, %v2963
    %2965 = vrot.lane.b32.xlu0 %v2964, 124
    %v2966 = vpop.permute.xlu0 %2965
    %2967 = vrot.lane.b32.xlu0 %v2963, 124
    %v2968 = vpop.permute.xlu0 %2967
    %v2971 = vadd.f32 %v2954, %v2966
    %v2972 = vadd.f32 %v2955, %v2968
    %s2973 = sld [smem:[#allocation7 + $0x33]]
    %v2974 = vstv %s2973
    %v2975 = vmul.f32 %v2197, %v2974
    %v2976 = vmul.f32 %v2198, %v2974
    %v2979 = vrot.slane %v2975, 4
    %v2980 = vrot.slane %v2976, 4
    %v2981 = vsel %vm2334, %v2979, %v2980
    %v2984 = vadd.f32 %v2971, %v2981
    %v2985 = vadd.f32 %v2972, %v2980
    %s2986 = sld [smem:[#allocation7 + $0x34]]
    %v2987 = vstv %s2986
    %v2988 = vmul.f32 %v2197, %v2987
    %v2989 = vmul.f32 %v2198, %v2987
    %v2992 = vrot.slane %v2988, 4
    %v2993 = vrot.slane %v2989, 4
    %v2994 = vsel %vm2334, %v2992, %v2993
    %2995 = vrot.lane.b32.xlu0 %v2994, 126
    %v2996 = vpop.permute.xlu0 %2995
    %2997 = vrot.lane.b32.xlu0 %v2993, 126
    %v2998 = vpop.permute.xlu0 %2997
    %v3001 = vadd.f32 %v2984, %v2996
    %v3002 = vadd.f32 %v2985, %v2998
    %s3003 = sld [smem:[#allocation7 + $0x35]]
    %v3004 = vstv %s3003
    %v3005 = vmul.f32 %v2197, %v3004
    %v3006 = vmul.f32 %v2198, %v3004
    %v3009 = vrot.slane %v3005, 4
    %v3010 = vrot.slane %v3006, 4
    %v3011 = vsel %vm2334, %v3009, %v3010
    %3012 = vrot.lane.b32.xlu0 %v3011, 124
    %v3013 = vpop.permute.xlu0 %3012
    %3014 = vrot.lane.b32.xlu0 %v3010, 124
    %v3015 = vpop.permute.xlu0 %3014
    %v3018 = vadd.f32 %v3001, %v3013
    %v3019 = vadd.f32 %v3002, %v3015
    %s3020 = sld [smem:[#allocation7 + $0x36]]
    %v3021 = vstv %s3020
    %v3022 = vmul.f32 %v2222, %v3021
    %v3023 = vmul.f32 %v2223, %v3021
    %v3024 = vadd.f32 %v3018, %v3022
    %v3025 = vadd.f32 %v3019, %v3023
    %s3026 = sld [smem:[#allocation7 + $0x37]]
    %v3027 = vstv %s3026
    %v3028 = vmul.f32 %v2222, %v3027
    %v3029 = vmul.f32 %v2223, %v3027
    %3032 = vrot.lane.b32.xlu0 %v3028, 126
    %v3033 = vpop.permute.xlu0 %3032
    %3034 = vrot.lane.b32.xlu0 %v3029, 126
    %v3035 = vpop.permute.xlu0 %3034
    %v3038 = vadd.f32 %v3024, %v3033
    %v3039 = vadd.f32 %v3025, %v3035
    %s3040 = sld [smem:[#allocation7 + $0x38]]
    %v3041 = vstv %s3040
    %v3042 = vmul.f32 %v2222, %v3041
    %v3043 = vmul.f32 %v2223, %v3041
    %3046 = vrot.lane.b32.xlu0 %v3042, 124
    %v3047 = vpop.permute.xlu0 %3046
    %3048 = vrot.lane.b32.xlu0 %v3043, 124
    %v3049 = vpop.permute.xlu0 %3048
    %v3052 = vadd.f32 %v3038, %v3047
    %v3053 = vadd.f32 %v3039, %v3049
    %s3054 = sld [smem:[#allocation7 + $0x39]]
    %v3055 = vstv %s3054
    %v3056 = vmul.f32 %v2222, %v3055
    %v3057 = vmul.f32 %v2223, %v3055
    %v3060 = vrot.slane %v3056, 2
    %v3061 = vrot.slane %v3057, 2
    %v3062 = vsel %vm169, %v3060, %v3061
    %v3065 = vadd.f32 %v3052, %v3062
    %v3066 = vadd.f32 %v3053, %v3061
    %s3067 = sld [smem:[#allocation7 + $0x3a]]
    %v3068 = vstv %s3067
    %v3069 = vmul.f32 %v2222, %v3068
    %v3070 = vmul.f32 %v2223, %v3068
    %v3073 = vrot.slane %v3069, 2
    %v3074 = vrot.slane %v3070, 2
    %v3075 = vsel %vm169, %v3073, %v3074
    %3076 = vrot.lane.b32.xlu0 %v3075, 126
    %v3077 = vpop.permute.xlu0 %3076
    %3078 = vrot.lane.b32.xlu0 %v3074, 126
    %v3079 = vpop.permute.xlu0 %3078
    %v3082 = vadd.f32 %v3065, %v3077
    %v3083 = vadd.f32 %v3066, %v3079
    %s3084 = sld [smem:[#allocation7 + $0x3b]]
    %v3085 = vstv %s3084
    %v3086 = vmul.f32 %v2222, %v3085
    %v3087 = vmul.f32 %v2223, %v3085
    %v3090 = vrot.slane %v3086, 2
    %v3091 = vrot.slane %v3087, 2
    %v3092 = vsel %vm169, %v3090, %v3091
    %3093 = vrot.lane.b32.xlu0 %v3092, 124
    %v3094 = vpop.permute.xlu0 %3093
    %3095 = vrot.lane.b32.xlu0 %v3091, 124
    %v3096 = vpop.permute.xlu0 %3095
    %v3099 = vadd.f32 %v3082, %v3094
    %v3100 = vadd.f32 %v3083, %v3096
    %s3101 = sld [smem:[#allocation7 + $0x3c]]
    %v3102 = vstv %s3101
    %v3103 = vmul.f32 %v2222, %v3102
    %v3104 = vmul.f32 %v2223, %v3102
    %v3107 = vrot.slane %v3103, 4
    %v3108 = vrot.slane %v3104, 4
    %v3109 = vsel %vm2334, %v3107, %v3108
    %v3112 = vadd.f32 %v3099, %v3109
    %v3113 = vadd.f32 %v3100, %v3108
    %s3114 = sld [smem:[#allocation7 + $0x3d]]
    %v3115 = vstv %s3114
    %v3116 = vmul.f32 %v2222, %v3115
    %v3117 = vmul.f32 %v2223, %v3115
    %v3120 = vrot.slane %v3116, 4
    %v3121 = vrot.slane %v3117, 4
    %v3122 = vsel %vm2334, %v3120, %v3121
    %3123 = vrot.lane.b32.xlu0 %v3122, 126
    %v3124 = vpop.permute.xlu0 %3123
    %3125 = vrot.lane.b32.xlu0 %v3121, 126
    %v3126 = vpop.permute.xlu0 %3125
    %v3129 = vadd.f32 %v3112, %v3124
    %v3130 = vadd.f32 %v3113, %v3126
    %s3131 = sld [smem:[#allocation7 + $0x3e]]
    %v3132 = vstv %s3131
    %v3133 = vmul.f32 %v2222, %v3132
    %v3134 = vmul.f32 %v2223, %v3132
    %v3137 = vrot.slane %v3133, 4
    %v3138 = vrot.slane %v3134, 4
    %v3139 = vsel %vm2334, %v3137, %v3138
    %3140 = vrot.lane.b32.xlu0 %v3139, 124
    %v3141 = vpop.permute.xlu0 %3140
    %3142 = vrot.lane.b32.xlu0 %v3138, 124
    %v3143 = vpop.permute.xlu0 %3142
    %v3146 = vadd.f32 %v3129, %v3141
    %v3147 = vadd.f32 %v3130, %v3143
    %s3148 = sld [smem:[#allocation7 + $0x3f]]
    %v3149 = vstv %s3148
    %v3150 = vmul.f32 %v2247, %v3149
    %v3151 = vmul.f32 %v2248, %v3149
    %v3152 = vadd.f32 %v3146, %v3150
    %v3153 = vadd.f32 %v3147, %v3151
    %s3154 = sld [smem:[#allocation7 + $0x40]]
    %v3155 = vstv %s3154
    %v3156 = vmul.f32 %v2247, %v3155
    %v3157 = vmul.f32 %v2248, %v3155
    %3160 = vrot.lane.b32.xlu0 %v3156, 126
    %v3161 = vpop.permute.xlu0 %3160
    %3162 = vrot.lane.b32.xlu0 %v3157, 126
    %v3163 = vpop.permute.xlu0 %3162
    %v3166 = vadd.f32 %v3152, %v3161
    %v3167 = vadd.f32 %v3153, %v3163
    %s3168 = sld [smem:[#allocation7 + $0x41]]
    %v3169 = vstv %s3168
    %v3170 = vmul.f32 %v2247, %v3169
    %v3171 = vmul.f32 %v2248, %v3169
    %3174 = vrot.lane.b32.xlu0 %v3170, 124
    %v3175 = vpop.permute.xlu0 %3174
    %3176 = vrot.lane.b32.xlu0 %v3171, 124
    %v3177 = vpop.permute.xlu0 %3176
    %v3180 = vadd.f32 %v3166, %v3175
    %v3181 = vadd.f32 %v3167, %v3177
    %s3182 = sld [smem:[#allocation7 + $0x42]]
    %v3183 = vstv %s3182
    %v3184 = vmul.f32 %v2247, %v3183
    %v3185 = vmul.f32 %v2248, %v3183
    %v3188 = vrot.slane %v3184, 2
    %v3189 = vrot.slane %v3185, 2
    %v3190 = vsel %vm169, %v3188, %v3189
    %v3193 = vadd.f32 %v3180, %v3190
    %v3194 = vadd.f32 %v3181, %v3189
    %s3195 = sld [smem:[#allocation7 + $0x43]]
    %v3196 = vstv %s3195
    %v3197 = vmul.f32 %v2247, %v3196
    %v3198 = vmul.f32 %v2248, %v3196
    %v3201 = vrot.slane %v3197, 2
    %v3202 = vrot.slane %v3198, 2
    %v3203 = vsel %vm169, %v3201, %v3202
    %3204 = vrot.lane.b32.xlu0 %v3203, 126
    %v3205 = vpop.permute.xlu0 %3204
    %3206 = vrot.lane.b32.xlu0 %v3202, 126
    %v3207 = vpop.permute.xlu0 %3206
    %v3210 = vadd.f32 %v3193, %v3205
    %v3211 = vadd.f32 %v3194, %v3207
    %s3212 = sld [smem:[#allocation7 + $0x44]]
    %v3213 = vstv %s3212
    %v3214 = vmul.f32 %v2247, %v3213
    %v3215 = vmul.f32 %v2248, %v3213
    %v3218 = vrot.slane %v3214, 2
    %v3219 = vrot.slane %v3215, 2
    %v3220 = vsel %vm169, %v3218, %v3219
    %3221 = vrot.lane.b32.xlu0 %v3220, 124
    %v3222 = vpop.permute.xlu0 %3221
    %3223 = vrot.lane.b32.xlu0 %v3219, 124
    %v3224 = vpop.permute.xlu0 %3223
    %v3227 = vadd.f32 %v3210, %v3222
    %v3228 = vadd.f32 %v3211, %v3224
    %s3229 = sld [smem:[#allocation7 + $0x45]]
    %v3230 = vstv %s3229
    %v3231 = vmul.f32 %v2247, %v3230
    %v3232 = vmul.f32 %v2248, %v3230
    %v3235 = vrot.slane %v3231, 4
    %v3236 = vrot.slane %v3232, 4
    %v3237 = vsel %vm2334, %v3235, %v3236
    %v3240 = vadd.f32 %v3227, %v3237
    %v3241 = vadd.f32 %v3228, %v3236
    %s3242 = sld [smem:[#allocation7 + $0x46]]
    %v3243 = vstv %s3242
    %v3244 = vmul.f32 %v2247, %v3243
    %v3245 = vmul.f32 %v2248, %v3243
    %v3248 = vrot.slane %v3244, 4
    %v3249 = vrot.slane %v3245, 4
    %v3250 = vsel %vm2334, %v3248, %v3249
    %3251 = vrot.lane.b32.xlu0 %v3250, 126
    %v3252 = vpop.permute.xlu0 %3251
    %3253 = vrot.lane.b32.xlu0 %v3249, 126
    %v3254 = vpop.permute.xlu0 %3253
    %v3257 = vadd.f32 %v3240, %v3252
    %v3258 = vadd.f32 %v3241, %v3254
    %s3259 = sld [smem:[#allocation7 + $0x47]]
    %v3260 = vstv %s3259
    %v3261 = vmul.f32 %v2247, %v3260
    %v3262 = vmul.f32 %v2248, %v3260
    %v3265 = vrot.slane %v3261, 4
    %v3266 = vrot.slane %v3262, 4
    %v3267 = vsel %vm2334, %v3265, %v3266
    %3268 = vrot.lane.b32.xlu0 %v3267, 124
    %v3269 = vpop.permute.xlu0 %3268
    %3270 = vrot.lane.b32.xlu0 %v3266, 124
    %v3271 = vpop.permute.xlu0 %3270
    %v3274 = vadd.f32 %v3257, %v3269
    %v3275 = vadd.f32 %v3258, %v3271
    %s3276 = sld [smem:[#allocation8 + $0x1]]
    %v3277 = vstv %s3276
    %v3278 = vadd.f32 %v3274, %v3277
    %v3279 = vadd.f32 %v3275, %v3277
    %v3280 = vmax.f32 %v3278, 0.0
    %v3281 = vmax.f32 %v3279, 0.0
    %s3282 = sld [smem:[#allocation7 + $0x48]]
    %v3283 = vstv %s3282
    %v3284 = vmul.f32 %v2172, %v3283
    %v3285 = vmul.f32 %v2173, %v3283
    %s3286 = sld [smem:[#allocation7 + $0x49]]
    %v3287 = vstv %s3286
    %v3288 = vmul.f32 %v2172, %v3287
    %v3289 = vmul.f32 %v2173, %v3287
    %3292 = vrot.lane.b32.xlu0 %v3288, 126
    %v3293 = vpop.permute.xlu0 %3292
    %3294 = vrot.lane.b32.xlu0 %v3289, 126
    %v3295 = vpop.permute.xlu0 %3294
    %v3298 = vadd.f32 %v3284, %v3293
    %v3299 = vadd.f32 %v3285, %v3295
    %s3300 = sld [smem:[#allocation7 + $0x4a]]
    %v3301 = vstv %s3300
    %v3302 = vmul.f32 %v2172, %v3301
    %v3303 = vmul.f32 %v2173, %v3301
    %3306 = vrot.lane.b32.xlu0 %v3302, 124
    %v3307 = vpop.permute.xlu0 %3306
    %3308 = vrot.lane.b32.xlu0 %v3303, 124
    %v3309 = vpop.permute.xlu0 %3308
    %v3312 = vadd.f32 %v3298, %v3307
    %v3313 = vadd.f32 %v3299, %v3309
    %s3314 = sld [smem:[#allocation7 + $0x4b]]
    %v3315 = vstv %s3314
    %v3316 = vmul.f32 %v2172, %v3315
    %v3317 = vmul.f32 %v2173, %v3315
    %v3320 = vrot.slane %v3316, 2
    %v3321 = vrot.slane %v3317, 2
    %v3322 = vsel %vm169, %v3320, %v3321
    %v3325 = vadd.f32 %v3312, %v3322
    %v3326 = vadd.f32 %v3313, %v3321
    %s3327 = sld [smem:[#allocation7 + $0x4c]]
    %v3328 = vstv %s3327
    %v3329 = vmul.f32 %v2172, %v3328
    %v3330 = vmul.f32 %v2173, %v3328
    %v3333 = vrot.slane %v3329, 2
    %v3334 = vrot.slane %v3330, 2
    %v3335 = vsel %vm169, %v3333, %v3334
    %3336 = vrot.lane.b32.xlu0 %v3335, 126
    %v3337 = vpop.permute.xlu0 %3336
    %3338 = vrot.lane.b32.xlu0 %v3334, 126
    %v3339 = vpop.permute.xlu0 %3338
    %v3342 = vadd.f32 %v3325, %v3337
    %v3343 = vadd.f32 %v3326, %v3339
    %s3344 = sld [smem:[#allocation7 + $0x4d]]
    %v3345 = vstv %s3344
    %v3346 = vmul.f32 %v2172, %v3345
    %v3347 = vmul.f32 %v2173, %v3345
    %v3350 = vrot.slane %v3346, 2
    %v3351 = vrot.slane %v3347, 2
    %v3352 = vsel %vm169, %v3350, %v3351
    %3353 = vrot.lane.b32.xlu0 %v3352, 124
    %v3354 = vpop.permute.xlu0 %3353
    %3355 = vrot.lane.b32.xlu0 %v3351, 124
    %v3356 = vpop.permute.xlu0 %3355
    %v3359 = vadd.f32 %v3342, %v3354
    %v3360 = vadd.f32 %v3343, %v3356
    %s3361 = sld [smem:[#allocation7 + $0x4e]]
    %v3362 = vstv %s3361
    %v3363 = vmul.f32 %v2172, %v3362
    %v3364 = vmul.f32 %v2173, %v3362
    %v3367 = vrot.slane %v3363, 4
    %v3368 = vrot.slane %v3364, 4
    %v3369 = vsel %vm2334, %v3367, %v3368
    %v3372 = vadd.f32 %v3359, %v3369
    %v3373 = vadd.f32 %v3360, %v3368
    %s3374 = sld [smem:[#allocation7 + $0x4f]]
    %v3375 = vstv %s3374
    %v3376 = vmul.f32 %v2172, %v3375
    %v3377 = vmul.f32 %v2173, %v3375
    %v3380 = vrot.slane %v3376, 4
    %v3381 = vrot.slane %v3377, 4
    %v3382 = vsel %vm2334, %v3380, %v3381
    %3383 = vrot.lane.b32.xlu0 %v3382, 126
    %v3384 = vpop.permute.xlu0 %3383
    %3385 = vrot.lane.b32.xlu0 %v3381, 126
    %v3386 = vpop.permute.xlu0 %3385
    %v3389 = vadd.f32 %v3372, %v3384
    %v3390 = vadd.f32 %v3373, %v3386
    %s3391 = sld [smem:[#allocation7 + $0x50]]
    %v3392 = vstv %s3391
    %v3393 = vmul.f32 %v2172, %v3392
    %v3394 = vmul.f32 %v2173, %v3392
    %v3397 = vrot.slane %v3393, 4
    %v3398 = vrot.slane %v3394, 4
    %v3399 = vsel %vm2334, %v3397, %v3398
    %3400 = vrot.lane.b32.xlu0 %v3399, 124
    %v3401 = vpop.permute.xlu0 %3400
    %3402 = vrot.lane.b32.xlu0 %v3398, 124
    %v3403 = vpop.permute.xlu0 %3402
    %v3406 = vadd.f32 %v3389, %v3401
    %v3407 = vadd.f32 %v3390, %v3403
    %s3408 = sld [smem:[#allocation7 + $0x51]]
    %v3409 = vstv %s3408
    %v3410 = vmul.f32 %v2197, %v3409
    %v3411 = vmul.f32 %v2198, %v3409
    %v3412 = vadd.f32 %v3406, %v3410
    %v3413 = vadd.f32 %v3407, %v3411
    %s3414 = sld [smem:[#allocation7 + $0x52]]
    %v3415 = vstv %s3414
    %v3416 = vmul.f32 %v2197, %v3415
    %v3417 = vmul.f32 %v2198, %v3415
    %3420 = vrot.lane.b32.xlu0 %v3416, 126
    %v3421 = vpop.permute.xlu0 %3420
    %3422 = vrot.lane.b32.xlu0 %v3417, 126
    %v3423 = vpop.permute.xlu0 %3422
    %v3426 = vadd.f32 %v3412, %v3421
    %v3427 = vadd.f32 %v3413, %v3423
    %s3428 = sld [smem:[#allocation7 + $0x53]]
    %v3429 = vstv %s3428
    %v3430 = vmul.f32 %v2197, %v3429
    %v3431 = vmul.f32 %v2198, %v3429
    %3434 = vrot.lane.b32.xlu0 %v3430, 124
    %v3435 = vpop.permute.xlu0 %3434
    %3436 = vrot.lane.b32.xlu0 %v3431, 124
    %v3437 = vpop.permute.xlu0 %3436
    %v3440 = vadd.f32 %v3426, %v3435
    %v3441 = vadd.f32 %v3427, %v3437
    %s3442 = sld [smem:[#allocation7 + $0x54]]
    %v3443 = vstv %s3442
    %v3444 = vmul.f32 %v2197, %v3443
    %v3445 = vmul.f32 %v2198, %v3443
    %v3448 = vrot.slane %v3444, 2
    %v3449 = vrot.slane %v3445, 2
    %v3450 = vsel %vm169, %v3448, %v3449
    %v3453 = vadd.f32 %v3440, %v3450
    %v3454 = vadd.f32 %v3441, %v3449
    %s3455 = sld [smem:[#allocation7 + $0x55]]
    %v3456 = vstv %s3455
    %v3457 = vmul.f32 %v2197, %v3456
    %v3458 = vmul.f32 %v2198, %v3456
    %v3461 = vrot.slane %v3457, 2
    %v3462 = vrot.slane %v3458, 2
    %v3463 = vsel %vm169, %v3461, %v3462
    %3464 = vrot.lane.b32.xlu0 %v3463, 126
    %v3465 = vpop.permute.xlu0 %3464
    %3466 = vrot.lane.b32.xlu0 %v3462, 126
    %v3467 = vpop.permute.xlu0 %3466
    %v3470 = vadd.f32 %v3453, %v3465
    %v3471 = vadd.f32 %v3454, %v3467
    %s3472 = sld [smem:[#allocation7 + $0x56]]
    %v3473 = vstv %s3472
    %v3474 = vmul.f32 %v2197, %v3473
    %v3475 = vmul.f32 %v2198, %v3473
    %v3478 = vrot.slane %v3474, 2
    %v3479 = vrot.slane %v3475, 2
    %v3480 = vsel %vm169, %v3478, %v3479
    %3481 = vrot.lane.b32.xlu0 %v3480, 124
    %v3482 = vpop.permute.xlu0 %3481
    %3483 = vrot.lane.b32.xlu0 %v3479, 124
    %v3484 = vpop.permute.xlu0 %3483
    %v3487 = vadd.f32 %v3470, %v3482
    %v3488 = vadd.f32 %v3471, %v3484
    %s3489 = sld [smem:[#allocation7 + $0x57]]
    %v3490 = vstv %s3489
    %v3491 = vmul.f32 %v2197, %v3490
    %v3492 = vmul.f32 %v2198, %v3490
    %v3495 = vrot.slane %v3491, 4
    %v3496 = vrot.slane %v3492, 4
    %v3497 = vsel %vm2334, %v3495, %v3496
    %v3500 = vadd.f32 %v3487, %v3497
    %v3501 = vadd.f32 %v3488, %v3496
    %s3502 = sld [smem:[#allocation7 + $0x58]]
    %v3503 = vstv %s3502
    %v3504 = vmul.f32 %v2197, %v3503
    %v3505 = vmul.f32 %v2198, %v3503
    %v3508 = vrot.slane %v3504, 4
    %v3509 = vrot.slane %v3505, 4
    %v3510 = vsel %vm2334, %v3508, %v3509
    %3511 = vrot.lane.b32.xlu0 %v3510, 126
    %v3512 = vpop.permute.xlu0 %3511
    %3513 = vrot.lane.b32.xlu0 %v3509, 126
    %v3514 = vpop.permute.xlu0 %3513
    %v3517 = vadd.f32 %v3500, %v3512
    %v3518 = vadd.f32 %v3501, %v3514
    %s3519 = sld [smem:[#allocation7 + $0x59]]
    %v3520 = vstv %s3519
    %v3521 = vmul.f32 %v2197, %v3520
    %v3522 = vmul.f32 %v2198, %v3520
    %v3525 = vrot.slane %v3521, 4
    %v3526 = vrot.slane %v3522, 4
    %v3527 = vsel %vm2334, %v3525, %v3526
    %3528 = vrot.lane.b32.xlu0 %v3527, 124
    %v3529 = vpop.permute.xlu0 %3528
    %3530 = vrot.lane.b32.xlu0 %v3526, 124
    %v3531 = vpop.permute.xlu0 %3530
    %v3534 = vadd.f32 %v3517, %v3529
    %v3535 = vadd.f32 %v3518, %v3531
    %s3536 = sld [smem:[#allocation7 + $0x5a]]
    %v3537 = vstv %s3536
    %v3538 = vmul.f32 %v2222, %v3537
    %v3539 = vmul.f32 %v2223, %v3537
    %v3540 = vadd.f32 %v3534, %v3538
    %v3541 = vadd.f32 %v3535, %v3539
    %s3542 = sld [smem:[#allocation7 + $0x5b]]
    %v3543 = vstv %s3542
    %v3544 = vmul.f32 %v2222, %v3543
    %v3545 = vmul.f32 %v2223, %v3543
    %3548 = vrot.lane.b32.xlu0 %v3544, 126
    %v3549 = vpop.permute.xlu0 %3548
    %3550 = vrot.lane.b32.xlu0 %v3545, 126
    %v3551 = vpop.permute.xlu0 %3550
    %v3554 = vadd.f32 %v3540, %v3549
    %v3555 = vadd.f32 %v3541, %v3551
    %s3556 = sld [smem:[#allocation7 + $0x5c]]
    %v3557 = vstv %s3556
    %v3558 = vmul.f32 %v2222, %v3557
    %v3559 = vmul.f32 %v2223, %v3557
    %3562 = vrot.lane.b32.xlu0 %v3558, 124
    %v3563 = vpop.permute.xlu0 %3562
    %3564 = vrot.lane.b32.xlu0 %v3559, 124
    %v3565 = vpop.permute.xlu0 %3564
    %v3568 = vadd.f32 %v3554, %v3563
    %v3569 = vadd.f32 %v3555, %v3565
    %s3570 = sld [smem:[#allocation7 + $0x5d]]
    %v3571 = vstv %s3570
    %v3572 = vmul.f32 %v2222, %v3571
    %v3573 = vmul.f32 %v2223, %v3571
    %v3576 = vrot.slane %v3572, 2
    %v3577 = vrot.slane %v3573, 2
    %v3578 = vsel %vm169, %v3576, %v3577
    %v3581 = vadd.f32 %v3568, %v3578
    %v3582 = vadd.f32 %v3569, %v3577
    %s3583 = sld [smem:[#allocation7 + $0x5e]]
    %v3584 = vstv %s3583
    %v3585 = vmul.f32 %v2222, %v3584
    %v3586 = vmul.f32 %v2223, %v3584
    %v3589 = vrot.slane %v3585, 2
    %v3590 = vrot.slane %v3586, 2
    %v3591 = vsel %vm169, %v3589, %v3590
    %3592 = vrot.lane.b32.xlu0 %v3591, 126
    %v3593 = vpop.permute.xlu0 %3592
    %3594 = vrot.lane.b32.xlu0 %v3590, 126
    %v3595 = vpop.permute.xlu0 %3594
    %v3598 = vadd.f32 %v3581, %v3593
    %v3599 = vadd.f32 %v3582, %v3595
    %s3600 = sld [smem:[#allocation7 + $0x5f]]
    %v3601 = vstv %s3600
    %v3602 = vmul.f32 %v2222, %v3601
    %v3603 = vmul.f32 %v2223, %v3601
    %v3606 = vrot.slane %v3602, 2
    %v3607 = vrot.slane %v3603, 2
    %v3608 = vsel %vm169, %v3606, %v3607
    %3609 = vrot.lane.b32.xlu0 %v3608, 124
    %v3610 = vpop.permute.xlu0 %3609
    %3611 = vrot.lane.b32.xlu0 %v3607, 124
    %v3612 = vpop.permute.xlu0 %3611
    %v3615 = vadd.f32 %v3598, %v3610
    %v3616 = vadd.f32 %v3599, %v3612
    %s3617 = sld [smem:[#allocation7 + $0x60]]
    %v3618 = vstv %s3617
    %v3619 = vmul.f32 %v2222, %v3618
    %v3620 = vmul.f32 %v2223, %v3618
    %v3623 = vrot.slane %v3619, 4
    %v3624 = vrot.slane %v3620, 4
    %v3625 = vsel %vm2334, %v3623, %v3624
    %v3628 = vadd.f32 %v3615, %v3625
    %v3629 = vadd.f32 %v3616, %v3624
    %s3630 = sld [smem:[#allocation7 + $0x61]]
    %v3631 = vstv %s3630
    %v3632 = vmul.f32 %v2222, %v3631
    %v3633 = vmul.f32 %v2223, %v3631
    %v3636 = vrot.slane %v3632, 4
    %v3637 = vrot.slane %v3633, 4
    %v3638 = vsel %vm2334, %v3636, %v3637
    %3639 = vrot.lane.b32.xlu0 %v3638, 126
    %v3640 = vpop.permute.xlu0 %3639
    %3641 = vrot.lane.b32.xlu0 %v3637, 126
    %v3642 = vpop.permute.xlu0 %3641
    %v3645 = vadd.f32 %v3628, %v3640
    %v3646 = vadd.f32 %v3629, %v3642
    %s3647 = sld [smem:[#allocation7 + $0x62]]
    %v3648 = vstv %s3647
    %v3649 = vmul.f32 %v2222, %v3648
    %v3650 = vmul.f32 %v2223, %v3648
    %v3653 = vrot.slane %v3649, 4
    %v3654 = vrot.slane %v3650, 4
    %v3655 = vsel %vm2334, %v3653, %v3654
    %3656 = vrot.lane.b32.xlu0 %v3655, 124
    %v3657 = vpop.permute.xlu0 %3656
    %3658 = vrot.lane.b32.xlu0 %v3654, 124
    %v3659 = vpop.permute.xlu0 %3658
    %v3662 = vadd.f32 %v3645, %v3657
    %v3663 = vadd.f32 %v3646, %v3659
    %s3664 = sld [smem:[#allocation7 + $0x63]]
    %v3665 = vstv %s3664
    %v3666 = vmul.f32 %v2247, %v3665
    %v3667 = vmul.f32 %v2248, %v3665
    %v3668 = vadd.f32 %v3662, %v3666
    %v3669 = vadd.f32 %v3663, %v3667
    %s3670 = sld [smem:[#allocation7 + $0x64]]
    %v3671 = vstv %s3670
    %v3672 = vmul.f32 %v2247, %v3671
    %v3673 = vmul.f32 %v2248, %v3671
    %3676 = vrot.lane.b32.xlu0 %v3672, 126
    %v3677 = vpop.permute.xlu0 %3676
    %3678 = vrot.lane.b32.xlu0 %v3673, 126
    %v3679 = vpop.permute.xlu0 %3678
    %v3682 = vadd.f32 %v3668, %v3677
    %v3683 = vadd.f32 %v3669, %v3679
    %s3684 = sld [smem:[#allocation7 + $0x65]]
    %v3685 = vstv %s3684
    %v3686 = vmul.f32 %v2247, %v3685
    %v3687 = vmul.f32 %v2248, %v3685
    %3690 = vrot.lane.b32.xlu0 %v3686, 124
    %v3691 = vpop.permute.xlu0 %3690
    %3692 = vrot.lane.b32.xlu0 %v3687, 124
    %v3693 = vpop.permute.xlu0 %3692
    %v3696 = vadd.f32 %v3682, %v3691
    %v3697 = vadd.f32 %v3683, %v3693
    %s3698 = sld [smem:[#allocation7 + $0x66]]
    %v3699 = vstv %s3698
    %v3700 = vmul.f32 %v2247, %v3699
    %v3701 = vmul.f32 %v2248, %v3699
    %v3704 = vrot.slane %v3700, 2
    %v3705 = vrot.slane %v3701, 2
    %v3706 = vsel %vm169, %v3704, %v3705
    %v3709 = vadd.f32 %v3696, %v3706
    %v3710 = vadd.f32 %v3697, %v3705
    %s3711 = sld [smem:[#allocation7 + $0x67]]
    %v3712 = vstv %s3711
    %v3713 = vmul.f32 %v2247, %v3712
    %v3714 = vmul.f32 %v2248, %v3712
    %v3717 = vrot.slane %v3713, 2
    %v3718 = vrot.slane %v3714, 2
    %v3719 = vsel %vm169, %v3717, %v3718
    %3720 = vrot.lane.b32.xlu0 %v3719, 126
    %v3721 = vpop.permute.xlu0 %3720
    %3722 = vrot.lane.b32.xlu0 %v3718, 126
    %v3723 = vpop.permute.xlu0 %3722
    %v3726 = vadd.f32 %v3709, %v3721
    %v3727 = vadd.f32 %v3710, %v3723
    %s3728 = sld [smem:[#allocation7 + $0x68]]
    %v3729 = vstv %s3728
    %v3730 = vmul.f32 %v2247, %v3729
    %v3731 = vmul.f32 %v2248, %v3729
    %v3734 = vrot.slane %v3730, 2
    %v3735 = vrot.slane %v3731, 2
    %v3736 = vsel %vm169, %v3734, %v3735
    %3737 = vrot.lane.b32.xlu0 %v3736, 124
    %v3738 = vpop.permute.xlu0 %3737
    %3739 = vrot.lane.b32.xlu0 %v3735, 124
    %v3740 = vpop.permute.xlu0 %3739
    %v3743 = vadd.f32 %v3726, %v3738
    %v3744 = vadd.f32 %v3727, %v3740
    %s3745 = sld [smem:[#allocation7 + $0x69]]
    %v3746 = vstv %s3745
    %v3747 = vmul.f32 %v2247, %v3746
    %v3748 = vmul.f32 %v2248, %v3746
    %v3751 = vrot.slane %v3747, 4
    %v3752 = vrot.slane %v3748, 4
    %v3753 = vsel %vm2334, %v3751, %v3752
    %v3756 = vadd.f32 %v3743, %v3753
    %v3757 = vadd.f32 %v3744, %v3752
    %s3758 = sld [smem:[#allocation7 + $0x6a]]
    %v3759 = vstv %s3758
    %v3760 = vmul.f32 %v2247, %v3759
    %v3761 = vmul.f32 %v2248, %v3759
    %v3764 = vrot.slane %v3760, 4
    %v3765 = vrot.slane %v3761, 4
    %v3766 = vsel %vm2334, %v3764, %v3765
    %3767 = vrot.lane.b32.xlu0 %v3766, 126
    %v3768 = vpop.permute.xlu0 %3767
    %3769 = vrot.lane.b32.xlu0 %v3765, 126
    %v3770 = vpop.permute.xlu0 %3769
    %v3773 = vadd.f32 %v3756, %v3768
    %v3774 = vadd.f32 %v3757, %v3770
    %s3775 = sld [smem:[#allocation7 + $0x6b]]
    %v3776 = vstv %s3775
    %v3777 = vmul.f32 %v2247, %v3776
    %v3778 = vmul.f32 %v2248, %v3776
    %v3781 = vrot.slane %v3777, 4
    %v3782 = vrot.slane %v3778, 4
    %v3783 = vsel %vm2334, %v3781, %v3782
    %3784 = vrot.lane.b32.xlu0 %v3783, 124
    %v3785 = vpop.permute.xlu0 %3784
    %3786 = vrot.lane.b32.xlu0 %v3782, 124
    %v3787 = vpop.permute.xlu0 %3786
    %v3790 = vadd.f32 %v3773, %v3785
    %v3791 = vadd.f32 %v3774, %v3787
    %s3792 = sld [smem:[#allocation8 + $0x2]]
    %v3793 = vstv %s3792
    %v3794 = vadd.f32 %v3790, %v3793
    %v3795 = vadd.f32 %v3791, %v3793
    %v3796 = vmax.f32 %v3794, 0.0
    %v3797 = vmax.f32 %v3795, 0.0
    %s3798 = sld [smem:[#allocation7 + $0x6c]]
    %v3799 = vstv %s3798
    %v3800 = vmul.f32 %v2172, %v3799
    %v3801 = vmul.f32 %v2173, %v3799
    %s3802 = sld [smem:[#allocation7 + $0x6d]]
    %v3803 = vstv %s3802
    %v3804 = vmul.f32 %v2172, %v3803
    %v3805 = vmul.f32 %v2173, %v3803
    %3808 = vrot.lane.b32.xlu0 %v3804, 126
    %v3809 = vpop.permute.xlu0 %3808
    %3810 = vrot.lane.b32.xlu0 %v3805, 126
    %v3811 = vpop.permute.xlu0 %3810
    %v3814 = vadd.f32 %v3800, %v3809
    %v3815 = vadd.f32 %v3801, %v3811
    %s3816 = sld [smem:[#allocation7 + $0x6e]]
    %v3817 = vstv %s3816
    %v3818 = vmul.f32 %v2172, %v3817
    %v3819 = vmul.f32 %v2173, %v3817
    %3822 = vrot.lane.b32.xlu0 %v3818, 124
    %v3823 = vpop.permute.xlu0 %3822
    %3824 = vrot.lane.b32.xlu0 %v3819, 124
    %v3825 = vpop.permute.xlu0 %3824
    %v3828 = vadd.f32 %v3814, %v3823
    %v3829 = vadd.f32 %v3815, %v3825
    %s3830 = sld [smem:[#allocation7 + $0x6f]]
    %v3831 = vstv %s3830
    %v3832 = vmul.f32 %v2172, %v3831
    %v3833 = vmul.f32 %v2173, %v3831
    %v3836 = vrot.slane %v3832, 2
    %v3837 = vrot.slane %v3833, 2
    %v3838 = vsel %vm169, %v3836, %v3837
    %v3841 = vadd.f32 %v3828, %v3838
    %v3842 = vadd.f32 %v3829, %v3837
    %s3843 = sld [smem:[#allocation7 + $0x70]]
    %v3844 = vstv %s3843
    %v3845 = vmul.f32 %v2172, %v3844
    %v3846 = vmul.f32 %v2173, %v3844
    %v3849 = vrot.slane %v3845, 2
    %v3850 = vrot.slane %v3846, 2
    %v3851 = vsel %vm169, %v3849, %v3850
    %3852 = vrot.lane.b32.xlu0 %v3851, 126
    %v3853 = vpop.permute.xlu0 %3852
    %3854 = vrot.lane.b32.xlu0 %v3850, 126
    %v3855 = vpop.permute.xlu0 %3854
    %v3858 = vadd.f32 %v3841, %v3853
    %v3859 = vadd.f32 %v3842, %v3855
    %s3860 = sld [smem:[#allocation7 + $0x71]]
    %v3861 = vstv %s3860
    %v3862 = vmul.f32 %v2172, %v3861
    %v3863 = vmul.f32 %v2173, %v3861
    %v3866 = vrot.slane %v3862, 2
    %v3867 = vrot.slane %v3863, 2
    %v3868 = vsel %vm169, %v3866, %v3867
    %3869 = vrot.lane.b32.xlu0 %v3868, 124
    %v3870 = vpop.permute.xlu0 %3869
    %3871 = vrot.lane.b32.xlu0 %v3867, 124
    %v3872 = vpop.permute.xlu0 %3871
    %v3875 = vadd.f32 %v3858, %v3870
    %v3876 = vadd.f32 %v3859, %v3872
    %s3877 = sld [smem:[#allocation7 + $0x72]]
    %v3878 = vstv %s3877
    %v3879 = vmul.f32 %v2172, %v3878
    %v3880 = vmul.f32 %v2173, %v3878
    %v3883 = vrot.slane %v3879, 4
    %v3884 = vrot.slane %v3880, 4
    %v3885 = vsel %vm2334, %v3883, %v3884
    %v3888 = vadd.f32 %v3875, %v3885
    %v3889 = vadd.f32 %v3876, %v3884
    %s3890 = sld [smem:[#allocation7 + $0x73]]
    %v3891 = vstv %s3890
    %v3892 = vmul.f32 %v2172, %v3891
    %v3893 = vmul.f32 %v2173, %v3891
    %v3896 = vrot.slane %v3892, 4
    %v3897 = vrot.slane %v3893, 4
    %v3898 = vsel %vm2334, %v3896, %v3897
    %3899 = vrot.lane.b32.xlu0 %v3898, 126
    %v3900 = vpop.permute.xlu0 %3899
    %3901 = vrot.lane.b32.xlu0 %v3897, 126
    %v3902 = vpop.permute.xlu0 %3901
    %v3905 = vadd.f32 %v3888, %v3900
    %v3906 = vadd.f32 %v3889, %v3902
    %s3907 = sld [smem:[#allocation7 + $0x74]]
    %v3908 = vstv %s3907
    %v3909 = vmul.f32 %v2172, %v3908
    %v3910 = vmul.f32 %v2173, %v3908
    %v3913 = vrot.slane %v3909, 4
    %v3914 = vrot.slane %v3910, 4
    %v3915 = vsel %vm2334, %v3913, %v3914
    %3916 = vrot.lane.b32.xlu0 %v3915, 124
    %v3917 = vpop.permute.xlu0 %3916
    %3918 = vrot.lane.b32.xlu0 %v3914, 124
    %v3919 = vpop.permute.xlu0 %3918
    %v3922 = vadd.f32 %v3905, %v3917
    %v3923 = vadd.f32 %v3906, %v3919
    %s3924 = sld [smem:[#allocation7 + $0x75]]
    %v3925 = vstv %s3924
    %v3926 = vmul.f32 %v2197, %v3925
    %v3927 = vmul.f32 %v2198, %v3925
    %v3928 = vadd.f32 %v3922, %v3926
    %v3929 = vadd.f32 %v3923, %v3927
    %s3930 = sld [smem:[#allocation7 + $0x76]]
    %v3931 = vstv %s3930
    %v3932 = vmul.f32 %v2197, %v3931
    %v3933 = vmul.f32 %v2198, %v3931
    %3936 = vrot.lane.b32.xlu0 %v3932, 126
    %v3937 = vpop.permute.xlu0 %3936
    %3938 = vrot.lane.b32.xlu0 %v3933, 126
    %v3939 = vpop.permute.xlu0 %3938
    %v3942 = vadd.f32 %v3928, %v3937
    %v3943 = vadd.f32 %v3929, %v3939
    %s3944 = sld [smem:[#allocation7 + $0x77]]
    %v3945 = vstv %s3944
    %v3946 = vmul.f32 %v2197, %v3945
    %v3947 = vmul.f32 %v2198, %v3945
    %3950 = vrot.lane.b32.xlu0 %v3946, 124
    %v3951 = vpop.permute.xlu0 %3950
    %3952 = vrot.lane.b32.xlu0 %v3947, 124
    %v3953 = vpop.permute.xlu0 %3952
    %v3956 = vadd.f32 %v3942, %v3951
    %v3957 = vadd.f32 %v3943, %v3953
    %s3958 = sld [smem:[#allocation7 + $0x78]]
    %v3959 = vstv %s3958
    %v3960 = vmul.f32 %v2197, %v3959
    %v3961 = vmul.f32 %v2198, %v3959
    %v3964 = vrot.slane %v3960, 2
    %v3965 = vrot.slane %v3961, 2
    %v3966 = vsel %vm169, %v3964, %v3965
    %v3969 = vadd.f32 %v3956, %v3966
    %v3970 = vadd.f32 %v3957, %v3965
    %s3971 = sld [smem:[#allocation7 + $0x79]]
    %v3972 = vstv %s3971
    %v3973 = vmul.f32 %v2197, %v3972
    %v3974 = vmul.f32 %v2198, %v3972
    %v3977 = vrot.slane %v3973, 2
    %v3978 = vrot.slane %v3974, 2
    %v3979 = vsel %vm169, %v3977, %v3978
    %3980 = vrot.lane.b32.xlu0 %v3979, 126
    %v3981 = vpop.permute.xlu0 %3980
    %3982 = vrot.lane.b32.xlu0 %v3978, 126
    %v3983 = vpop.permute.xlu0 %3982
    %v3986 = vadd.f32 %v3969, %v3981
    %v3987 = vadd.f32 %v3970, %v3983
    %s3988 = sld [smem:[#allocation7 + $0x7a]]
    %v3989 = vstv %s3988
    %v3990 = vmul.f32 %v2197, %v3989
    %v3991 = vmul.f32 %v2198, %v3989
    %v3994 = vrot.slane %v3990, 2
    %v3995 = vrot.slane %v3991, 2
    %v3996 = vsel %vm169, %v3994, %v3995
    %3997 = vrot.lane.b32.xlu0 %v3996, 124
    %v3998 = vpop.permute.xlu0 %3997
    %3999 = vrot.lane.b32.xlu0 %v3995, 124
    %v4000 = vpop.permute.xlu0 %3999
    %v4003 = vadd.f32 %v3986, %v3998
    %v4004 = vadd.f32 %v3987, %v4000
    %s4005 = sld [smem:[#allocation7 + $0x7b]]
    %v4006 = vstv %s4005
    %v4007 = vmul.f32 %v2197, %v4006
    %v4008 = vmul.f32 %v2198, %v4006
    %v4011 = vrot.slane %v4007, 4
    %v4012 = vrot.slane %v4008, 4
    %v4013 = vsel %vm2334, %v4011, %v4012
    %v4016 = vadd.f32 %v4003, %v4013
    %v4017 = vadd.f32 %v4004, %v4012
    %s4018 = sld [smem:[#allocation7 + $0x7c]]
    %v4019 = vstv %s4018
    %v4020 = vmul.f32 %v2197, %v4019
    %v4021 = vmul.f32 %v2198, %v4019
    %v4024 = vrot.slane %v4020, 4
    %v4025 = vrot.slane %v4021, 4
    %v4026 = vsel %vm2334, %v4024, %v4025
    %4027 = vrot.lane.b32.xlu0 %v4026, 126
    %v4028 = vpop.permute.xlu0 %4027
    %4029 = vrot.lane.b32.xlu0 %v4025, 126
    %v4030 = vpop.permute.xlu0 %4029
    %v4033 = vadd.f32 %v4016, %v4028
    %v4034 = vadd.f32 %v4017, %v4030
    %s4035 = sld [smem:[#allocation7 + $0x7d]]
    %v4036 = vstv %s4035
    %v4037 = vmul.f32 %v2197, %v4036
    %v4038 = vmul.f32 %v2198, %v4036
    %v4041 = vrot.slane %v4037, 4
    %v4042 = vrot.slane %v4038, 4
    %v4043 = vsel %vm2334, %v4041, %v4042
    %4044 = vrot.lane.b32.xlu0 %v4043, 124
    %v4045 = vpop.permute.xlu0 %4044
    %4046 = vrot.lane.b32.xlu0 %v4042, 124
    %v4047 = vpop.permute.xlu0 %4046
    %v4050 = vadd.f32 %v4033, %v4045
    %v4051 = vadd.f32 %v4034, %v4047
    %s4052 = sld [smem:[#allocation7 + $0x7e]]
    %v4053 = vstv %s4052
    %v4054 = vmul.f32 %v2222, %v4053
    %v4055 = vmul.f32 %v2223, %v4053
    %v4056 = vadd.f32 %v4050, %v4054
    %v4057 = vadd.f32 %v4051, %v4055
    %s4058 = sld [smem:[#allocation7 + $0x7f]]
    %v4059 = vstv %s4058
    %v4060 = vmul.f32 %v2222, %v4059
    %v4061 = vmul.f32 %v2223, %v4059
    %4064 = vrot.lane.b32.xlu0 %v4060, 126
    %v4065 = vpop.permute.xlu0 %4064
    %4066 = vrot.lane.b32.xlu0 %v4061, 126
    %v4067 = vpop.permute.xlu0 %4066
    %v4070 = vadd.f32 %v4056, %v4065
    %v4071 = vadd.f32 %v4057, %v4067
    %s4072 = sld [smem:[#allocation7 + $0x80]]
    %v4073 = vstv %s4072
    %v4074 = vmul.f32 %v2222, %v4073
    %v4075 = vmul.f32 %v2223, %v4073
    %4078 = vrot.lane.b32.xlu0 %v4074, 124
    %v4079 = vpop.permute.xlu0 %4078
    %4080 = vrot.lane.b32.xlu0 %v4075, 124
    %v4081 = vpop.permute.xlu0 %4080
    %v4084 = vadd.f32 %v4070, %v4079
    %v4085 = vadd.f32 %v4071, %v4081
    %s4086 = sld [smem:[#allocation7 + $0x81]]
    %v4087 = vstv %s4086
    %v4088 = vmul.f32 %v2222, %v4087
    %v4089 = vmul.f32 %v2223, %v4087
    %v4092 = vrot.slane %v4088, 2
    %v4093 = vrot.slane %v4089, 2
    %v4094 = vsel %vm169, %v4092, %v4093
    %v4097 = vadd.f32 %v4084, %v4094
    %v4098 = vadd.f32 %v4085, %v4093
    %s4099 = sld [smem:[#allocation7 + $0x82]]
    %v4100 = vstv %s4099
    %v4101 = vmul.f32 %v2222, %v4100
    %v4102 = vmul.f32 %v2223, %v4100
    %v4105 = vrot.slane %v4101, 2
    %v4106 = vrot.slane %v4102, 2
    %v4107 = vsel %vm169, %v4105, %v4106
    %4108 = vrot.lane.b32.xlu0 %v4107, 126
    %v4109 = vpop.permute.xlu0 %4108
    %4110 = vrot.lane.b32.xlu0 %v4106, 126
    %v4111 = vpop.permute.xlu0 %4110
    %v4114 = vadd.f32 %v4097, %v4109
    %v4115 = vadd.f32 %v4098, %v4111
    %s4116 = sld [smem:[#allocation7 + $0x83]]
    %v4117 = vstv %s4116
    %v4118 = vmul.f32 %v2222, %v4117
    %v4119 = vmul.f32 %v2223, %v4117
    %v4122 = vrot.slane %v4118, 2
    %v4123 = vrot.slane %v4119, 2
    %v4124 = vsel %vm169, %v4122, %v4123
    %4125 = vrot.lane.b32.xlu0 %v4124, 124
    %v4126 = vpop.permute.xlu0 %4125
    %4127 = vrot.lane.b32.xlu0 %v4123, 124
    %v4128 = vpop.permute.xlu0 %4127
    %v4131 = vadd.f32 %v4114, %v4126
    %v4132 = vadd.f32 %v4115, %v4128
    %s4133 = sld [smem:[#allocation7 + $0x84]]
    %v4134 = vstv %s4133
    %v4135 = vmul.f32 %v2222, %v4134
    %v4136 = vmul.f32 %v2223, %v4134
    %v4139 = vrot.slane %v4135, 4
    %v4140 = vrot.slane %v4136, 4
    %v4141 = vsel %vm2334, %v4139, %v4140
    %v4144 = vadd.f32 %v4131, %v4141
    %v4145 = vadd.f32 %v4132, %v4140
    %s4146 = sld [smem:[#allocation7 + $0x85]]
    %v4147 = vstv %s4146
    %v4148 = vmul.f32 %v2222, %v4147
    %v4149 = vmul.f32 %v2223, %v4147
    %v4152 = vrot.slane %v4148, 4
    %v4153 = vrot.slane %v4149, 4
    %v4154 = vsel %vm2334, %v4152, %v4153
    %4155 = vrot.lane.b32.xlu0 %v4154, 126
    %v4156 = vpop.permute.xlu0 %4155
    %4157 = vrot.lane.b32.xlu0 %v4153, 126
    %v4158 = vpop.permute.xlu0 %4157
    %v4161 = vadd.f32 %v4144, %v4156
    %v4162 = vadd.f32 %v4145, %v4158
    %s4163 = sld [smem:[#allocation7 + $0x86]]
    %v4164 = vstv %s4163
    %v4165 = vmul.f32 %v2222, %v4164
    %v4166 = vmul.f32 %v2223, %v4164
    %v4169 = vrot.slane %v4165, 4
    %v4170 = vrot.slane %v4166, 4
    %v4171 = vsel %vm2334, %v4169, %v4170
    %4172 = vrot.lane.b32.xlu0 %v4171, 124
    %v4173 = vpop.permute.xlu0 %4172
    %4174 = vrot.lane.b32.xlu0 %v4170, 124
    %v4175 = vpop.permute.xlu0 %4174
    %v4178 = vadd.f32 %v4161, %v4173
    %v4179 = vadd.f32 %v4162, %v4175
    %s4180 = sld [smem:[#allocation7 + $0x87]]
    %v4181 = vstv %s4180
    %v4182 = vmul.f32 %v2247, %v4181
    %v4183 = vmul.f32 %v2248, %v4181
    %v4184 = vadd.f32 %v4178, %v4182
    %v4185 = vadd.f32 %v4179, %v4183
    %s4186 = sld [smem:[#allocation7 + $0x88]]
    %v4187 = vstv %s4186
    %v4188 = vmul.f32 %v2247, %v4187
    %v4189 = vmul.f32 %v2248, %v4187
    %4192 = vrot.lane.b32.xlu0 %v4188, 126
    %v4193 = vpop.permute.xlu0 %4192
    %4194 = vrot.lane.b32.xlu0 %v4189, 126
    %v4195 = vpop.permute.xlu0 %4194
    %v4198 = vadd.f32 %v4184, %v4193
    %v4199 = vadd.f32 %v4185, %v4195
    %s4200 = sld [smem:[#allocation7 + $0x89]]
    %v4201 = vstv %s4200
    %v4202 = vmul.f32 %v2247, %v4201
    %v4203 = vmul.f32 %v2248, %v4201
    %4206 = vrot.lane.b32.xlu0 %v4202, 124
    %v4207 = vpop.permute.xlu0 %4206
    %4208 = vrot.lane.b32.xlu0 %v4203, 124
    %v4209 = vpop.permute.xlu0 %4208
    %v4212 = vadd.f32 %v4198, %v4207
    %v4213 = vadd.f32 %v4199, %v4209
    %s4214 = sld [smem:[#allocation7 + $0x8a]]
    %v4215 = vstv %s4214
    %v4216 = vmul.f32 %v2247, %v4215
    %v4217 = vmul.f32 %v2248, %v4215
    %v4220 = vrot.slane %v4216, 2
    %v4221 = vrot.slane %v4217, 2
    %v4222 = vsel %vm169, %v4220, %v4221
    %v4225 = vadd.f32 %v4212, %v4222
    %v4226 = vadd.f32 %v4213, %v4221
    %s4227 = sld [smem:[#allocation7 + $0x8b]]
    %v4228 = vstv %s4227
    %v4229 = vmul.f32 %v2247, %v4228
    %v4230 = vmul.f32 %v2248, %v4228
    %v4233 = vrot.slane %v4229, 2
    %v4234 = vrot.slane %v4230, 2
    %v4235 = vsel %vm169, %v4233, %v4234
    %4236 = vrot.lane.b32.xlu0 %v4235, 126
    %v4237 = vpop.permute.xlu0 %4236
    %4238 = vrot.lane.b32.xlu0 %v4234, 126
    %v4239 = vpop.permute.xlu0 %4238
    %v4242 = vadd.f32 %v4225, %v4237
    %v4243 = vadd.f32 %v4226, %v4239
    %s4244 = sld [smem:[#allocation7 + $0x8c]]
    %v4245 = vstv %s4244
    %v4246 = vmul.f32 %v2247, %v4245
    %v4247 = vmul.f32 %v2248, %v4245
    %v4250 = vrot.slane %v4246, 2
    %v4251 = vrot.slane %v4247, 2
    %v4252 = vsel %vm169, %v4250, %v4251
    %4253 = vrot.lane.b32.xlu0 %v4252, 124
    %v4254 = vpop.permute.xlu0 %4253
    %4255 = vrot.lane.b32.xlu0 %v4251, 124
    %v4256 = vpop.permute.xlu0 %4255
    %v4259 = vadd.f32 %v4242, %v4254
    %v4260 = vadd.f32 %v4243, %v4256
    %s4261 = sld [smem:[#allocation7 + $0x8d]]
    %v4262 = vstv %s4261
    %v4263 = vmul.f32 %v2247, %v4262
    %v4264 = vmul.f32 %v2248, %v4262
    %v4267 = vrot.slane %v4263, 4
    %v4268 = vrot.slane %v4264, 4
    %v4269 = vsel %vm2334, %v4267, %v4268
    %v4272 = vadd.f32 %v4259, %v4269
    %v4273 = vadd.f32 %v4260, %v4268
    %s4274 = sld [smem:[#allocation7 + $0x8e]]
    %v4275 = vstv %s4274
    %v4276 = vmul.f32 %v2247, %v4275
    %v4277 = vmul.f32 %v2248, %v4275
    %v4280 = vrot.slane %v4276, 4
    %v4281 = vrot.slane %v4277, 4
    %v4282 = vsel %vm2334, %v4280, %v4281
    %4283 = vrot.lane.b32.xlu0 %v4282, 126
    %v4284 = vpop.permute.xlu0 %4283
    %4285 = vrot.lane.b32.xlu0 %v4281, 126
    %v4286 = vpop.permute.xlu0 %4285
    %v4289 = vadd.f32 %v4272, %v4284
    %v4290 = vadd.f32 %v4273, %v4286
    %s4291 = sld [smem:[#allocation7 + $0x8f]]
    %v4292 = vstv %s4291
    %v4293 = vmul.f32 %v2247, %v4292
    %v4294 = vmul.f32 %v2248, %v4292
    %v4297 = vrot.slane %v4293, 4
    %v4298 = vrot.slane %v4294, 4
    %v4299 = vsel %vm2334, %v4297, %v4298
    %4300 = vrot.lane.b32.xlu0 %v4299, 124
    %v4301 = vpop.permute.xlu0 %4300
    %4302 = vrot.lane.b32.xlu0 %v4298, 124
    %v4303 = vpop.permute.xlu0 %4302
    %v4306 = vadd.f32 %v4289, %v4301
    %v4307 = vadd.f32 %v4290, %v4303
    %s4308 = sld [smem:[#allocation8 + $0x3]]
    %v4309 = vstv %s4308
    %v4310 = vadd.f32 %v4306, %v4309
    %v4311 = vadd.f32 %v4307, %v4309
    %v4312 = vmax.f32 %v4310, 0.0
    %v4313 = vmax.f32 %v4311, 0.0
    %v4314 = vmax.f32 %v2764, %v3280
    %v4315 = vmax.f32 %v2765, %v3281
    %v4316 = vmax.f32 %v4314, %v3796
    %v4317 = vmax.f32 %v4315, %v3797
    %v4318 = vmax.f32 %v4316, %v4312
    %v4319 = vmax.f32 %v4317, %v4313
    %v4321 = vrot.slane %v4318, 2
    %v4323 = vmax.f32 %v4318, %v4321
    %v4324 = vrot.slane %v4318, 4
    %v4326 = vmax.f32 %v4323, %v4324
    %v4327 = vrot.slane %v4318, 6
    %v4329 = vmax.f32 %v4326, %v4327
    %v4330 = vmax.f32 %v4329, %v4319
    %4332 = vrot.lane.b32.xlu0 %v4330, 126
    %v4333 = vpop.permute.xlu0 %4332
    %v4335 = vmax.f32 %v4330, %v4333
    %v4336 = vld [vmem:[%s1] sm:$0xff]
    %v4337 = vld [vmem:[%s1 + $0x8] sm:$0xff]
    %v4338 = vld [vmem:[%s1 + $0x10] sm:$0xff]
    %v4339 = vld [vmem:[%s1 + $0x18] sm:$0xff]
    %v4340 = vld [vmem:[%s1 + $0x20] sm:$0xff]
    %v4341 = vld [vmem:[%s1 + $0x28] sm:$0xff]
    %v4342 = vld [vmem:[%s1 + $0x30] sm:$0xff]
    %v4343 = vld [vmem:[%s1 + $0x38] sm:$0xff]
    %v4344 = vld [vmem:[%s1 + $0x40] sm:$0xff]
    %v4345 = vld [vmem:[%s1 + $0x48] sm:$0xff]
    %v4346 = vld [vmem:[%s1 + $0x50] sm:$0xff]
    %v4347 = vld [vmem:[%s1 + $0x58] sm:$0xff]
    %v4348 = vld [vmem:[%s1 + $0x60] sm:$0xff]
    %v4349 = vld [vmem:[%s1 + $0x68] sm:$0xff]
    %v4350 = vld [vmem:[%s1 + $0x70] sm:$0x1]
    %s4351 = scalar_lea.vmem %s1, 120
    %v4352 = vld [vmem:[%s4351] sm:$0xff]
    %v4353 = vld [vmem:[%s4351 + $0x8] sm:$0xff]
    %v4354 = vld [vmem:[%s4351 + $0x10] sm:$0xff]
    %v4355 = vld [vmem:[%s4351 + $0x18] sm:$0xff]
    %v4356 = vld [vmem:[%s4351 + $0x20] sm:$0xff]
    %v4357 = vld [vmem:[%s4351 + $0x28] sm:$0xff]
    %v4358 = vld [vmem:[%s4351 + $0x30] sm:$0xff]
    %v4359 = vld [vmem:[%s4351 + $0x38] sm:$0xff]
    %v4360 = vld [vmem:[%s4351 + $0x40] sm:$0xff]
    %v4361 = vld [vmem:[%s4351 + $0x48] sm:$0xff]
    %v4362 = vld [vmem:[%s4351 + $0x50] sm:$0xff]
    %v4363 = vld [vmem:[%s4351 + $0x58] sm:$0xff]
    %v4364 = vld [vmem:[%s4351 + $0x60] sm:$0xff]
    %v4365 = vld [vmem:[%s4351 + $0x68] sm:$0xff]
    %v4366 = vld [vmem:[%s4351 + $0x70] sm:$0x1]
    %4368 = vrot.lane.b32.xlu0 %v4335, 126
    %v4369 = vpop.permute.xlu0 %4368
    %vm4370 = vcmask 924672
    %v4371 = vsel %vm4370, %v4369, 0
    %vm4373 = vcmask 1040384
    %v4375 = vsel %vm4373, %v4366, 0
    %4377 = vmatprep.subr.mxu0 0.0
    %4378 = vmatpush1.msra.mxu0 %v4352
    %4379 = vmatprep.subr.mxu0 0.0
    %4380 = vmatpush1.msra.mxu0 %v4353
    %4381 = vmatprep.subr.mxu0 0.0
    %4382 = vmatpush1.msra.mxu0 %v4354
    %4383 = vmatprep.subr.mxu0 0.0
    %4384 = vmatpush1.msra.mxu0 %v4355
    %4385 = vmatprep.subr.mxu0 0.0
    %4386 = vmatpush1.msra.mxu0 %v4356
    %4387 = vmatprep.subr.mxu0 0.0
    %4388 = vmatpush1.msra.mxu0 %v4357
    %4389 = vmatprep.subr.mxu0 0.0
    %4390 = vmatpush1.msra.mxu0 %v4358
    %4391 = vmatprep.subr.mxu0 0.0
    %4392 = vmatpush1.msra.mxu0 %v4359
    %4393 = vmatprep.subr.mxu0 0.0
    %4394 = vmatpush1.msra.mxu0 %v4360
    %4395 = vmatprep.subr.mxu0 0.0
    %4396 = vmatpush1.msra.mxu0 %v4361
    %4397 = vmatprep.subr.mxu0 0.0
    %4398 = vmatpush1.msra.mxu0 %v4362
    %4399 = vmatprep.subr.mxu0 0.0
    %4400 = vmatpush1.msra.mxu0 %v4363
    %4401 = vmatprep.subr.mxu0 0.0
    %4402 = vmatpush1.msra.mxu0 %v4364
    %4403 = vmatprep.subr.mxu0 0.0
    %4404 = vmatpush1.msra.mxu0 %v4365
    %4405 = vmatprep.subr.mxu0 0.0
    %4406 = vmatpush1.msra.mxu0 %v4375
    %4407 = vmatprep.subr.mxu0 0.0
    %4408 = vmatpush1.msra.mxu0 0.0
    %4409 = vmatprep.subr.mxu0 0.0
    %4410 = vmatpush1.msra.mxu0 0.0
    %4411 = vmatprep.subr.mxu0 0.0
    %4412 = vmatpush1.msra.mxu0 0.0
    %4413 = vmatprep.subr.mxu0 0.0
    %4414 = vmatpush1.msra.mxu0 0.0
    %4415 = vmatprep.subr.mxu0 0.0
    %4416 = vmatpush1.msra.mxu0 0.0
    %4417 = vmatprep.subr.mxu0 0.0
    %4418 = vmatpush1.msra.mxu0 0.0
    %4419 = vmatprep.subr.mxu0 0.0
    %4420 = vmatpush1.msra.mxu0 0.0
    %4421 = vmatprep.subr.mxu0 0.0
    %4422 = vmatpush1.msra.mxu0 0.0
    %4423 = vmatprep.subr.mxu0 0.0
    %4424 = vmatpush1.msra.mxu0 0.0
    %4425 = vmatprep.subr.mxu0 0.0
    %4426 = vmatpush1.msra.mxu0 0.0
    %4427 = vmatprep.subr.mxu0 0.0
    %4428 = vmatpush1.msra.mxu0 0.0
    %4429 = vmatprep.subr.mxu0 0.0
    %4430 = vmatpush1.msra.mxu0 0.0
    %4431 = vmatprep.subr.mxu0 0.0
    %4432 = vmatpush1.msra.mxu0 0.0
    %4433 = vmatprep.subr.mxu0 0.0
    %4434 = vmatpush1.msra.mxu0 0.0
    %4435 = vmatprep.subr.mxu0 0.0
    %4436 = vmatpush1.msra.mxu0 0.0
    %4437 = vmatprep.subr.mxu0 0.0
    %4438 = vmatpush1.msra.mxu0 0.0
    %4439 = vmatprep.subr.mxu0 0.0
    %4440 = vmatpush1.msra.mxu0 0.0
    %4441 = vmatprep.mubr.f32.mxu0 0.0
    %4442 = vmatmul.mubr.f32.gmra.mrb[0].mxu0 %v4371
    %v4443 = vpop.f32.mrb[0].mxu0
    %v4444 = vadd.f32 0.0, %v4443
    %v4445 = vpop.f32.mrb[0].mxu0
    %4446 = vdwg.mxu0
    %v4447 = vsel %vm4370, %v4335, 0
    %v4450 = vsel %vm4373, %v4350, 0
    %4452 = vmatprep.subr.mxu0 0.0
    %4453 = vmatpush1.msra.mxu0 %v4336
    %4454 = vmatprep.subr.mxu0 0.0
    %4455 = vmatpush1.msra.mxu0 %v4337
    %4456 = vmatprep.subr.mxu0 0.0
    %4457 = vmatpush1.msra.mxu0 %v4338
    %4458 = vmatprep.subr.mxu0 0.0
    %4459 = vmatpush1.msra.mxu0 %v4339
    %4460 = vmatprep.subr.mxu0 0.0
    %4461 = vmatpush1.msra.mxu0 %v4340
    %4462 = vmatprep.subr.mxu0 0.0
    %4463 = vmatpush1.msra.mxu0 %v4341
    %4464 = vmatprep.subr.mxu0 0.0
    %4465 = vmatpush1.msra.mxu0 %v4342
    %4466 = vmatprep.subr.mxu0 0.0
    %4467 = vmatpush1.msra.mxu0 %v4343
    %4468 = vmatprep.subr.mxu0 0.0
    %4469 = vmatpush1.msra.mxu0 %v4344
    %4470 = vmatprep.subr.mxu0 0.0
    %4471 = vmatpush1.msra.mxu0 %v4345
    %4472 = vmatprep.subr.mxu0 0.0
    %4473 = vmatpush1.msra.mxu0 %v4346
    %4474 = vmatprep.subr.mxu0 0.0
    %4475 = vmatpush1.msra.mxu0 %v4347
    %4476 = vmatprep.subr.mxu0 0.0
    %4477 = vmatpush1.msra.mxu0 %v4348
    %4478 = vmatprep.subr.mxu0 0.0
    %4479 = vmatpush1.msra.mxu0 %v4349
    %4480 = vmatprep.subr.mxu0 0.0
    %4481 = vmatpush1.msra.mxu0 %v4450
    %4482 = vmatprep.subr.mxu0 0.0
    %4483 = vmatpush1.msra.mxu0 0.0
    %4484 = vmatprep.subr.mxu0 0.0
    %4485 = vmatpush1.msra.mxu0 0.0
    %4486 = vmatprep.subr.mxu0 0.0
    %4487 = vmatpush1.msra.mxu0 0.0
    %4488 = vmatprep.subr.mxu0 0.0
    %4489 = vmatpush1.msra.mxu0 0.0
    %4490 = vmatprep.subr.mxu0 0.0
    %4491 = vmatpush1.msra.mxu0 0.0
    %4492 = vmatprep.subr.mxu0 0.0
    %4493 = vmatpush1.msra.mxu0 0.0
    %4494 = vmatprep.subr.mxu0 0.0
    %4495 = vmatpush1.msra.mxu0 0.0
    %4496 = vmatprep.subr.mxu0 0.0
    %4497 = vmatpush1.msra.mxu0 0.0
    %4498 = vmatprep.subr.mxu0 0.0
    %4499 = vmatpush1.msra.mxu0 0.0
    %4500 = vmatprep.subr.mxu0 0.0
    %4501 = vmatpush1.msra.mxu0 0.0
    %4502 = vmatprep.subr.mxu0 0.0
    %4503 = vmatpush1.msra.mxu0 0.0
    %4504 = vmatprep.subr.mxu0 0.0
    %4505 = vmatpush1.msra.mxu0 0.0
    %4506 = vmatprep.subr.mxu0 0.0
    %4507 = vmatpush1.msra.mxu0 0.0
    %4508 = vmatprep.subr.mxu0 0.0
    %4509 = vmatpush1.msra.mxu0 0.0
    %4510 = vmatprep.subr.mxu0 0.0
    %4511 = vmatpush1.msra.mxu0 0.0
    %4512 = vmatprep.subr.mxu0 0.0
    %4513 = vmatpush1.msra.mxu0 0.0
    %4514 = vmatprep.subr.mxu0 0.0
    %4515 = vmatpush1.msra.mxu0 0.0
    %4516 = vmatprep.mubr.f32.mxu0 0.0
    %4517 = vmatmul.mubr.f32.gmra.mrb[0].mxu0 %v4447
    %v4518 = vpop.f32.mrb[0].mxu0
    %v4519 = vadd.f32 %v4444, %v4518
    %v4520 = vpop.f32.mrb[0].mxu0
    %4521 = vdwg.mxu0
    %s4522 = scalar_lea.vmem %s1, 240
    %v4523 = vld [vmem:[%s4522] sm:$0xff]
    %v4524 = vld [vmem:[%s4522 + $0x8] sm:$0xff]
    %v4525 = vld [vmem:[%s4522 + $0x10] sm:$0xff]
    %v4526 = vld [vmem:[%s4522 + $0x18] sm:$0xff]
    %v4527 = vld [vmem:[%s4522 + $0x20] sm:$0xff]
    %v4528 = vld [vmem:[%s4522 + $0x28] sm:$0xff]
    %v4529 = vld [vmem:[%s4522 + $0x30] sm:$0xff]
    %v4530 = vld [vmem:[%s4522 + $0x38] sm:$0xff]
    %v4531 = vld [vmem:[%s4522 + $0x40] sm:$0xff]
    %v4532 = vld [vmem:[%s4522 + $0x48] sm:$0xff]
    %v4533 = vld [vmem:[%s4522 + $0x50] sm:$0xff]
    %v4534 = vld [vmem:[%s4522 + $0x58] sm:$0xff]
    %v4535 = vld [vmem:[%s4522 + $0x60] sm:$0xff]
    %v4536 = vld [vmem:[%s4522 + $0x68] sm:$0xff]
    %v4537 = vld [vmem:[%s4522 + $0x70] sm:$0x1]
    %4538 = vrot.lane.b32.xlu0 %v4335, 124
    %v4539 = vpop.permute.xlu0 %4538
    %v4540 = vsel %vm4370, %v4539, 0
    %v4543 = vsel %vm4373, %v4537, 0
    %4545 = vmatprep.subr.mxu0 0.0
    %4546 = vmatpush1.msra.mxu0 %v4523
    %4547 = vmatprep.subr.mxu0 0.0
    %4548 = vmatpush1.msra.mxu0 %v4524
    %4549 = vmatprep.subr.mxu0 0.0
    %4550 = vmatpush1.msra.mxu0 %v4525
    %4551 = vmatprep.subr.mxu0 0.0
    %4552 = vmatpush1.msra.mxu0 %v4526
    %4553 = vmatprep.subr.mxu0 0.0
    %4554 = vmatpush1.msra.mxu0 %v4527
    %4555 = vmatprep.subr.mxu0 0.0
    %4556 = vmatpush1.msra.mxu0 %v4528
    %4557 = vmatprep.subr.mxu0 0.0
    %4558 = vmatpush1.msra.mxu0 %v4529
    %4559 = vmatprep.subr.mxu0 0.0
    %4560 = vmatpush1.msra.mxu0 %v4530
    %4561 = vmatprep.subr.mxu0 0.0
    %4562 = vmatpush1.msra.mxu0 %v4531
    %4563 = vmatprep.subr.mxu0 0.0
    %4564 = vmatpush1.msra.mxu0 %v4532
    %4565 = vmatprep.subr.mxu0 0.0
    %4566 = vmatpush1.msra.mxu0 %v4533
    %4567 = vmatprep.subr.mxu0 0.0
    %4568 = vmatpush1.msra.mxu0 %v4534
    %4569 = vmatprep.subr.mxu0 0.0
    %4570 = vmatpush1.msra.mxu0 %v4535
    %4571 = vmatprep.subr.mxu0 0.0
    %4572 = vmatpush1.msra.mxu0 %v4536
    %4573 = vmatprep.subr.mxu0 0.0
    %4574 = vmatpush1.msra.mxu0 %v4543
    %4575 = vmatprep.subr.mxu0 0.0
    %4576 = vmatpush1.msra.mxu0 0.0
    %4577 = vmatprep.subr.mxu0 0.0
    %4578 = vmatpush1.msra.mxu0 0.0
    %4579 = vmatprep.subr.mxu0 0.0
    %4580 = vmatpush1.msra.mxu0 0.0
    %4581 = vmatprep.subr.mxu0 0.0
    %4582 = vmatpush1.msra.mxu0 0.0
    %4583 = vmatprep.subr.mxu0 0.0
    %4584 = vmatpush1.msra.mxu0 0.0
    %4585 = vmatprep.subr.mxu0 0.0
    %4586 = vmatpush1.msra.mxu0 0.0
    %4587 = vmatprep.subr.mxu0 0.0
    %4588 = vmatpush1.msra.mxu0 0.0
    %4589 = vmatprep.subr.mxu0 0.0
    %4590 = vmatpush1.msra.mxu0 0.0
    %4591 = vmatprep.subr.mxu0 0.0
    %4592 = vmatpush1.msra.mxu0 0.0
    %4593 = vmatprep.subr.mxu0 0.0
    %4594 = vmatpush1.msra.mxu0 0.0
    %4595 = vmatprep.subr.mxu0 0.0
    %4596 = vmatpush1.msra.mxu0 0.0
    %4597 = vmatprep.subr.mxu0 0.0
    %4598 = vmatpush1.msra.mxu0 0.0
    %4599 = vmatprep.subr.mxu0 0.0
    %4600 = vmatpush1.msra.mxu0 0.0
    %4601 = vmatprep.subr.mxu0 0.0
    %4602 = vmatpush1.msra.mxu0 0.0
    %4603 = vmatprep.subr.mxu0 0.0
    %4604 = vmatpush1.msra.mxu0 0.0
    %4605 = vmatprep.subr.mxu0 0.0
    %4606 = vmatpush1.msra.mxu0 0.0
    %4607 = vmatprep.subr.mxu0 0.0
    %4608 = vmatpush1.msra.mxu0 0.0
    %4609 = vmatprep.mubr.f32.mxu0 0.0
    %4610 = vmatmul.mubr.f32.gmra.mrb[0].mxu0 %v4540
    %v4611 = vpop.f32.mrb[0].mxu0
    %v4612 = vadd.f32 0.0, %v4611
    %v4613 = vpop.f32.mrb[0].mxu0
    %4614 = vdwg.mxu0
    %v4615 = vadd.f32 %v4519, %v4612
    %s4616 = scalar_lea.vmem %s1, 360
    %v4617 = vld [vmem:[%s4616] sm:$0xff]
    %v4618 = vld [vmem:[%s4616 + $0x8] sm:$0xff]
    %v4619 = vld [vmem:[%s4616 + $0x10] sm:$0xff]
    %v4620 = vld [vmem:[%s4616 + $0x18] sm:$0xff]
    %v4621 = vld [vmem:[%s4616 + $0x20] sm:$0xff]
    %v4622 = vld [vmem:[%s4616 + $0x28] sm:$0xff]
    %v4623 = vld [vmem:[%s4616 + $0x30] sm:$0xff]
    %v4624 = vld [vmem:[%s4616 + $0x38] sm:$0xff]
    %v4625 = vld [vmem:[%s4616 + $0x40] sm:$0xff]
    %v4626 = vld [vmem:[%s4616 + $0x48] sm:$0xff]
    %v4627 = vld [vmem:[%s4616 + $0x50] sm:$0xff]
    %v4628 = vld [vmem:[%s4616 + $0x58] sm:$0xff]
    %v4629 = vld [vmem:[%s4616 + $0x60] sm:$0xff]
    %v4630 = vld [vmem:[%s4616 + $0x68] sm:$0xff]
    %v4631 = vld [vmem:[%s4616 + $0x70] sm:$0x1]
    %4632 = vrot.lane.b32.xlu0 %v4335, 122
    %v4633 = vpop.permute.xlu0 %4632
    %v4634 = vsel %vm4370, %v4633, 0
    %v4637 = vsel %vm4373, %v4631, 0
    %4639 = vmatprep.subr.mxu0 0.0
    %4640 = vmatpush1.msra.mxu0 %v4617
    %4641 = vmatprep.subr.mxu0 0.0
    %4642 = vmatpush1.msra.mxu0 %v4618
    %4643 = vmatprep.subr.mxu0 0.0
    %4644 = vmatpush1.msra.mxu0 %v4619
    %4645 = vmatprep.subr.mxu0 0.0
    %4646 = vmatpush1.msra.mxu0 %v4620
    %4647 = vmatprep.subr.mxu0 0.0
    %4648 = vmatpush1.msra.mxu0 %v4621
    %4649 = vmatprep.subr.mxu0 0.0
    %4650 = vmatpush1.msra.mxu0 %v4622
    %4651 = vmatprep.subr.mxu0 0.0
    %4652 = vmatpush1.msra.mxu0 %v4623
    %4653 = vmatprep.subr.mxu0 0.0
    %4654 = vmatpush1.msra.mxu0 %v4624
    %4655 = vmatprep.subr.mxu0 0.0
    %4656 = vmatpush1.msra.mxu0 %v4625
    %4657 = vmatprep.subr.mxu0 0.0
    %4658 = vmatpush1.msra.mxu0 %v4626
    %4659 = vmatprep.subr.mxu0 0.0
    %4660 = vmatpush1.msra.mxu0 %v4627
    %4661 = vmatprep.subr.mxu0 0.0
    %4662 = vmatpush1.msra.mxu0 %v4628
    %4663 = vmatprep.subr.mxu0 0.0
    %4664 = vmatpush1.msra.mxu0 %v4629
    %4665 = vmatprep.subr.mxu0 0.0
    %4666 = vmatpush1.msra.mxu0 %v4630
    %4667 = vmatprep.subr.mxu0 0.0
    %4668 = vmatpush1.msra.mxu0 %v4637
    %4669 = vmatprep.subr.mxu0 0.0
    %4670 = vmatpush1.msra.mxu0 0.0
    %4671 = vmatprep.subr.mxu0 0.0
    %4672 = vmatpush1.msra.mxu0 0.0
    %4673 = vmatprep.subr.mxu0 0.0
    %4674 = vmatpush1.msra.mxu0 0.0
    %4675 = vmatprep.subr.mxu0 0.0
    %4676 = vmatpush1.msra.mxu0 0.0
    %4677 = vmatprep.subr.mxu0 0.0
    %4678 = vmatpush1.msra.mxu0 0.0
    %4679 = vmatprep.subr.mxu0 0.0
    %4680 = vmatpush1.msra.mxu0 0.0
    %4681 = vmatprep.subr.mxu0 0.0
    %4682 = vmatpush1.msra.mxu0 0.0
    %4683 = vmatprep.subr.mxu0 0.0
    %4684 = vmatpush1.msra.mxu0 0.0
    %4685 = vmatprep.subr.mxu0 0.0
    %4686 = vmatpush1.msra.mxu0 0.0
    %4687 = vmatprep.subr.mxu0 0.0
    %4688 = vmatpush1.msra.mxu0 0.0
    %4689 = vmatprep.subr.mxu0 0.0
    %4690 = vmatpush1.msra.mxu0 0.0
    %4691 = vmatprep.subr.mxu0 0.0
    %4692 = vmatpush1.msra.mxu0 0.0
    %4693 = vmatprep.subr.mxu0 0.0
    %4694 = vmatpush1.msra.mxu0 0.0
    %4695 = vmatprep.subr.mxu0 0.0
    %4696 = vmatpush1.msra.mxu0 0.0
    %4697 = vmatprep.subr.mxu0 0.0
    %4698 = vmatpush1.msra.mxu0 0.0
    %4699 = vmatprep.subr.mxu0 0.0
    %4700 = vmatpush1.msra.mxu0 0.0
    %4701 = vmatprep.subr.mxu0 0.0
    %4702 = vmatpush1.msra.mxu0 0.0
    %4703 = vmatprep.mubr.f32.mxu0 0.0
    %4704 = vmatmul.mubr.f32.gmra.mrb[0].mxu0 %v4634
    %v4705 = vpop.f32.mrb[0].mxu0
    %v4706 = vadd.f32 0.0, %v4705
    %v4707 = vpop.f32.mrb[0].mxu0
    %4708 = vdwg.mxu0
    %v4709 = vadd.f32 %v4615, %v4706
    %vm4710 = vcmask 253952
    %4711 = vst.msk [vmem:[#allocation10] sm:$0x1] %vm4710, %v4709
    // Predicated region
    $region42: #{tpu_custom_call.1} parent=1 // pred_check
      _
    $region43: #{tpu_custom_call.1} parent=1 // pred_check_branch
      %4713 = sbr.rel (0) target = $region45
    $region44: #{tpu_custom_call.1} parent=1 // pred_region
      %s4715 = ssub.s32 16, 16
      %4716 = vsyncadd [#allocation3], %s4715
      %s4718 = sshll.u32 [#allocation10], 4
      %s4719 = int_to_ptr.vmem [resolvable:$true] %s4718
      %4721 = dma.vmem_to_hbm [thread:$0]  %s4719, 16, %s6, [#allocation3]
    $region45: #{tpu_custom_call.1} parent=1 // pred_fallthru
      _
    // Predicated region
    $region46: #{tpu_custom_call.1} parent=1 // pred_check
      _
    $region47: #{tpu_custom_call.1} parent=1 // pred_check_branch
      %4723 = sbr.rel (0) target = $region49
    $region48: #{tpu_custom_call.1} parent=1 // pred_region
      %4724 = dma.done [#allocation3], 16
    $region49: #{tpu_custom_call.1} parent=1 // pred_fallthru
      _
    %4725 = vsyncpa [#allocation3], 1
    %4726 = vsyncpa [#allocation4], 1
    %4727 = vsyncpa [#allocation6], 1
    %4728 = vsyncpa [#allocation9], 1

</llo_original>
